<compile_context>
chip_gen: v6e
topology: v6e:2x2x1
jax: 0.10.0
libtpu: 0.0.40
codegen_flags: <defaults>
</compile_context>

<pallas_src>
import functools

import jax
import jax.numpy as jnp
from jax.experimental import pallas as pl
from jax.experimental.pallas import tpu as pltpu


_INV_SQRT2 = 0.7071067811865476


def _detect_big_vmem():
    """True on 128-MiB-VMEM parts (v5e/v6e); conservative default otherwise."""
    try:
        return pltpu.get_tpu_info().vmem_capacity_bytes >= 100 * 1024 * 1024
    except Exception:
        return False


_BIG_VMEM = _detect_big_vmem()
_VMEM_LIMIT = (80 if _BIG_VMEM else 48) * 1024 * 1024   # <=48 MiB on v7x (64 MiB phys)
_ROW_TILE = 1024 if _BIG_VMEM else 512                   # token-axis tile
_Q_TILE = 256                                            # attention query tile


def _cparams(n_grid_axes):
    return pltpu.CompilerParams(
        dimension_semantics=("parallel",) * n_grid_axes,
        vmem_limit_bytes=_VMEM_LIMIT,
    )


def _pick_tm(M):
    """Row-tile size: whole extent for small inputs, large tiles at scale."""
    return M if M <= _ROW_TILE else _ROW_TILE


def _ln(x_f32, g, b, eps=1e-5):
    """LayerNorm over the last axis (f32 math, PyTorch eps)."""
    mu = jnp.mean(x_f32, axis=-1, keepdims=True)
    var = jnp.mean(jnp.square(x_f32 - mu), axis=-1, keepdims=True)
    return (x_f32 - mu) * jax.lax.rsqrt(var + eps) * g + b


def _gelu(x_f32):
    return 0.5 * x_f32 * (1.0 + jax.lax.erf(x_f32 * _INV_SQRT2))


# --------------------------------------------------------------------------
# Pallas kernels (fused, row-tiled)
# --------------------------------------------------------------------------

def _matmul_ln_kernel(x_ref, w_ref, b_ref, g_ref, bt_ref, o_ref):
    """o = LayerNorm(x @ w + b)  (patch-embed projection + its LayerNorm)."""
    acc = jnp.dot(x_ref[...], w_ref[...], preferred_element_type=jnp.float32)
    acc = acc + b_ref[...]
    o_ref[...] = _ln(acc, g_ref[...], bt_ref[...]).astype(o_ref.dtype)


def _ln_q_kernel(x_ref, w_ref, b_ref, g_ref, bt_ref, xn_ref, q_ref, *, scale):
    """xn = LayerNorm(x); q = (xn @ w + b) * scale  (softmax scale folded here)."""
    xn = _ln(x_ref[...].astype(jnp.float32), g_ref[...], bt_ref[...])
    xn_bf = xn.astype(jnp.bfloat16)
    xn_ref[...] = xn_bf
    q = (jnp.dot(xn_bf, w_ref[...], preferred_element_type=jnp.float32)
         + b_ref[...]) * scale
    q_ref[...] = q.astype(q_ref.dtype)


def _sr_kv_kernel(x_ref, w1_ref, b1_ref, g_ref, bt_ref, w2_ref, b2_ref, o_ref):
    """o = (LayerNorm(x @ w1 + b1)) @ w2 + b2  (sr conv + srLN + kv proj)."""
    t = jnp.dot(x_ref[...], w1_ref[...],
                preferred_element_type=jnp.float32) + b1_ref[...]
    t = _ln(t, g_ref[...], bt_ref[...])
    acc = jnp.dot(t.astype(jnp.bfloat16), w2_ref[...],
                  preferred_element_type=jnp.float32) + b2_ref[...]
    o_ref[...] = acc.astype(o_ref.dtype)


def _attention_kernel(q_ref, kv_ref, o_ref, *, num_heads):
    """softmax(q k^T) v for one (batch, query-tile); q is pre-scaled.

    kv block is constant across the query-tile grid axis so it stays resident.
    """
    # TODO(synk): with many heads, a head-major layout + batched dot_general
    #             would remove the per-head lane slices / lane concat below.
    C = q_ref.shape[-1]
    d = C // num_heads
    q = q_ref[0]          # (TQ, C)  bf16, already scaled by d**-0.5
    kv = kv_ref[0]        # (Ns, 2C) bf16
    outs = []
    for h in range(num_heads):
        qh = q[:, h * d:(h + 1) * d]
        kh = kv[:, h * d:(h + 1) * d]
        vh = kv[:, C + h * d:C + (h + 1) * d]
        s = jax.lax.dot_general(qh, kh, (((1,), (1,)), ((), ())),
                                preferred_element_type=jnp.float32)
        s = s - jnp.max(s, axis=-1, keepdims=True)
        p = jnp.exp(s)
        inv = pl.reciprocal(jnp.sum(p, axis=-1, keepdims=True), approx=True)
        out_h = jnp.dot(p.astype(jnp.bfloat16), vh,
                        preferred_element_type=jnp.float32) * inv
        outs.append(out_h)
    # single lane-dense (TQ, C) store instead of per-head masked stores
    o_ref[0] = jnp.concatenate(outs, axis=-1).astype(o_ref.dtype)


def _proj_res_ln_fc1_kernel(a_ref, wp_ref, bp_ref, r_ref, g_ref, bt_ref,
                            w1_ref, b1_ref, tok_ref, h_ref):
    """tok = a @ Wp + bp + res;  h = LayerNorm(tok) @ W1 + b1  (fused)."""
    t = jnp.dot(a_ref[...], wp_ref[...],
                preferred_element_type=jnp.float32) + bp_ref[...]
    t = t + r_ref[...].astype(jnp.float32)
    tok_ref[...] = t.astype(tok_ref.dtype)
    tn = _ln(t, g_ref[...], bt_ref[...])
    h = jnp.dot(tn.astype(jnp.bfloat16), w1_ref[...],
                preferred_element_type=jnp.float32) + b1_ref[...]
    h_ref[...] = h.astype(h_ref.dtype)


def _linear_res_ln_kernel(x_ref, w_ref, b_ref, r_ref, g_ref, bt_ref, o_ref):
    """o = LayerNorm(x @ w + b + residual)  (fc2 + residual + stage norm)."""
    acc = jnp.dot(x_ref[...], w_ref[...],
                  preferred_element_type=jnp.float32) + b_ref[...]
    acc = acc + r_ref[...].astype(jnp.float32)
    o_ref[...] = _ln(acc, g_ref[...], bt_ref[...]).astype(o_ref.dtype)


def _dwconv3x3_gelu_kernel(x_ref, w_ref, b_ref, o_ref, *, H, W):
    """Depthwise 3x3 conv (channels-last, pre-padded, channel-tiled) + GELU."""
    # TODO(synk): the kw-shifted sublane slices could become XLU rolls
    #             (pltpu.roll) to avoid per-tap relayout copies.
    TC = x_ref.shape[-1]
    acc = jnp.zeros((H, W, TC), jnp.float32)
    for kh in range(3):
        for kw in range(3):
            patch = x_ref[0, kh:kh + H, kw:kw + W, :].astype(jnp.float32)
            acc = acc + patch * w_ref[kh * 3 + kw]
    acc = acc + b_ref[...]
    o_ref[0] = _gelu(acc).astype(o_ref.dtype)


# --------------------------------------------------------------------------
# pallas_call wrappers (grid over token / query / channel axes)
# --------------------------------------------------------------------------

def matmul_ln(x, w, b, g, beta):
    M, K = x.shape
    N = w.shape[1]
    TM = _pick_tm(M)
    return pl.pallas_call(
        _matmul_ln_kernel,
        out_shape=jax.ShapeDtypeStruct((M, N), jnp.bfloat16),
        grid=(pl.cdiv(M, TM),),
        in_specs=[
            pl.BlockSpec((TM, K), lambda i: (i, 0)),
            pl.BlockSpec((K, N), lambda i: (0, 0)),
            pl.BlockSpec((1, N), lambda i: (0, 0)),
            pl.BlockSpec((1, N), lambda i: (0, 0)),
            pl.BlockSpec((1, N), lambda i: (0, 0)),
        ],
        out_specs=pl.BlockSpec((TM, N), lambda i: (i, 0)),
        compiler_params=_cparams(1),
    )(x, w, b.reshape(1, N), g.reshape(1, N), beta.reshape(1, N))


def ln1_q(x, w, b, g, beta, scale):
    M, C = x.shape
    TM = _pick_tm(M)
    return pl.pallas_call(
        functools.partial(_ln_q_kernel, scale=scale),
        out_shape=(jax.ShapeDtypeStruct((M, C), jnp.bfloat16),
                   jax.ShapeDtypeStruct((M, C), jnp.bfloat16)),
        grid=(pl.cdiv(M, TM),),
        in_specs=[
            pl.BlockSpec((TM, C), lambda i: (i, 0)),
            pl.BlockSpec((C, C), lambda i: (0, 0)),
            pl.BlockSpec((1, C), lambda i: (0, 0)),
            pl.BlockSpec((1, C), lambda i: (0, 0)),
            pl.BlockSpec((1, C), lambda i: (0, 0)),
        ],
        out_specs=(pl.BlockSpec((TM, C), lambda i: (i, 0)),
                   pl.BlockSpec((TM, C), lambda i: (i, 0))),
        compiler_params=_cparams(1),
    )(x, w, b.reshape(1, C), g.reshape(1, C), beta.reshape(1, C))


def sr_kv(cols, w1, b1, g, beta, w2, b2):
    M, K = cols.shape
    C = w1.shape[1]
    N2 = w2.shape[1]
    TM = _pick_tm(M)
    return pl.pallas_call(
        _sr_kv_kernel,
        out_shape=jax.ShapeDtypeStruct((M, N2), jnp.bfloat16),
        grid=(pl.cdiv(M, TM),),
        in_specs=[
            pl.BlockSpec((TM, K), lambda i: (i, 0)),
            pl.BlockSpec((K, C), lambda i: (0, 0)),
            pl.BlockSpec((1, C), lambda i: (0, 0)),
            pl.BlockSpec((1, C), lambda i: (0, 0)),
            pl.BlockSpec((1, C), lambda i: (0, 0)),
            pl.BlockSpec((C, N2), lambda i: (0, 0)),
            pl.BlockSpec((1, N2), lambda i: (0, 0)),
        ],
        out_specs=pl.BlockSpec((TM, N2), lambda i: (i, 0)),
        compiler_params=_cparams(1),
    )(cols, w1, b1.reshape(1, C), g.reshape(1, C), beta.reshape(1, C),
      w2, b2.reshape(1, N2))


def attention(q, kv, num_heads):
    B, N, C = q.shape
    Ns = kv.shape[1]
    TQ = N if N <= _Q_TILE else _Q_TILE
    return pl.pallas_call(
        functools.partial(_attention_kernel, num_heads=num_heads),
        out_shape=jax.ShapeDtypeStruct((B, N, C), jnp.bfloat16),
        grid=(B, pl.cdiv(N, TQ)),
        in_specs=[
            pl.BlockSpec((1, TQ, C), lambda b, t: (b, t, 0)),
            # constant block index across the query axis -> kv stays resident
            pl.BlockSpec((1, Ns, 2 * C), lambda b, t: (b, 0, 0)),
        ],
        out_specs=pl.BlockSpec((1, TQ, C), lambda b, t: (b, t, 0)),
        compiler_params=_cparams(2),
    )(q, kv)


def proj_res_ln_fc1(a, wp, bp, res, g, beta, w1, b1):
    M, C = a.shape
    Hd = w1.shape[1]
    TM = _pick_tm(M)
    return pl.pallas_call(
        _proj_res_ln_fc1_kernel,
        out_shape=(jax.ShapeDtypeStruct((M, C), jnp.bfloat16),
                   jax.ShapeDtypeStruct((M, Hd), jnp.bfloat16)),
        grid=(pl.cdiv(M, TM),),
        in_specs=[
            pl.BlockSpec((TM, C), lambda i: (i, 0)),
            pl.BlockSpec((C, C), lambda i: (0, 0)),
            pl.BlockSpec((1, C), lambda i: (0, 0)),
            pl.BlockSpec((TM, C), lambda i: (i, 0)),
            pl.BlockSpec((1, C), lambda i: (0, 0)),
            pl.BlockSpec((1, C), lambda i: (0, 0)),
            pl.BlockSpec((C, Hd), lambda i: (0, 0)),
            pl.BlockSpec((1, Hd), lambda i: (0, 0)),
        ],
        out_specs=(pl.BlockSpec((TM, C), lambda i: (i, 0)),
                   pl.BlockSpec((TM, Hd), lambda i: (i, 0))),
        compiler_params=_cparams(1),
    )(a, wp, bp.reshape(1, C), res, g.reshape(1, C), beta.reshape(1, C),
      w1, b1.reshape(1, Hd))


def linear_residual_ln(x, w, b, res, g, beta):
    M, K = x.shape
    N = w.shape[1]
    TM = _pick_tm(M)
    return pl.pallas_call(
        _linear_res_ln_kernel,
        out_shape=jax.ShapeDtypeStruct((M, N), jnp.bfloat16),   # bf16 store
        grid=(pl.cdiv(M, TM),),
        in_specs=[
            pl.BlockSpec((TM, K), lambda i: (i, 0)),
            pl.BlockSpec((K, N), lambda i: (0, 0)),
            pl.BlockSpec((1, N), lambda i: (0, 0)),
            pl.BlockSpec((TM, N), lambda i: (i, 0)),
            pl.BlockSpec((1, N), lambda i: (0, 0)),
            pl.BlockSpec((1, N), lambda i: (0, 0)),
        ],
        out_specs=pl.BlockSpec((TM, N), lambda i: (i, 0)),
        compiler_params=_cparams(1),
    )(x, w, b.reshape(1, N), res, g.reshape(1, N), beta.reshape(1, N))


def dwconv3x3_gelu(x_pad, w9, b, H, W):
    """Channel-tiled depthwise conv; bounds the f32 working set per grid step.

    TODO(synk): for very large H*W an additional halo'd row-strip tiling
                (manual DMA) would further cap the per-step accumulator.
    """
    B = x_pad.shape[0]
    C = x_pad.shape[-1]
    TC = C if C <= 128 else 128
    return pl.pallas_call(
        functools.partial(_dwconv3x3_gelu_kernel, H=H, W=W),
        out_shape=jax.ShapeDtypeStruct((B, H, W, C), jnp.bfloat16),
        grid=(B, pl.cdiv(C, TC)),
        in_specs=[
            pl.BlockSpec((1, H + 2, W + 2, TC), lambda b, c: (b, 0, 0, c)),
            pl.BlockSpec((9, TC), lambda b, c: (0, c)),
            pl.BlockSpec((1, TC), lambda b, c: (0, c)),
        ],
        out_specs=pl.BlockSpec((1, H, W, TC), lambda b, c: (b, 0, 0, c)),
        compiler_params=_cparams(2),
    )(x_pad, w9, b.reshape(1, C))


# --------------------------------------------------------------------------
# Glue (patch-embed im2col, space-to-depth, parameter setup) in plain JAX
# --------------------------------------------------------------------------

def _im2col_nchw(x, k, stride, pad):
    """NCHW im2col; returns (B*Ho*Wo, Cin*k*k) with (C, kh, kw) flatten order."""
    B, C, H, W = x.shape
    xp = jnp.pad(x, ((0, 0), (0, 0), (pad, pad), (pad, pad)))
    Ho = (H + 2 * pad - k) // stride + 1
    Wo = (W + 2 * pad - k) // stride + 1
    cols = []
    for kh in range(k):
        for kw in range(k):
            cols.append(xp[:, :, kh:kh + stride * Ho:stride, kw:kw + stride * Wo:stride])
    patches = jnp.stack(cols, axis=0).reshape(k, k, B, C, Ho, Wo)
    patches = patches.transpose(2, 4, 5, 3, 0, 1)       # (B, Ho, Wo, C, kh, kw)
    return patches.reshape(B * Ho * Wo, C * k * k), Ho, Wo


def init_params(key, in_ch=4, embed_dim=32, sr=2, mlp_ratio=4):
    hidden = embed_dim * mlp_ratio
    ks = jax.random.split(key, 8)
    s = 0.05
    zeros = lambda n: jnp.zeros((n,), jnp.float32)
    ones = lambda n: jnp.ones((n,), jnp.float32)
    # MXU matmul weights are bf16; biases / LN params / depthwise weights f32.
    nrm_bf = lambda k_, shp: (s * jax.random.normal(k_, shp, jnp.float32)).astype(jnp.bfloat16)
    nrm_f32 = lambda k_, shp: s * jax.random.normal(k_, shp, jnp.float32)
    p = {
        # OverlapPatchEmbed: Conv2d(in_ch, C, 7, stride=4, pad=3) + LayerNorm
        "pe_w": nrm_bf(ks[0], (in_ch * 7 * 7, embed_dim)), "pe_b": zeros(embed_dim),
        "pe_ln_g": ones(embed_dim), "pe_ln_b": zeros(embed_dim),
        # Block / Attention
        "ln1_g": ones(embed_dim), "ln1_b": zeros(embed_dim),
        "q_w": nrm_bf(ks[1], (embed_dim, embed_dim)), "q_b": zeros(embed_dim),
        "sr_w": nrm_bf(ks[2], (embed_dim * sr * sr, embed_dim)), "sr_b": zeros(embed_dim),
        "srln_g": ones(embed_dim), "srln_b": zeros(embed_dim),
        "kv_w": nrm_bf(ks[3], (embed_dim, 2 * embed_dim)), "kv_b": zeros(2 * embed_dim),
        "proj_w": nrm_bf(ks[4], (embed_dim, embed_dim)), "proj_b": zeros(embed_dim),
        # Block / Mix-FFN
        "ln2_g": ones(embed_dim), "ln2_b": zeros(embed_dim),
        "fc1_w": nrm_bf(ks[5], (embed_dim, hidden)), "fc1_b": zeros(hidden),
        "dw_w": nrm_f32(ks[6], (9, hidden)), "dw_b": zeros(hidden),
        "fc2_w": nrm_bf(ks[7], (hidden, embed_dim)), "fc2_b": zeros(embed_dim),
        # final stage LayerNorm
        "norm_g": ones(embed_dim), "norm_b": zeros(embed_dim),
    }
    return p


def segformer_stage1_forward(x, params, *, num_heads=2, sr=2):
    B = x.shape[0]
    C = params["pe_w"].shape[1]

    # ---- OverlapPatchEmbed (7x7 conv, stride 4, pad 3) + LayerNorm, fused ----
    cols, Hp, Wp = _im2col_nchw(x, 7, 4, 3)
    N = Hp * Wp
    tok = matmul_ln(cols.astype(jnp.bfloat16), params["pe_w"], params["pe_b"],
                    params["pe_ln_g"], params["pe_ln_b"])            # (B*N, C) bf16

    # ---- Block: efficient self-attention with spatial reduction ----
    # fused LN1 + q projection; softmax scale folded into q here.
    d = C // num_heads
    xn, q = ln1_q(tok, params["q_w"], params["q_b"],
                  params["ln1_g"], params["ln1_b"], scale=d ** -0.5)

    # sr conv (kernel=stride=sr, no pad) == channels-last space-to-depth + matmul
    # TODO(synk): at scale this gather should move inside the sr/kv kernel.
    Hs, Ws = Hp // sr, Wp // sr
    Ns = Hs * Ws
    cols_sr = (xn.reshape(B, Hs, sr, Ws, sr, C)
                 .transpose(0, 1, 3, 2, 4, 5)            # (B, Hs, Ws, i, j, C)
                 .reshape(B * Ns, sr * sr * C))
    kv = sr_kv(cols_sr, params["sr_w"], params["sr_b"],
               params["srln_g"], params["srln_b"],
               params["kv_w"], params["kv_b"])                       # (B*Ns, 2C) bf16

    a = attention(q.reshape(B, N, C), kv.reshape(B, Ns, 2 * C),
                  num_heads=num_heads)                               # (B, N, C)

    # fused: attention proj + residual  ->  LN2 + fc1 (Mix-FFN entry)
    tok2, h = proj_res_ln_fc1(a.reshape(B * N, C),
                              params["proj_w"], params["proj_b"], tok,
                              params["ln2_g"], params["ln2_b"],
                              params["fc1_w"], params["fc1_b"])
    hidden = h.shape[1]

    # ---- Block: Mix-FFN depthwise 3x3 conv + GELU, then fc2 + res + norm ----
    h_pad = jnp.pad(h.reshape(B, Hp, Wp, hidden),
                    ((0, 0), (1, 1), (1, 1), (0, 0)))
    h = dwconv3x3_gelu(h_pad, params["dw_w"], params["dw_b"], Hp, Wp)
    out = linear_residual_ln(h.reshape(B * N, hidden),
                             params["fc2_w"], params["fc2_b"], tok2,
                             params["norm_g"], params["norm_b"])     # (B*N, C) bf16

    # ---- back to NCHW feature map (permute on bf16, single f32 cast) ----
    out = out.reshape(B, N, C).transpose(0, 2, 1).reshape(B, C, Hp, Wp)
    return out.astype(jnp.float32)


if __name__ == "__main__":
    key = jax.random.PRNGKey(0)
    kx, kp = jax.random.split(key)
    x = jax.random.normal(kx, (2, 4, 16, 16), jnp.float32)           # NCHW input
    params = init_params(kp, in_ch=4, embed_dim=32, sr=2, mlp_ratio=4)

    fwd = jax.jit(functools.partial(segformer_stage1_forward, num_heads=2, sr=2))
    out = fwd(x, params)
    jax.block_until_ready(out)
    assert out.shape == (2, 32, 4, 4) and out.dtype == jnp.float32
    print("KERNEL_OK")
</pallas_src>

<mosaic_0001>
module attributes {stable_mosaic.version = 11 : i64} {
  func.func @_matmul_ln_kernel(%arg0: i32, %arg1: memref<32x196xbf16, #tpu.memory_space<vmem>>, %arg2: memref<196x32xbf16, #tpu.memory_space<vmem>>, %arg3: memref<1x32xf32, #tpu.memory_space<vmem>>, %arg4: memref<1x32xf32, #tpu.memory_space<vmem>>, %arg5: memref<1x32xf32, #tpu.memory_space<vmem>>, %arg6: memref<32x32xbf16, #tpu.memory_space<vmem>>) attributes {dimension_semantics = [#tpu.dimension_semantics<parallel>], iteration_bounds = array<i64: 1>, scalar_prefetch = 0 : i64, scratch_operands = 0 : i64, tpu.core_type = #tpu.core_type<tc>, window_params = [{transform_indices = @transform_0, window_bounds = array<i64: 32, 196>}, {pipeline_mode = #tpu.pipeline_mode<synchronous>, transform_indices = @transform_1, window_bounds = array<i64: 196, 32>}, {pipeline_mode = #tpu.pipeline_mode<synchronous>, transform_indices = @transform_2, window_bounds = array<i64: 1, 32>}, {pipeline_mode = #tpu.pipeline_mode<synchronous>, transform_indices = @transform_3, window_bounds = array<i64: 1, 32>}, {pipeline_mode = #tpu.pipeline_mode<synchronous>, transform_indices = @transform_4, window_bounds = array<i64: 1, 32>}, {transform_indices = @transform_5, window_bounds = array<i64: 32, 32>}]} {
    %c0 = arith.constant 0 : index
    %c0_0 = arith.constant 0 : index
    %0 = vector.load %arg1[%c0, %c0_0] : memref<32x196xbf16, #tpu.memory_space<vmem>>, vector<32x196xbf16>
    %c0_1 = arith.constant 0 : index
    %c0_2 = arith.constant 0 : index
    %1 = vector.load %arg2[%c0_1, %c0_2] : memref<196x32xbf16, #tpu.memory_space<vmem>>, vector<196x32xbf16>
    %cst = arith.constant dense<0.000000e+00> : vector<32x32xf32>
    %2 = tpu.matmul %0, %1, %cst {dimension_numbers = #tpu.dot_dimension_numbers<[1], [0], [0], [1], [0, 0, 1, 1], [], []>} : vector<32x196xbf16>, vector<196x32xbf16>, vector<32x32xf32> -> vector<32x32xf32>
    %c0_3 = arith.constant 0 : index
    %c0_4 = arith.constant 0 : index
    %3 = vector.load %arg3[%c0_3, %c0_4] : memref<1x32xf32, #tpu.memory_space<vmem>>, vector<1x32xf32>
    %4 = vector.broadcast %3 : vector<1x32xf32> to vector<32x32xf32>
    %5 = arith.addf %2, %4 : vector<32x32xf32>
    %c0_5 = arith.constant 0 : index
    %c0_6 = arith.constant 0 : index
    %6 = vector.load %arg4[%c0_5, %c0_6] : memref<1x32xf32, #tpu.memory_space<vmem>>, vector<1x32xf32>
    %c0_7 = arith.constant 0 : index
    %c0_8 = arith.constant 0 : index
    %7 = vector.load %arg5[%c0_7, %c0_8] : memref<1x32xf32, #tpu.memory_space<vmem>>, vector<1x32xf32>
    %cst_9 = arith.constant dense<0.000000e+00> : vector<32xf32>
    %8 = vector.multi_reduction <add>, %5, %cst_9 [1] : vector<32x32xf32> to vector<32xf32>
    %9 = vector.shape_cast %8 : vector<32xf32> to vector<32x1xf32>
    %cst_10 = arith.constant 3.200000e+01 : f32
    %10 = vector.broadcast %cst_10 : f32 to vector<32x1xf32>
    %11 = arith.divf %9, %10 : vector<32x1xf32>
    %12 = vector.broadcast %11 : vector<32x1xf32> to vector<32x32xf32>
    %13 = arith.subf %5, %12 : vector<32x32xf32>
    %14 = arith.mulf %13, %13 : vector<32x32xf32>
    %cst_11 = arith.constant dense<0.000000e+00> : vector<32xf32>
    %15 = vector.multi_reduction <add>, %14, %cst_11 [1] : vector<32x32xf32> to vector<32xf32>
    %16 = vector.shape_cast %15 : vector<32xf32> to vector<32x1xf32>
    %cst_12 = arith.constant 3.200000e+01 : f32
    %17 = vector.broadcast %cst_12 : f32 to vector<32x1xf32>
    %18 = arith.divf %16, %17 : vector<32x1xf32>
    %19 = vector.broadcast %11 : vector<32x1xf32> to vector<32x32xf32>
    %20 = arith.subf %5, %19 : vector<32x32xf32>
    %cst_13 = arith.constant 9.99999974E-6 : f32
    %21 = vector.broadcast %cst_13 : f32 to vector<32x1xf32>
    %22 = arith.addf %18, %21 : vector<32x1xf32>
    %23 = math.rsqrt %22 : vector<32x1xf32>
    %24 = vector.broadcast %23 : vector<32x1xf32> to vector<32x32xf32>
    %25 = arith.mulf %20, %24 : vector<32x32xf32>
    %26 = vector.broadcast %6 : vector<1x32xf32> to vector<32x32xf32>
    %27 = arith.mulf %25, %26 : vector<32x32xf32>
    %28 = vector.broadcast %7 : vector<1x32xf32> to vector<32x32xf32>
    %29 = arith.addf %27, %28 : vector<32x32xf32>
    %30 = arith.truncf %29 : vector<32x32xf32> to vector<32x32xbf16>
    %c0_14 = arith.constant 0 : index
    %c0_15 = arith.constant 0 : index
    %31 = vector.load %arg6[%c0_14, %c0_15] : memref<32x32xbf16, #tpu.memory_space<vmem>>, vector<32x32xbf16>
    tpu.vector_store %arg6[%c0_14, %c0_15], %30 {strides = array<i32>} : memref<32x32xbf16, #tpu.memory_space<vmem>>, vector<32x32xbf16>,
    return
  }
  func.func @transform_0(%arg0: i32) -> (i32, i32) {
    %c0_i32 = arith.constant 0 : i32
    %c0_i32_0 = arith.constant 0 : i32
    return %arg0, %c0_i32 : i32, i32
  }
  func.func @transform_1(%arg0: i32) -> (i32, i32) {
    %c0_i32 = arith.constant 0 : i32
    %c0_i32_0 = arith.constant 0 : i32
    %c0_i32_1 = arith.constant 0 : i32
    return %c0_i32, %c0_i32_0 : i32, i32
  }
  func.func @transform_2(%arg0: i32) -> (i32, i32) {
    %c0_i32 = arith.constant 0 : i32
    %c0_i32_0 = arith.constant 0 : i32
    %c0_i32_1 = arith.constant 0 : i32
    return %c0_i32, %c0_i32_0 : i32, i32
  }
  func.func @transform_3(%arg0: i32) -> (i32, i32) {
    %c0_i32 = arith.constant 0 : i32
    %c0_i32_0 = arith.constant 0 : i32
    %c0_i32_1 = arith.constant 0 : i32
    return %c0_i32, %c0_i32_0 : i32, i32
  }
  func.func @transform_4(%arg0: i32) -> (i32, i32) {
    %c0_i32 = arith.constant 0 : i32
    %c0_i32_0 = arith.constant 0 : i32
    %c0_i32_1 = arith.constant 0 : i32
    return %c0_i32, %c0_i32_0 : i32, i32
  }
  func.func @transform_5(%arg0: i32) -> (i32, i32) {
    %c0_i32 = arith.constant 0 : i32
    %c0_i32_0 = arith.constant 0 : i32
    return %arg0, %c0_i32 : i32, i32
  }
}

module attributes {stable_mosaic.version = 11 : i64} {
  func.func @_ln_q_kernel(%arg0: i32, %arg1: memref<32x32xbf16, #tpu.memory_space<vmem>>, %arg2: memref<32x32xbf16, #tpu.memory_space<vmem>>, %arg3: memref<1x32xf32, #tpu.memory_space<vmem>>, %arg4: memref<1x32xf32, #tpu.memory_space<vmem>>, %arg5: memref<1x32xf32, #tpu.memory_space<vmem>>, %arg6: memref<32x32xbf16, #tpu.memory_space<vmem>>, %arg7: memref<32x32xbf16, #tpu.memory_space<vmem>>) attributes {dimension_semantics = [#tpu.dimension_semantics<parallel>], iteration_bounds = array<i64: 1>, scalar_prefetch = 0 : i64, scratch_operands = 0 : i64, tpu.core_type = #tpu.core_type<tc>, window_params = [{transform_indices = @transform_0, window_bounds = array<i64: 32, 32>}, {pipeline_mode = #tpu.pipeline_mode<synchronous>, transform_indices = @transform_1, window_bounds = array<i64: 32, 32>}, {pipeline_mode = #tpu.pipeline_mode<synchronous>, transform_indices = @transform_2, window_bounds = array<i64: 1, 32>}, {pipeline_mode = #tpu.pipeline_mode<synchronous>, transform_indices = @transform_3, window_bounds = array<i64: 1, 32>}, {pipeline_mode = #tpu.pipeline_mode<synchronous>, transform_indices = @transform_4, window_bounds = array<i64: 1, 32>}, {transform_indices = @transform_5, window_bounds = array<i64: 32, 32>}, {transform_indices = @transform_6, window_bounds = array<i64: 32, 32>}]} {
    %c0 = arith.constant 0 : index
    %c0_0 = arith.constant 0 : index
    %0 = vector.load %arg1[%c0, %c0_0] : memref<32x32xbf16, #tpu.memory_space<vmem>>, vector<32x32xbf16>
    %1 = arith.extf %0 : vector<32x32xbf16> to vector<32x32xf32>
    %c0_1 = arith.constant 0 : index
    %c0_2 = arith.constant 0 : index
    %2 = vector.load %arg4[%c0_1, %c0_2] : memref<1x32xf32, #tpu.memory_space<vmem>>, vector<1x32xf32>
    %c0_3 = arith.constant 0 : index
    %c0_4 = arith.constant 0 : index
    %3 = vector.load %arg5[%c0_3, %c0_4] : memref<1x32xf32, #tpu.memory_space<vmem>>, vector<1x32xf32>
    %cst = arith.constant dense<0.000000e+00> : vector<32xf32>
    %4 = vector.multi_reduction <add>, %1, %cst [1] : vector<32x32xf32> to vector<32xf32>
    %5 = vector.shape_cast %4 : vector<32xf32> to vector<32x1xf32>
    %cst_5 = arith.constant 3.200000e+01 : f32
    %6 = vector.broadcast %cst_5 : f32 to vector<32x1xf32>
    %7 = arith.divf %5, %6 : vector<32x1xf32>
    %8 = vector.broadcast %7 : vector<32x1xf32> to vector<32x32xf32>
    %9 = arith.subf %1, %8 : vector<32x32xf32>
    %10 = arith.mulf %9, %9 : vector<32x32xf32>
    %cst_6 = arith.constant dense<0.000000e+00> : vector<32xf32>
    %11 = vector.multi_reduction <add>, %10, %cst_6 [1] : vector<32x32xf32> to vector<32xf32>
    %12 = vector.shape_cast %11 : vector<32xf32> to vector<32x1xf32>
    %cst_7 = arith.constant 3.200000e+01 : f32
    %13 = vector.broadcast %cst_7 : f32 to vector<32x1xf32>
    %14 = arith.divf %12, %13 : vector<32x1xf32>
    %15 = vector.broadcast %7 : vector<32x1xf32> to vector<32x32xf32>
    %16 = arith.subf %1, %15 : vector<32x32xf32>
    %cst_8 = arith.constant 9.99999974E-6 : f32
    %17 = vector.broadcast %cst_8 : f32 to vector<32x1xf32>
    %18 = arith.addf %14, %17 : vector<32x1xf32>
    %19 = math.rsqrt %18 : vector<32x1xf32>
    %20 = vector.broadcast %19 : vector<32x1xf32> to vector<32x32xf32>
    %21 = arith.mulf %16, %20 : vector<32x32xf32>
    %22 = vector.broadcast %2 : vector<1x32xf32> to vector<32x32xf32>
    %23 = arith.mulf %21, %22 : vector<32x32xf32>
    %24 = vector.broadcast %3 : vector<1x32xf32> to vector<32x32xf32>
    %25 = arith.addf %23, %24 : vector<32x32xf32>
    %26 = arith.truncf %25 : vector<32x32xf32> to vector<32x32xbf16>
    %c0_9 = arith.constant 0 : index
    %c0_10 = arith.constant 0 : index
    %27 = vector.load %arg6[%c0_9, %c0_10] : memref<32x32xbf16, #tpu.memory_space<vmem>>, vector<32x32xbf16>
    tpu.vector_store %arg6[%c0_9, %c0_10], %26 {strides = array<i32>} : memref<32x32xbf16, #tpu.memory_space<vmem>>, vector<32x32xbf16>,
    %c0_11 = arith.constant 0 : index
    %c0_12 = arith.constant 0 : index
    %28 = vector.load %arg2[%c0_11, %c0_12] : memref<32x32xbf16, #tpu.memory_space<vmem>>, vector<32x32xbf16>
    %cst_13 = arith.constant dense<0.000000e+00> : vector<32x32xf32>
    %29 = tpu.matmul %26, %28, %cst_13 {dimension_numbers = #tpu.dot_dimension_numbers<[1], [0], [0], [1], [0, 0, 1, 1], [], []>} : vector<32x32xbf16>, vector<32x32xbf16>, vector<32x32xf32> -> vector<32x32xf32>
    %c0_14 = arith.constant 0 : index
    %c0_15 = arith.constant 0 : index
    %30 = vector.load %arg3[%c0_14, %c0_15] : memref<1x32xf32, #tpu.memory_space<vmem>>, vector<1x32xf32>
    %31 = vector.broadcast %30 : vector<1x32xf32> to vector<32x32xf32>
    %32 = arith.addf %29, %31 : vector<32x32xf32>
    %cst_16 = arith.constant 2.500000e-01 : f32
    %33 = vector.broadcast %cst_16 : f32 to vector<32x32xf32>
    %34 = arith.mulf %32, %33 : vector<32x32xf32>
    %35 = arith.truncf %34 : vector<32x32xf32> to vector<32x32xbf16>
    %c0_17 = arith.constant 0 : index
    %c0_18 = arith.constant 0 : index
    %36 = vector.load %arg7[%c0_17, %c0_18] : memref<32x32xbf16, #tpu.memory_space<vmem>>, vector<32x32xbf16>
    tpu.vector_store %arg7[%c0_17, %c0_18], %35 {strides = array<i32>} : memref<32x32xbf16, #tpu.memory_space<vmem>>, vector<32x32xbf16>,
    return
  }
  func.func @transform_0(%arg0: i32) -> (i32, i32) {
    %c0_i32 = arith.constant 0 : i32
    %c0_i32_0 = arith.constant 0 : i32
    return %arg0, %c0_i32 : i32, i32
  }
  func.func @transform_1(%arg0: i32) -> (i32, i32) {
    %c0_i32 = arith.constant 0 : i32
    %c0_i32_0 = arith.constant 0 : i32
    %c0_i32_1 = arith.constant 0 : i32
    return %c0_i32, %c0_i32_0 : i32, i32
  }
  func.func @transform_2(%arg0: i32) -> (i32, i32) {
    %c0_i32 = arith.constant 0 : i32
    %c0_i32_0 = arith.constant 0 : i32
    %c0_i32_1 = arith.constant 0 : i32
    return %c0_i32, %c0_i32_0 : i32, i32
  }
  func.func @transform_3(%arg0: i32) -> (i32, i32) {
    %c0_i32 = arith.constant 0 : i32
    %c0_i32_0 = arith.constant 0 : i32
    %c0_i32_1 = arith.constant 0 : i32
    return %c0_i32, %c0_i32_0 : i32, i32
  }
  func.func @transform_4(%arg0: i32) -> (i32, i32) {
    %c0_i32 = arith.constant 0 : i32
    %c0_i32_0 = arith.constant 0 : i32
    %c0_i32_1 = arith.constant 0 : i32
    return %c0_i32, %c0_i32_0 : i32, i32
  }
  func.func @transform_5(%arg0: i32) -> (i32, i32) {
    %c0_i32 = arith.constant 0 : i32
    %c0_i32_0 = arith.constant 0 : i32
    return %arg0, %c0_i32 : i32, i32
  }
  func.func @transform_6(%arg0: i32) -> (i32, i32) {
    %c0_i32 = arith.constant 0 : i32
    %c0_i32_0 = arith.constant 0 : i32
    return %arg0, %c0_i32 : i32, i32
  }
}

module attributes {stable_mosaic.version = 11 : i64} {
  func.func @_attention_kernel(%arg0: i32, %arg1: i32, %arg2: memref<1x16x32xbf16, #tpu.memory_space<vmem>>, %arg3: memref<1x4x64xbf16, #tpu.memory_space<vmem>>, %arg4: memref<1x16x32xbf16, #tpu.memory_space<vmem>>) attributes {dimension_semantics = [#tpu.dimension_semantics<parallel>, #tpu.dimension_semantics<parallel>], iteration_bounds = array<i64: 2, 1>, scalar_prefetch = 0 : i64, scratch_operands = 0 : i64, tpu.core_type = #tpu.core_type<tc>, window_params = [{transform_indices = @transform_0, window_bounds = array<i64: 1, 16, 32>}, {transform_indices = @transform_1, window_bounds = array<i64: 1, 4, 64>}, {transform_indices = @transform_2, window_bounds = array<i64: 1, 16, 32>}]} {
    %c0 = arith.constant 0 : index
    %c0_0 = arith.constant 0 : index
    %c0_1 = arith.constant 0 : index
    %0 = vector.load %arg2[%c0, %c0_0, %c0_1] : memref<1x16x32xbf16, #tpu.memory_space<vmem>>, vector<1x16x32xbf16>
    %1 = vector.shape_cast %0 : vector<1x16x32xbf16> to vector<16x32xbf16>
    %c0_2 = arith.constant 0 : index
    %c0_3 = arith.constant 0 : index
    %c0_4 = arith.constant 0 : index
    %2 = vector.load %arg3[%c0_2, %c0_3, %c0_4] : memref<1x4x64xbf16, #tpu.memory_space<vmem>>, vector<1x4x64xbf16>
    %3 = vector.shape_cast %2 : vector<1x4x64xbf16> to vector<4x64xbf16>
    %4 = vector.extract_strided_slice %1 {offsets = [0, 0], sizes = [16, 16], strides = [1, 1]} : vector<16x32xbf16> to vector<16x16xbf16>
    %5 = vector.extract_strided_slice %3 {offsets = [0, 0], sizes = [4, 16], strides = [1, 1]} : vector<4x64xbf16> to vector<4x16xbf16>
    %6 = vector.extract_strided_slice %3 {offsets = [0, 32], sizes = [4, 16], strides = [1, 1]} : vector<4x64xbf16> to vector<4x16xbf16>
    %cst = arith.constant dense<0.000000e+00> : vector<16x4xf32>
    %7 = tpu.matmul %4, %5, %cst {dimension_numbers = #tpu.dot_dimension_numbers<[1], [1], [0], [0], [0, 0, 1, 0], [], []>} : vector<16x16xbf16>, vector<4x16xbf16>, vector<16x4xf32> -> vector<16x4xf32>
    %cst_5 = arith.constant dense<0xFF800000> : vector<16xf32>
    %8 = vector.multi_reduction <maximumf>, %7, %cst_5 [1] : vector<16x4xf32> to vector<16xf32>
    %9 = vector.shape_cast %8 : vector<16xf32> to vector<16x1xf32>
    %10 = vector.broadcast %9 : vector<16x1xf32> to vector<16x4xf32>
    %11 = arith.subf %7, %10 : vector<16x4xf32>
    %12 = math.exp %11 : vector<16x4xf32>
    %cst_6 = arith.constant dense<0.000000e+00> : vector<16xf32>
    %13 = vector.multi_reduction <add>, %12, %cst_6 [1] : vector<16x4xf32> to vector<16xf32>
    %14 = vector.shape_cast %13 : vector<16xf32> to vector<16x1xf32>
    %15 = tpu.reciprocal %14 {approx = true} : vector<16x1xf32> -> vector<16x1xf32>
    %16 = arith.truncf %12 : vector<16x4xf32> to vector<16x4xbf16>
    %cst_7 = arith.constant dense<0.000000e+00> : vector<16x16xf32>
    %17 = tpu.matmul %16, %6, %cst_7 {dimension_numbers = #tpu.dot_dimension_numbers<[1], [0], [0], [1], [0, 0, 1, 1], [], []>} : vector<16x4xbf16>, vector<4x16xbf16>, vector<16x16xf32> -> vector<16x16xf32>
    %18 = vector.broadcast %15 : vector<16x1xf32> to vector<16x16xf32>
    %19 = arith.mulf %17, %18 : vector<16x16xf32>
    %20 = vector.extract_strided_slice %1 {offsets = [0, 16], sizes = [16, 16], strides = [1, 1]} : vector<16x32xbf16> to vector<16x16xbf16>
    %21 = vector.extract_strided_slice %3 {offsets = [0, 16], sizes = [4, 16], strides = [1, 1]} : vector<4x64xbf16> to vector<4x16xbf16>
    %22 = vector.extract_strided_slice %3 {offsets = [0, 48], sizes = [4, 16], strides = [1, 1]} : vector<4x64xbf16> to vector<4x16xbf16>
    %cst_8 = arith.constant dense<0.000000e+00> : vector<16x4xf32>
    %23 = tpu.matmul %20, %21, %cst_8 {dimension_numbers = #tpu.dot_dimension_numbers<[1], [1], [0], [0], [0, 0, 1, 0], [], []>} : vector<16x16xbf16>, vector<4x16xbf16>, vector<16x4xf32> -> vector<16x4xf32>
    %cst_9 = arith.constant dense<0xFF800000> : vector<16xf32>
    %24 = vector.multi_reduction <maximumf>, %23, %cst_9 [1] : vector<16x4xf32> to vector<16xf32>
    %25 = vector.shape_cast %24 : vector<16xf32> to vector<16x1xf32>
    %26 = vector.broadcast %25 : vector<16x1xf32> to vector<16x4xf32>
    %27 = arith.subf %23, %26 : vector<16x4xf32>
    %28 = math.exp %27 : vector<16x4xf32>
    %cst_10 = arith.constant dense<0.000000e+00> : vector<16xf32>
    %29 = vector.multi_reduction <add>, %28, %cst_10 [1] : vector<16x4xf32> to vector<16xf32>
    %30 = vector.shape_cast %29 : vector<16xf32> to vector<16x1xf32>
    %31 = tpu.reciprocal %30 {approx = true} : vector<16x1xf32> -> vector<16x1xf32>
    %32 = arith.truncf %28 : vector<16x4xf32> to vector<16x4xbf16>
    %cst_11 = arith.constant dense<0.000000e+00> : vector<16x16xf32>
    %33 = tpu.matmul %32, %22, %cst_11 {dimension_numbers = #tpu.dot_dimension_numbers<[1], [0], [0], [1], [0, 0, 1, 1], [], []>} : vector<16x4xbf16>, vector<4x16xbf16>, vector<16x16xf32> -> vector<16x16xf32>
    %34 = vector.broadcast %31 : vector<16x1xf32> to vector<16x16xf32>
    %35 = arith.mulf %33, %34 : vector<16x16xf32>
    %36 = tpu.concatenate %19, %35 in 1 : vector<16x16xf32>, vector<16x16xf32> -> vector<16x32xf32>
    %37 = arith.truncf %36 : vector<16x32xf32> to vector<16x32xbf16>
    %c0_12 = arith.constant 0 : index
    %c0_13 = arith.constant 0 : index
    %c0_14 = arith.constant 0 : index
    %38 = vector.load %arg4[%c0_12, %c0_13, %c0_14] : memref<1x16x32xbf16, #tpu.memory_space<vmem>>, vector<1x16x32xbf16>
    %39 = vector.shape_cast %38 : vector<1x16x32xbf16> to vector<16x32xbf16>
    %40 = vector.shape_cast %37 : vector<16x32xbf16> to vector<1x16x32xbf16>
    tpu.vector_store %arg4[%c0_12, %c0_13, %c0_14], %40 {strides = array<i32>} : memref<1x16x32xbf16, #tpu.memory_space<vmem>>, vector<1x16x32xbf16>,
    return
  }
  func.func @transform_0(%arg0: i32, %arg1: i32) -> (i32, i32, i32) {
    %c0_i32 = arith.constant 0 : i32
    %c0_i32_0 = arith.constant 0 : i32
    return %arg0, %arg1, %c0_i32 : i32, i32, i32
  }
  func.func @transform_1(%arg0: i32, %arg1: i32) -> (i32, i32, i32) {
    %c0_i32 = arith.constant 0 : i32
    %c0_i32_0 = arith.constant 0 : i32
    %c0_i32_1 = arith.constant 0 : i32
    return %arg0, %c0_i32, %c0_i32_0 : i32, i32, i32
  }
  func.func @transform_2(%arg0: i32, %arg1: i32) -> (i32, i32, i32) {
    %c0_i32 = arith.constant 0 : i32
    %c0_i32_0 = arith.constant 0 : i32
    return %arg0, %arg1, %c0_i32 : i32, i32, i32
  }
}

module attributes {stable_mosaic.version = 11 : i64} {
  func.func @_proj_res_ln_fc1_kernel(%arg0: i32, %arg1: memref<32x32xbf16, #tpu.memory_space<vmem>>, %arg2: memref<32x32xbf16, #tpu.memory_space<vmem>>, %arg3: memref<1x32xf32, #tpu.memory_space<vmem>>, %arg4: memref<32x32xbf16, #tpu.memory_space<vmem>>, %arg5: memref<1x32xf32, #tpu.memory_space<vmem>>, %arg6: memref<1x32xf32, #tpu.memory_space<vmem>>, %arg7: memref<32x128xbf16, #tpu.memory_space<vmem>>, %arg8: memref<1x128xf32, #tpu.memory_space<vmem>>, %arg9: memref<32x32xbf16, #tpu.memory_space<vmem>>, %arg10: memref<32x128xbf16, #tpu.memory_space<vmem>>) attributes {dimension_semantics = [#tpu.dimension_semantics<parallel>], iteration_bounds = array<i64: 1>, scalar_prefetch = 0 : i64, scratch_operands = 0 : i64, tpu.core_type = #tpu.core_type<tc>, window_params = [{transform_indices = @transform_0, window_bounds = array<i64: 32, 32>}, {pipeline_mode = #tpu.pipeline_mode<synchronous>, transform_indices = @transform_1, window_bounds = array<i64: 32, 32>}, {pipeline_mode = #tpu.pipeline_mode<synchronous>, transform_indices = @transform_2, window_bounds = array<i64: 1, 32>}, {transform_indices = @transform_3, window_bounds = array<i64: 32, 32>}, {pipeline_mode = #tpu.pipeline_mode<synchronous>, transform_indices = @transform_4, window_bounds = array<i64: 1, 32>}, {pipeline_mode = #tpu.pipeline_mode<synchronous>, transform_indices = @transform_5, window_bounds = array<i64: 1, 32>}, {pipeline_mode = #tpu.pipeline_mode<synchronous>, transform_indices = @transform_6, window_bounds = array<i64: 32, 128>}, {pipeline_mode = #tpu.pipeline_mode<synchronous>, transform_indices = @transform_7, window_bounds = array<i64: 1, 128>}, {transform_indices = @transform_8, window_bounds = array<i64: 32, 32>}, {transform_indices = @transform_9, window_bounds = array<i64: 32, 128>}]} {
    %c0 = arith.constant 0 : index
    %c0_0 = arith.constant 0 : index
    %0 = vector.load %arg1[%c0, %c0_0] : memref<32x32xbf16, #tpu.memory_space<vmem>>, vector<32x32xbf16>
    %c0_1 = arith.constant 0 : index
    %c0_2 = arith.constant 0 : index
    %1 = vector.load %arg2[%c0_1, %c0_2] : memref<32x32xbf16, #tpu.memory_space<vmem>>, vector<32x32xbf16>
    %cst = arith.constant dense<0.000000e+00> : vector<32x32xf32>
    %2 = tpu.matmul %0, %1, %cst {dimension_numbers = #tpu.dot_dimension_numbers<[1], [0], [0], [1], [0, 0, 1, 1], [], []>} : vector<32x32xbf16>, vector<32x32xbf16>, vector<32x32xf32> -> vector<32x32xf32>
    %c0_3 = arith.constant 0 : index
    %c0_4 = arith.constant 0 : index
    %3 = vector.load %arg3[%c0_3, %c0_4] : memref<1x32xf32, #tpu.memory_space<vmem>>, vector<1x32xf32>
    %4 = vector.broadcast %3 : vector<1x32xf32> to vector<32x32xf32>
    %5 = arith.addf %2, %4 : vector<32x32xf32>
    %c0_5 = arith.constant 0 : index
    %c0_6 = arith.constant 0 : index
    %6 = vector.load %arg4[%c0_5, %c0_6] : memref<32x32xbf16, #tpu.memory_space<vmem>>, vector<32x32xbf16>
    %7 = arith.extf %6 : vector<32x32xbf16> to vector<32x32xf32>
    %8 = arith.addf %5, %7 : vector<32x32xf32>
    %9 = arith.truncf %8 : vector<32x32xf32> to vector<32x32xbf16>
    %c0_7 = arith.constant 0 : index
    %c0_8 = arith.constant 0 : index
    %10 = vector.load %arg9[%c0_7, %c0_8] : memref<32x32xbf16, #tpu.memory_space<vmem>>, vector<32x32xbf16>
    tpu.vector_store %arg9[%c0_7, %c0_8], %9 {strides = array<i32>} : memref<32x32xbf16, #tpu.memory_space<vmem>>, vector<32x32xbf16>,
    %c0_9 = arith.constant 0 : index
    %c0_10 = arith.constant 0 : index
    %11 = vector.load %arg5[%c0_9, %c0_10] : memref<1x32xf32, #tpu.memory_space<vmem>>, vector<1x32xf32>
    %c0_11 = arith.constant 0 : index
    %c0_12 = arith.constant 0 : index
    %12 = vector.load %arg6[%c0_11, %c0_12] : memref<1x32xf32, #tpu.memory_space<vmem>>, vector<1x32xf32>
    %cst_13 = arith.constant dense<0.000000e+00> : vector<32xf32>
    %13 = vector.multi_reduction <add>, %8, %cst_13 [1] : vector<32x32xf32> to vector<32xf32>
    %14 = vector.shape_cast %13 : vector<32xf32> to vector<32x1xf32>
    %cst_14 = arith.constant 3.200000e+01 : f32
    %15 = vector.broadcast %cst_14 : f32 to vector<32x1xf32>
    %16 = arith.divf %14, %15 : vector<32x1xf32>
    %17 = vector.broadcast %16 : vector<32x1xf32> to vector<32x32xf32>
    %18 = arith.subf %8, %17 : vector<32x32xf32>
    %19 = arith.mulf %18, %18 : vector<32x32xf32>
    %cst_15 = arith.constant dense<0.000000e+00> : vector<32xf32>
    %20 = vector.multi_reduction <add>, %19, %cst_15 [1] : vector<32x32xf32> to vector<32xf32>
    %21 = vector.shape_cast %20 : vector<32xf32> to vector<32x1xf32>
    %cst_16 = arith.constant 3.200000e+01 : f32
    %22 = vector.broadcast %cst_16 : f32 to vector<32x1xf32>
    %23 = arith.divf %21, %22 : vector<32x1xf32>
    %24 = vector.broadcast %16 : vector<32x1xf32> to vector<32x32xf32>
    %25 = arith.subf %8, %24 : vector<32x32xf32>
    %cst_17 = arith.constant 9.99999974E-6 : f32
    %26 = vector.broadcast %cst_17 : f32 to vector<32x1xf32>
    %27 = arith.addf %23, %26 : vector<32x1xf32>
    %28 = math.rsqrt %27 : vector<32x1xf32>
    %29 = vector.broadcast %28 : vector<32x1xf32> to vector<32x32xf32>
    %30 = arith.mulf %25, %29 : vector<32x32xf32>
    %31 = vector.broadcast %11 : vector<1x32xf32> to vector<32x32xf32>
    %32 = arith.mulf %30, %31 : vector<32x32xf32>
    %33 = vector.broadcast %12 : vector<1x32xf32> to vector<32x32xf32>
    %34 = arith.addf %32, %33 : vector<32x32xf32>
    %35 = arith.truncf %34 : vector<32x32xf32> to vector<32x32xbf16>
    %c0_18 = arith.constant 0 : index
    %c0_19 = arith.constant 0 : index
    %36 = vector.load %arg7[%c0_18, %c0_19] : memref<32x128xbf16, #tpu.memory_space<vmem>>, vector<32x128xbf16>
    %cst_20 = arith.constant dense<0.000000e+00> : vector<32x128xf32>
    %37 = tpu.matmul %35, %36, %cst_20 {dimension_numbers = #tpu.dot_dimension_numbers<[1], [0], [0], [1], [0, 0, 1, 1], [], []>} : vector<32x32xbf16>, vector<32x128xbf16>, vector<32x128xf32> -> vector<32x128xf32>
    %c0_21 = arith.constant 0 : index
    %c0_22 = arith.constant 0 : index
    %38 = vector.load %arg8[%c0_21, %c0_22] : memref<1x128xf32, #tpu.memory_space<vmem>>, vector<1x128xf32>
    %39 = vector.broadcast %38 : vector<1x128xf32> to vector<32x128xf32>
    %40 = arith.addf %37, %39 : vector<32x128xf32>
    %41 = arith.truncf %40 : vector<32x128xf32> to vector<32x128xbf16>
    %c0_23 = arith.constant 0 : index
    %c0_24 = arith.constant 0 : index
    %42 = vector.load %arg10[%c0_23, %c0_24] : memref<32x128xbf16, #tpu.memory_space<vmem>>, vector<32x128xbf16>
    tpu.vector_store %arg10[%c0_23, %c0_24], %41 {strides = array<i32>} : memref<32x128xbf16, #tpu.memory_space<vmem>>, vector<32x128xbf16>,
    return
  }
  func.func @transform_0(%arg0: i32) -> (i32, i32) {
    %c0_i32 = arith.constant 0 : i32
    %c0_i32_0 = arith.constant 0 : i32
    return %arg0, %c0_i32 : i32, i32
  }
  func.func @transform_1(%arg0: i32) -> (i32, i32) {
    %c0_i32 = arith.constant 0 : i32
    %c0_i32_0 = arith.constant 0 : i32
    %c0_i32_1 = arith.constant 0 : i32
    return %c0_i32, %c0_i32_0 : i32, i32
  }
  func.func @transform_2(%arg0: i32) -> (i32, i32) {
    %c0_i32 = arith.constant 0 : i32
    %c0_i32_0 = arith.constant 0 : i32
    %c0_i32_1 = arith.constant 0 : i32
    return %c0_i32, %c0_i32_0 : i32, i32
  }
  func.func @transform_3(%arg0: i32) -> (i32, i32) {
    %c0_i32 = arith.constant 0 : i32
    %c0_i32_0 = arith.constant 0 : i32
    return %arg0, %c0_i32 : i32, i32
  }
  func.func @transform_4(%arg0: i32) -> (i32, i32) {
    %c0_i32 = arith.constant 0 : i32
    %c0_i32_0 = arith.constant 0 : i32
    %c0_i32_1 = arith.constant 0 : i32
    return %c0_i32, %c0_i32_0 : i32, i32
  }
  func.func @transform_5(%arg0: i32) -> (i32, i32) {
    %c0_i32 = arith.constant 0 : i32
    %c0_i32_0 = arith.constant 0 : i32
    %c0_i32_1 = arith.constant 0 : i32
    return %c0_i32, %c0_i32_0 : i32, i32
  }
  func.func @transform_6(%arg0: i32) -> (i32, i32) {
    %c0_i32 = arith.constant 0 : i32
    %c0_i32_0 = arith.constant 0 : i32
    %c0_i32_1 = arith.constant 0 : i32
    return %c0_i32, %c0_i32_0 : i32, i32
  }
  func.func @transform_7(%arg0: i32) -> (i32, i32) {
    %c0_i32 = arith.constant 0 : i32
    %c0_i32_0 = arith.constant 0 : i32
    %c0_i32_1 = arith.constant 0 : i32
    return %c0_i32, %c0_i32_0 : i32, i32
  }
  func.func @transform_8(%arg0: i32) -> (i32, i32) {
    %c0_i32 = arith.constant 0 : i32
    %c0_i32_0 = arith.constant 0 : i32
    return %arg0, %c0_i32 : i32, i32
  }
  func.func @transform_9(%arg0: i32) -> (i32, i32) {
    %c0_i32 = arith.constant 0 : i32
    %c0_i32_0 = arith.constant 0 : i32
    return %arg0, %c0_i32 : i32, i32
  }
}

module attributes {stable_mosaic.version = 11 : i64} {
  func.func @_sr_kv_kernel(%arg0: i32, %arg1: memref<8x128xbf16, #tpu.memory_space<vmem>>, %arg2: memref<128x32xbf16, #tpu.memory_space<vmem>>, %arg3: memref<1x32xf32, #tpu.memory_space<vmem>>, %arg4: memref<1x32xf32, #tpu.memory_space<vmem>>, %arg5: memref<1x32xf32, #tpu.memory_space<vmem>>, %arg6: memref<32x64xbf16, #tpu.memory_space<vmem>>, %arg7: memref<1x64xf32, #tpu.memory_space<vmem>>, %arg8: memref<8x64xbf16, #tpu.memory_space<vmem>>) attributes {dimension_semantics = [#tpu.dimension_semantics<parallel>], iteration_bounds = array<i64: 1>, scalar_prefetch = 0 : i64, scratch_operands = 0 : i64, tpu.core_type = #tpu.core_type<tc>, window_params = [{transform_indices = @transform_0, window_bounds = array<i64: 8, 128>}, {pipeline_mode = #tpu.pipeline_mode<synchronous>, transform_indices = @transform_1, window_bounds = array<i64: 128, 32>}, {pipeline_mode = #tpu.pipeline_mode<synchronous>, transform_indices = @transform_2, window_bounds = array<i64: 1, 32>}, {pipeline_mode = #tpu.pipeline_mode<synchronous>, transform_indices = @transform_3, window_bounds = array<i64: 1, 32>}, {pipeline_mode = #tpu.pipeline_mode<synchronous>, transform_indices = @transform_4, window_bounds = array<i64: 1, 32>}, {pipeline_mode = #tpu.pipeline_mode<synchronous>, transform_indices = @transform_5, window_bounds = array<i64: 32, 64>}, {pipeline_mode = #tpu.pipeline_mode<synchronous>, transform_indices = @transform_6, window_bounds = array<i64: 1, 64>}, {transform_indices = @transform_7, window_bounds = array<i64: 8, 64>}]} {
    %c0 = arith.constant 0 : index
    %c0_0 = arith.constant 0 : index
    %0 = vector.load %arg1[%c0, %c0_0] : memref<8x128xbf16, #tpu.memory_space<vmem>>, vector<8x128xbf16>
    %c0_1 = arith.constant 0 : index
    %c0_2 = arith.constant 0 : index
    %1 = vector.load %arg2[%c0_1, %c0_2] : memref<128x32xbf16, #tpu.memory_space<vmem>>, vector<128x32xbf16>
    %cst = arith.constant dense<0.000000e+00> : vector<8x32xf32>
    %2 = tpu.matmul %0, %1, %cst {dimension_numbers = #tpu.dot_dimension_numbers<[1], [0], [0], [1], [0, 0, 1, 1], [], []>} : vector<8x128xbf16>, vector<128x32xbf16>, vector<8x32xf32> -> vector<8x32xf32>
    %c0_3 = arith.constant 0 : index
    %c0_4 = arith.constant 0 : index
    %3 = vector.load %arg3[%c0_3, %c0_4] : memref<1x32xf32, #tpu.memory_space<vmem>>, vector<1x32xf32>
    %4 = vector.broadcast %3 : vector<1x32xf32> to vector<8x32xf32>
    %5 = arith.addf %2, %4 : vector<8x32xf32>
    %c0_5 = arith.constant 0 : index
    %c0_6 = arith.constant 0 : index
    %6 = vector.load %arg4[%c0_5, %c0_6] : memref<1x32xf32, #tpu.memory_space<vmem>>, vector<1x32xf32>
    %c0_7 = arith.constant 0 : index
    %c0_8 = arith.constant 0 : index
    %7 = vector.load %arg5[%c0_7, %c0_8] : memref<1x32xf32, #tpu.memory_space<vmem>>, vector<1x32xf32>
    %cst_9 = arith.constant dense<0.000000e+00> : vector<8xf32>
    %8 = vector.multi_reduction <add>, %5, %cst_9 [1] : vector<8x32xf32> to vector<8xf32>
    %9 = vector.shape_cast %8 : vector<8xf32> to vector<8x1xf32>
    %cst_10 = arith.constant 3.200000e+01 : f32
    %10 = vector.broadcast %cst_10 : f32 to vector<8x1xf32>
    %11 = arith.divf %9, %10 : vector<8x1xf32>
    %12 = vector.broadcast %11 : vector<8x1xf32> to vector<8x32xf32>
    %13 = arith.subf %5, %12 : vector<8x32xf32>
    %14 = arith.mulf %13, %13 : vector<8x32xf32>
    %cst_11 = arith.constant dense<0.000000e+00> : vector<8xf32>
    %15 = vector.multi_reduction <add>, %14, %cst_11 [1] : vector<8x32xf32> to vector<8xf32>
    %16 = vector.shape_cast %15 : vector<8xf32> to vector<8x1xf32>
    %cst_12 = arith.constant 3.200000e+01 : f32
    %17 = vector.broadcast %cst_12 : f32 to vector<8x1xf32>
    %18 = arith.divf %16, %17 : vector<8x1xf32>
    %19 = vector.broadcast %11 : vector<8x1xf32> to vector<8x32xf32>
    %20 = arith.subf %5, %19 : vector<8x32xf32>
    %cst_13 = arith.constant 9.99999974E-6 : f32
    %21 = vector.broadcast %cst_13 : f32 to vector<8x1xf32>
    %22 = arith.addf %18, %21 : vector<8x1xf32>
    %23 = math.rsqrt %22 : vector<8x1xf32>
    %24 = vector.broadcast %23 : vector<8x1xf32> to vector<8x32xf32>
    %25 = arith.mulf %20, %24 : vector<8x32xf32>
    %26 = vector.broadcast %6 : vector<1x32xf32> to vector<8x32xf32>
    %27 = arith.mulf %25, %26 : vector<8x32xf32>
    %28 = vector.broadcast %7 : vector<1x32xf32> to vector<8x32xf32>
    %29 = arith.addf %27, %28 : vector<8x32xf32>
    %30 = arith.truncf %29 : vector<8x32xf32> to vector<8x32xbf16>
    %c0_14 = arith.constant 0 : index
    %c0_15 = arith.constant 0 : index
    %31 = vector.load %arg6[%c0_14, %c0_15] : memref<32x64xbf16, #tpu.memory_space<vmem>>, vector<32x64xbf16>
    %cst_16 = arith.constant dense<0.000000e+00> : vector<8x64xf32>
    %32 = tpu.matmul %30, %31, %cst_16 {dimension_numbers = #tpu.dot_dimension_numbers<[1], [0], [0], [1], [0, 0, 1, 1], [], []>} : vector<8x32xbf16>, vector<32x64xbf16>, vector<8x64xf32> -> vector<8x64xf32>
    %c0_17 = arith.constant 0 : index
    %c0_18 = arith.constant 0 : index
    %33 = vector.load %arg7[%c0_17, %c0_18] : memref<1x64xf32, #tpu.memory_space<vmem>>, vector<1x64xf32>
    %34 = vector.broadcast %33 : vector<1x64xf32> to vector<8x64xf32>
    %35 = arith.addf %32, %34 : vector<8x64xf32>
    %36 = arith.truncf %35 : vector<8x64xf32> to vector<8x64xbf16>
    %c0_19 = arith.constant 0 : index
    %c0_20 = arith.constant 0 : index
    %37 = vector.load %arg8[%c0_19, %c0_20] : memref<8x64xbf16, #tpu.memory_space<vmem>>, vector<8x64xbf16>
    tpu.vector_store %arg8[%c0_19, %c0_20], %36 {strides = array<i32>} : memref<8x64xbf16, #tpu.memory_space<vmem>>, vector<8x64xbf16>,
    return
  }
  func.func @transform_0(%arg0: i32) -> (i32, i32) {
    %c0_i32 = arith.constant 0 : i32
    %c0_i32_0 = arith.constant 0 : i32
    return %arg0, %c0_i32 : i32, i32
  }
  func.func @transform_1(%arg0: i32) -> (i32, i32) {
    %c0_i32 = arith.constant 0 : i32
    %c0_i32_0 = arith.constant 0 : i32
    %c0_i32_1 = arith.constant 0 : i32
    return %c0_i32, %c0_i32_0 : i32, i32
  }
  func.func @transform_2(%arg0: i32) -> (i32, i32) {
    %c0_i32 = arith.constant 0 : i32
    %c0_i32_0 = arith.constant 0 : i32
    %c0_i32_1 = arith.constant 0 : i32
    return %c0_i32, %c0_i32_0 : i32, i32
  }
  func.func @transform_3(%arg0: i32) -> (i32, i32) {
    %c0_i32 = arith.constant 0 : i32
    %c0_i32_0 = arith.constant 0 : i32
    %c0_i32_1 = arith.constant 0 : i32
    return %c0_i32, %c0_i32_0 : i32, i32
  }
  func.func @transform_4(%arg0: i32) -> (i32, i32) {
    %c0_i32 = arith.constant 0 : i32
    %c0_i32_0 = arith.constant 0 : i32
    %c0_i32_1 = arith.constant 0 : i32
    return %c0_i32, %c0_i32_0 : i32, i32
  }
  func.func @transform_5(%arg0: i32) -> (i32, i32) {
    %c0_i32 = arith.constant 0 : i32
    %c0_i32_0 = arith.constant 0 : i32
    %c0_i32_1 = arith.constant 0 : i32
    return %c0_i32, %c0_i32_0 : i32, i32
  }
  func.func @transform_6(%arg0: i32) -> (i32, i32) {
    %c0_i32 = arith.constant 0 : i32
    %c0_i32_0 = arith.constant 0 : i32
    %c0_i32_1 = arith.constant 0 : i32
    return %c0_i32, %c0_i32_0 : i32, i32
  }
  func.func @transform_7(%arg0: i32) -> (i32, i32) {
    %c0_i32 = arith.constant 0 : i32
    %c0_i32_0 = arith.constant 0 : i32
    return %arg0, %c0_i32 : i32, i32
  }
}

module attributes {stable_mosaic.version = 11 : i64} {
  func.func @_dwconv3x3_gelu_kernel(%arg0: i32, %arg1: i32, %arg2: memref<1x6x6x128xbf16, #tpu.memory_space<vmem>>, %arg3: memref<9x128xf32, #tpu.memory_space<vmem>>, %arg4: memref<1x128xf32, #tpu.memory_space<vmem>>, %arg5: memref<1x4x4x128xbf16, #tpu.memory_space<vmem>>) attributes {dimension_semantics = [#tpu.dimension_semantics<parallel>, #tpu.dimension_semantics<parallel>], iteration_bounds = array<i64: 2, 1>, scalar_prefetch = 0 : i64, scratch_operands = 0 : i64, tpu.core_type = #tpu.core_type<tc>, window_params = [{transform_indices = @transform_0, window_bounds = array<i64: 1, 6, 6, 128>}, {transform_indices = @transform_1, window_bounds = array<i64: 9, 128>}, {transform_indices = @transform_2, window_bounds = array<i64: 1, 128>}, {transform_indices = @transform_3, window_bounds = array<i64: 1, 4, 4, 128>}]} {
    %cst = arith.constant 0.000000e+00 : f32
    %0 = vector.broadcast %cst : f32 to vector<4x4x128xf32>
    %c0 = arith.constant 0 : index
    %c0_0 = arith.constant 0 : index
    %c0_1 = arith.constant 0 : index
    %c0_2 = arith.constant 0 : index
    %1 = vector.load %arg2[%c0, %c0_0, %c0_1, %c0_2] : memref<1x6x6x128xbf16, #tpu.memory_space<vmem>>, vector<1x4x4x128xbf16>
    %2 = vector.shape_cast %1 : vector<1x4x4x128xbf16> to vector<4x4x128xbf16>
    %3 = arith.extf %2 : vector<4x4x128xbf16> to vector<4x4x128xf32>
    %c0_3 = arith.constant 0 : index
    %c0_4 = arith.constant 0 : index
    %4 = vector.load %arg3[%c0_3, %c0_4] : memref<9x128xf32, #tpu.memory_space<vmem>>, vector<1x128xf32>
    %5 = vector.shape_cast %4 : vector<1x128xf32> to vector<128xf32>
    %6 = vector.shape_cast %5 : vector<128xf32> to vector<1x1x128xf32>
    %7 = vector.broadcast %6 : vector<1x1x128xf32> to vector<4x4x128xf32>
    %8 = arith.mulf %3, %7 : vector<4x4x128xf32>
    %9 = arith.addf %0, %8 : vector<4x4x128xf32>
    %c0_5 = arith.constant 0 : index
    %c0_6 = arith.constant 0 : index
    %c1 = arith.constant 1 : index
    %c0_7 = arith.constant 0 : index
    %10 = vector.load %arg2[%c0_5, %c0_6, %c1, %c0_7] : memref<1x6x6x128xbf16, #tpu.memory_space<vmem>>, vector<1x4x4x128xbf16>
    %11 = vector.shape_cast %10 : vector<1x4x4x128xbf16> to vector<4x4x128xbf16>
    %12 = arith.extf %11 : vector<4x4x128xbf16> to vector<4x4x128xf32>
    %c1_8 = arith.constant 1 : index
    %c0_9 = arith.constant 0 : index
    %13 = vector.load %arg3[%c1_8, %c0_9] : memref<9x128xf32, #tpu.memory_space<vmem>>, vector<1x128xf32>
    %14 = vector.shape_cast %13 : vector<1x128xf32> to vector<128xf32>
    %15 = vector.shape_cast %14 : vector<128xf32> to vector<1x1x128xf32>
    %16 = vector.broadcast %15 : vector<1x1x128xf32> to vector<4x4x128xf32>
    %17 = arith.mulf %12, %16 : vector<4x4x128xf32>
    %18 = arith.addf %9, %17 : vector<4x4x128xf32>
    %c0_10 = arith.constant 0 : index
    %c0_11 = arith.constant 0 : index
    %c2 = arith.constant 2 : index
    %c0_12 = arith.constant 0 : index
    %19 = vector.load %arg2[%c0_10, %c0_11, %c2, %c0_12] : memref<1x6x6x128xbf16, #tpu.memory_space<vmem>>, vector<1x4x4x128xbf16>
    %20 = vector.shape_cast %19 : vector<1x4x4x128xbf16> to vector<4x4x128xbf16>
    %21 = arith.extf %20 : vector<4x4x128xbf16> to vector<4x4x128xf32>
    %c2_13 = arith.constant 2 : index
    %c0_14 = arith.constant 0 : index
    %22 = vector.load %arg3[%c2_13, %c0_14] : memref<9x128xf32, #tpu.memory_space<vmem>>, vector<1x128xf32>
    %23 = vector.shape_cast %22 : vector<1x128xf32> to vector<128xf32>
    %24 = vector.shape_cast %23 : vector<128xf32> to vector<1x1x128xf32>
    %25 = vector.broadcast %24 : vector<1x1x128xf32> to vector<4x4x128xf32>
    %26 = arith.mulf %21, %25 : vector<4x4x128xf32>
    %27 = arith.addf %18, %26 : vector<4x4x128xf32>
    %c0_15 = arith.constant 0 : index
    %c1_16 = arith.constant 1 : index
    %c0_17 = arith.constant 0 : index
    %c0_18 = arith.constant 0 : index
    %28 = vector.load %arg2[%c0_15, %c1_16, %c0_17, %c0_18] : memref<1x6x6x128xbf16, #tpu.memory_space<vmem>>, vector<1x4x4x128xbf16>
    %29 = vector.shape_cast %28 : vector<1x4x4x128xbf16> to vector<4x4x128xbf16>
    %30 = arith.extf %29 : vector<4x4x128xbf16> to vector<4x4x128xf32>
    %c3 = arith.constant 3 : index
    %c0_19 = arith.constant 0 : index
    %31 = vector.load %arg3[%c3, %c0_19] : memref<9x128xf32, #tpu.memory_space<vmem>>, vector<1x128xf32>
    %32 = vector.shape_cast %31 : vector<1x128xf32> to vector<128xf32>
    %33 = vector.shape_cast %32 : vector<128xf32> to vector<1x1x128xf32>
    %34 = vector.broadcast %33 : vector<1x1x128xf32> to vector<4x4x128xf32>
    %35 = arith.mulf %30, %34 : vector<4x4x128xf32>
    %36 = arith.addf %27, %35 : vector<4x4x128xf32>
    %c0_20 = arith.constant 0 : index
    %c1_21 = arith.constant 1 : index
    %c1_22 = arith.constant 1 : index
    %c0_23 = arith.constant 0 : index
    %37 = vector.load %arg2[%c0_20, %c1_21, %c1_22, %c0_23] : memref<1x6x6x128xbf16, #tpu.memory_space<vmem>>, vector<1x4x4x128xbf16>
    %38 = vector.shape_cast %37 : vector<1x4x4x128xbf16> to vector<4x4x128xbf16>
    %39 = arith.extf %38 : vector<4x4x128xbf16> to vector<4x4x128xf32>
    %c4 = arith.constant 4 : index
    %c0_24 = arith.constant 0 : index
    %40 = vector.load %arg3[%c4, %c0_24] : memref<9x128xf32, #tpu.memory_space<vmem>>, vector<1x128xf32>
    %41 = vector.shape_cast %40 : vector<1x128xf32> to vector<128xf32>
    %42 = vector.shape_cast %41 : vector<128xf32> to vector<1x1x128xf32>
    %43 = vector.broadcast %42 : vector<1x1x128xf32> to vector<4x4x128xf32>
    %44 = arith.mulf %39, %43 : vector<4x4x128xf32>
    %45 = arith.addf %36, %44 : vector<4x4x128xf32>
    %c0_25 = arith.constant 0 : index
    %c1_26 = arith.constant 1 : index
    %c2_27 = arith.constant 2 : index
    %c0_28 = arith.constant 0 : index
    %46 = vector.load %arg2[%c0_25, %c1_26, %c2_27, %c0_28] : memref<1x6x6x128xbf16, #tpu.memory_space<vmem>>, vector<1x4x4x128xbf16>
    %47 = vector.shape_cast %46 : vector<1x4x4x128xbf16> to vector<4x4x128xbf16>
    %48 = arith.extf %47 : vector<4x4x128xbf16> to vector<4x4x128xf32>
    %c5 = arith.constant 5 : index
    %c0_29 = arith.constant 0 : index
    %49 = vector.load %arg3[%c5, %c0_29] : memref<9x128xf32, #tpu.memory_space<vmem>>, vector<1x128xf32>
    %50 = vector.shape_cast %49 : vector<1x128xf32> to vector<128xf32>
    %51 = vector.shape_cast %50 : vector<128xf32> to vector<1x1x128xf32>
    %52 = vector.broadcast %51 : vector<1x1x128xf32> to vector<4x4x128xf32>
    %53 = arith.mulf %48, %52 : vector<4x4x128xf32>
    %54 = arith.addf %45, %53 : vector<4x4x128xf32>
    %c0_30 = arith.constant 0 : index
    %c2_31 = arith.constant 2 : index
    %c0_32 = arith.constant 0 : index
    %c0_33 = arith.constant 0 : index
    %55 = vector.load %arg2[%c0_30, %c2_31, %c0_32, %c0_33] : memref<1x6x6x128xbf16, #tpu.memory_space<vmem>>, vector<1x4x4x128xbf16>
    %56 = vector.shape_cast %55 : vector<1x4x4x128xbf16> to vector<4x4x128xbf16>
    %57 = arith.extf %56 : vector<4x4x128xbf16> to vector<4x4x128xf32>
    %c6 = arith.constant 6 : index
    %c0_34 = arith.constant 0 : index
    %58 = vector.load %arg3[%c6, %c0_34] : memref<9x128xf32, #tpu.memory_space<vmem>>, vector<1x128xf32>
    %59 = vector.shape_cast %58 : vector<1x128xf32> to vector<128xf32>
    %60 = vector.shape_cast %59 : vector<128xf32> to vector<1x1x128xf32>
    %61 = vector.broadcast %60 : vector<1x1x128xf32> to vector<4x4x128xf32>
    %62 = arith.mulf %57, %61 : vector<4x4x128xf32>
    %63 = arith.addf %54, %62 : vector<4x4x128xf32>
    %c0_35 = arith.constant 0 : index
    %c2_36 = arith.constant 2 : index
    %c1_37 = arith.constant 1 : index
    %c0_38 = arith.constant 0 : index
    %64 = vector.load %arg2[%c0_35, %c2_36, %c1_37, %c0_38] : memref<1x6x6x128xbf16, #tpu.memory_space<vmem>>, vector<1x4x4x128xbf16>
    %65 = vector.shape_cast %64 : vector<1x4x4x128xbf16> to vector<4x4x128xbf16>
    %66 = arith.extf %65 : vector<4x4x128xbf16> to vector<4x4x128xf32>
    %c7 = arith.constant 7 : index
    %c0_39 = arith.constant 0 : index
    %67 = vector.load %arg3[%c7, %c0_39] : memref<9x128xf32, #tpu.memory_space<vmem>>, vector<1x128xf32>
    %68 = vector.shape_cast %67 : vector<1x128xf32> to vector<128xf32>
    %69 = vector.shape_cast %68 : vector<128xf32> to vector<1x1x128xf32>
    %70 = vector.broadcast %69 : vector<1x1x128xf32> to vector<4x4x128xf32>
    %71 = arith.mulf %66, %70 : vector<4x4x128xf32>
    %72 = arith.addf %63, %71 : vector<4x4x128xf32>
    %c0_40 = arith.constant 0 : index
    %c2_41 = arith.constant 2 : index
    %c2_42 = arith.constant 2 : index
    %c0_43 = arith.constant 0 : index
    %73 = vector.load %arg2[%c0_40, %c2_41, %c2_42, %c0_43] : memref<1x6x6x128xbf16, #tpu.memory_space<vmem>>, vector<1x4x4x128xbf16>
    %74 = vector.shape_cast %73 : vector<1x4x4x128xbf16> to vector<4x4x128xbf16>
    %75 = arith.extf %74 : vector<4x4x128xbf16> to vector<4x4x128xf32>
    %c8 = arith.constant 8 : index
    %c0_44 = arith.constant 0 : index
    %76 = vector.load %arg3[%c8, %c0_44] : memref<9x128xf32, #tpu.memory_space<vmem>>, vector<1x128xf32>
    %77 = vector.shape_cast %76 : vector<1x128xf32> to vector<128xf32>
    %78 = vector.shape_cast %77 : vector<128xf32> to vector<1x1x128xf32>
    %79 = vector.broadcast %78 : vector<1x1x128xf32> to vector<4x4x128xf32>
    %80 = arith.mulf %75, %79 : vector<4x4x128xf32>
    %81 = arith.addf %72, %80 : vector<4x4x128xf32>
    %c0_45 = arith.constant 0 : index
    %c0_46 = arith.constant 0 : index
    %82 = vector.load %arg4[%c0_45, %c0_46] : memref<1x128xf32, #tpu.memory_space<vmem>>, vector<1x128xf32>
    %83 = vector.shape_cast %82 : vector<1x128xf32> to vector<1x1x128xf32>
    %84 = vector.broadcast %83 : vector<1x1x128xf32> to vector<4x4x128xf32>
    %85 = arith.addf %81, %84 : vector<4x4x128xf32>
    %cst_47 = arith.constant 5.000000e-01 : f32
    %86 = vector.broadcast %cst_47 : f32 to vector<4x4x128xf32>
    %87 = arith.mulf %86, %85 : vector<4x4x128xf32>
    %cst_48 = arith.constant 0.707106769 : f32
    %88 = vector.broadcast %cst_48 : f32 to vector<4x4x128xf32>
    %89 = arith.mulf %85, %88 : vector<4x4x128xf32>
    %90 = math.erf %89 : vector<4x4x128xf32>
    %cst_49 = arith.constant 1.000000e+00 : f32
    %91 = vector.broadcast %cst_49 : f32 to vector<4x4x128xf32>
    %92 = arith.addf %91, %90 : vector<4x4x128xf32>
    %93 = arith.mulf %87, %92 : vector<4x4x128xf32>
    %94 = arith.truncf %93 : vector<4x4x128xf32> to vector<4x4x128xbf16>
    %c0_50 = arith.constant 0 : index
    %c0_51 = arith.constant 0 : index
    %c0_52 = arith.constant 0 : index
    %c0_53 = arith.constant 0 : index
    %95 = vector.load %arg5[%c0_50, %c0_51, %c0_52, %c0_53] : memref<1x4x4x128xbf16, #tpu.memory_space<vmem>>, vector<1x4x4x128xbf16>
    %96 = vector.shape_cast %95 : vector<1x4x4x128xbf16> to vector<4x4x128xbf16>
    %97 = vector.shape_cast %94 : vector<4x4x128xbf16> to vector<1x4x4x128xbf16>
    tpu.vector_store %arg5[%c0_50, %c0_51, %c0_52, %c0_53], %97 {strides = array<i32>} : memref<1x4x4x128xbf16, #tpu.memory_space<vmem>>, vector<1x4x4x128xbf16>,
    return
  }
  func.func @transform_0(%arg0: i32, %arg1: i32) -> (i32, i32, i32, i32) {
    %c0_i32 = arith.constant 0 : i32
    %c0_i32_0 = arith.constant 0 : i32
    %c0_i32_1 = arith.constant 0 : i32
    return %arg0, %c0_i32, %c0_i32_0, %arg1 : i32, i32, i32, i32
  }
  func.func @transform_1(%arg0: i32, %arg1: i32) -> (i32, i32) {
    %c0_i32 = arith.constant 0 : i32
    %c0_i32_0 = arith.constant 0 : i32
    return %c0_i32, %arg1 : i32, i32
  }
  func.func @transform_2(%arg0: i32, %arg1: i32) -> (i32, i32) {
    %c0_i32 = arith.constant 0 : i32
    %c0_i32_0 = arith.constant 0 : i32
    return %c0_i32, %arg1 : i32, i32
  }
  func.func @transform_3(%arg0: i32, %arg1: i32) -> (i32, i32, i32, i32) {
    %c0_i32 = arith.constant 0 : i32
    %c0_i32_0 = arith.constant 0 : i32
    %c0_i32_1 = arith.constant 0 : i32
    return %arg0, %c0_i32, %c0_i32_0, %arg1 : i32, i32, i32, i32
  }
}

module attributes {stable_mosaic.version = 11 : i64} {
  func.func @_linear_res_ln_kernel(%arg0: i32, %arg1: memref<32x128xbf16, #tpu.memory_space<vmem>>, %arg2: memref<128x32xbf16, #tpu.memory_space<vmem>>, %arg3: memref<1x32xf32, #tpu.memory_space<vmem>>, %arg4: memref<32x32xbf16, #tpu.memory_space<vmem>>, %arg5: memref<1x32xf32, #tpu.memory_space<vmem>>, %arg6: memref<1x32xf32, #tpu.memory_space<vmem>>, %arg7: memref<32x32xbf16, #tpu.memory_space<vmem>>) attributes {dimension_semantics = [#tpu.dimension_semantics<parallel>], iteration_bounds = array<i64: 1>, scalar_prefetch = 0 : i64, scratch_operands = 0 : i64, tpu.core_type = #tpu.core_type<tc>, window_params = [{transform_indices = @transform_0, window_bounds = array<i64: 32, 128>}, {pipeline_mode = #tpu.pipeline_mode<synchronous>, transform_indices = @transform_1, window_bounds = array<i64: 128, 32>}, {pipeline_mode = #tpu.pipeline_mode<synchronous>, transform_indices = @transform_2, window_bounds = array<i64: 1, 32>}, {transform_indices = @transform_3, window_bounds = array<i64: 32, 32>}, {pipeline_mode = #tpu.pipeline_mode<synchronous>, transform_indices = @transform_4, window_bounds = array<i64: 1, 32>}, {pipeline_mode = #tpu.pipeline_mode<synchronous>, transform_indices = @transform_5, window_bounds = array<i64: 1, 32>}, {transform_indices = @transform_6, window_bounds = array<i64: 32, 32>}]} {
    %c0 = arith.constant 0 : index
    %c0_0 = arith.constant 0 : index
    %0 = vector.load %arg1[%c0, %c0_0] : memref<32x128xbf16, #tpu.memory_space<vmem>>, vector<32x128xbf16>
    %c0_1 = arith.constant 0 : index
    %c0_2 = arith.constant 0 : index
    %1 = vector.load %arg2[%c0_1, %c0_2] : memref<128x32xbf16, #tpu.memory_space<vmem>>, vector<128x32xbf16>
    %cst = arith.constant dense<0.000000e+00> : vector<32x32xf32>
    %2 = tpu.matmul %0, %1, %cst {dimension_numbers = #tpu.dot_dimension_numbers<[1], [0], [0], [1], [0, 0, 1, 1], [], []>} : vector<32x128xbf16>, vector<128x32xbf16>, vector<32x32xf32> -> vector<32x32xf32>
    %c0_3 = arith.constant 0 : index
    %c0_4 = arith.constant 0 : index
    %3 = vector.load %arg3[%c0_3, %c0_4] : memref<1x32xf32, #tpu.memory_space<vmem>>, vector<1x32xf32>
    %4 = vector.broadcast %3 : vector<1x32xf32> to vector<32x32xf32>
    %5 = arith.addf %2, %4 : vector<32x32xf32>
    %c0_5 = arith.constant 0 : index
    %c0_6 = arith.constant 0 : index
    %6 = vector.load %arg4[%c0_5, %c0_6] : memref<32x32xbf16, #tpu.memory_space<vmem>>, vector<32x32xbf16>
    %7 = arith.extf %6 : vector<32x32xbf16> to vector<32x32xf32>
    %8 = arith.addf %5, %7 : vector<32x32xf32>
    %c0_7 = arith.constant 0 : index
    %c0_8 = arith.constant 0 : index
    %9 = vector.load %arg5[%c0_7, %c0_8] : memref<1x32xf32, #tpu.memory_space<vmem>>, vector<1x32xf32>
    %c0_9 = arith.constant 0 : index
    %c0_10 = arith.constant 0 : index
    %10 = vector.load %arg6[%c0_9, %c0_10] : memref<1x32xf32, #tpu.memory_space<vmem>>, vector<1x32xf32>
    %cst_11 = arith.constant dense<0.000000e+00> : vector<32xf32>
    %11 = vector.multi_reduction <add>, %8, %cst_11 [1] : vector<32x32xf32> to vector<32xf32>
    %12 = vector.shape_cast %11 : vector<32xf32> to vector<32x1xf32>
    %cst_12 = arith.constant 3.200000e+01 : f32
    %13 = vector.broadcast %cst_12 : f32 to vector<32x1xf32>
    %14 = arith.divf %12, %13 : vector<32x1xf32>
    %15 = vector.broadcast %14 : vector<32x1xf32> to vector<32x32xf32>
    %16 = arith.subf %8, %15 : vector<32x32xf32>
    %17 = arith.mulf %16, %16 : vector<32x32xf32>
    %cst_13 = arith.constant dense<0.000000e+00> : vector<32xf32>
    %18 = vector.multi_reduction <add>, %17, %cst_13 [1] : vector<32x32xf32> to vector<32xf32>
    %19 = vector.shape_cast %18 : vector<32xf32> to vector<32x1xf32>
    %cst_14 = arith.constant 3.200000e+01 : f32
    %20 = vector.broadcast %cst_14 : f32 to vector<32x1xf32>
    %21 = arith.divf %19, %20 : vector<32x1xf32>
    %22 = vector.broadcast %14 : vector<32x1xf32> to vector<32x32xf32>
    %23 = arith.subf %8, %22 : vector<32x32xf32>
    %cst_15 = arith.constant 9.99999974E-6 : f32
    %24 = vector.broadcast %cst_15 : f32 to vector<32x1xf32>
    %25 = arith.addf %21, %24 : vector<32x1xf32>
    %26 = math.rsqrt %25 : vector<32x1xf32>
    %27 = vector.broadcast %26 : vector<32x1xf32> to vector<32x32xf32>
    %28 = arith.mulf %23, %27 : vector<32x32xf32>
    %29 = vector.broadcast %9 : vector<1x32xf32> to vector<32x32xf32>
    %30 = arith.mulf %28, %29 : vector<32x32xf32>
    %31 = vector.broadcast %10 : vector<1x32xf32> to vector<32x32xf32>
    %32 = arith.addf %30, %31 : vector<32x32xf32>
    %33 = arith.truncf %32 : vector<32x32xf32> to vector<32x32xbf16>
    %c0_16 = arith.constant 0 : index
    %c0_17 = arith.constant 0 : index
    %34 = vector.load %arg7[%c0_16, %c0_17] : memref<32x32xbf16, #tpu.memory_space<vmem>>, vector<32x32xbf16>
    tpu.vector_store %arg7[%c0_16, %c0_17], %33 {strides = array<i32>} : memref<32x32xbf16, #tpu.memory_space<vmem>>, vector<32x32xbf16>,
    return
  }
  func.func @transform_0(%arg0: i32) -> (i32, i32) {
    %c0_i32 = arith.constant 0 : i32
    %c0_i32_0 = arith.constant 0 : i32
    return %arg0, %c0_i32 : i32, i32
  }
  func.func @transform_1(%arg0: i32) -> (i32, i32) {
    %c0_i32 = arith.constant 0 : i32
    %c0_i32_0 = arith.constant 0 : i32
    %c0_i32_1 = arith.constant 0 : i32
    return %c0_i32, %c0_i32_0 : i32, i32
  }
  func.func @transform_2(%arg0: i32) -> (i32, i32) {
    %c0_i32 = arith.constant 0 : i32
    %c0_i32_0 = arith.constant 0 : i32
    %c0_i32_1 = arith.constant 0 : i32
    return %c0_i32, %c0_i32_0 : i32, i32
  }
  func.func @transform_3(%arg0: i32) -> (i32, i32) {
    %c0_i32 = arith.constant 0 : i32
    %c0_i32_0 = arith.constant 0 : i32
    return %arg0, %c0_i32 : i32, i32
  }
  func.func @transform_4(%arg0: i32) -> (i32, i32) {
    %c0_i32 = arith.constant 0 : i32
    %c0_i32_0 = arith.constant 0 : i32
    %c0_i32_1 = arith.constant 0 : i32
    return %c0_i32, %c0_i32_0 : i32, i32
  }
  func.func @transform_5(%arg0: i32) -> (i32, i32) {
    %c0_i32 = arith.constant 0 : i32
    %c0_i32_0 = arith.constant 0 : i32
    %c0_i32_1 = arith.constant 0 : i32
    return %c0_i32, %c0_i32_0 : i32, i32
  }
  func.func @transform_6(%arg0: i32) -> (i32, i32) {
    %c0_i32 = arith.constant 0 : i32
    %c0_i32_0 = arith.constant 0 : i32
    return %arg0, %c0_i32 : i32, i32
  }
}

</mosaic_0001>

<llo_original>
// kernel: segformer_stage1_forward.7
$region0: #{segformer_stage1_forward.7}
  #allocation0 [shape = 'u32[]', space=smem, size = 0x4, offset = 0x4, fixed_abs, tag = 'smem constant byte address 0x4 - core index']
  #allocation1 [shape = 'u32[144,128]{1,0:T(1,128)}', space=vmem, size = 0x12000, scoped, tag = 'internal scratch']
  %s0 = inlined_call_operand.vmem [shape: bf16[32,196], index: 0, kind: input, shape index: {}]
  %s1 = inlined_call_operand.vmem [shape: bf16[196,32], index: 1, kind: input, shape index: {}]
  %s2 = inlined_call_operand.vmem [shape: f32[1,32], index: 2, kind: input, shape index: {}]
  %s3 = inlined_call_operand.vmem [shape: f32[1,32], index: 3, kind: input, shape index: {}]
  %s4 = inlined_call_operand.vmem [shape: f32[1,32], index: 4, kind: input, shape index: {}]
  %s5 = inlined_call_operand.vmem [shape: bf16[32,32], index: 5, kind: output, shape index: {}]
  %s6 = sld [smem:[#allocation0]]
  $region30: #{segformer_stage1_forward.7} parent=0
    _
  %s8 = ssub.s32 1, %s6
  %s9 = scalar_select 0, %s8, %s6
  // Predicated region
  $region2: #{segformer_stage1_forward.7} parent=0 // pred_check
    _
  $region3: #{segformer_stage1_forward.7} parent=0 // pred_check_branch
    %11 = sbr.rel (0) target = $region5
  $region4: #{segformer_stage1_forward.7} parent=0 // pred_region
    _
  $region5: #{segformer_stage1_forward.7} parent=0 // pred_fallthru
    _
  // Predicated region
  $region6: #{segformer_stage1_forward.7} parent=0 // pred_check
    _
  $region7: #{segformer_stage1_forward.7} parent=0 // pred_check_branch
    %13 = sbr.rel (0) target = $region9
  $region8: #{segformer_stage1_forward.7} parent=0 // pred_region
    _
  $region9: #{segformer_stage1_forward.7} parent=0 // pred_fallthru
    _
  // Predicated region
  $region10: #{segformer_stage1_forward.7} parent=0 // pred_check
    _
  $region11: #{segformer_stage1_forward.7} parent=0 // pred_check_branch
    %15 = sbr.rel (0) target = $region13
  $region12: #{segformer_stage1_forward.7} parent=0 // pred_region
    _
  $region13: #{segformer_stage1_forward.7} parent=0 // pred_fallthru
    _
  // Predicated region
  $region14: #{segformer_stage1_forward.7} parent=0 // pred_check
    _
  $region15: #{segformer_stage1_forward.7} parent=0 // pred_check_branch
    %17 = sbr.rel (0) target = $region17
  $region16: #{segformer_stage1_forward.7} parent=0 // pred_region
    _
  $region17: #{segformer_stage1_forward.7} parent=0 // pred_fallthru
    _
  // Predicated region
  $region18: #{segformer_stage1_forward.7} parent=0 // pred_check
    _
  $region19: #{segformer_stage1_forward.7} parent=0 // pred_check_branch
    %19 = sbr.rel (0) target = $region21
  $region20: #{segformer_stage1_forward.7} parent=0 // pred_region
    _
  $region21: #{segformer_stage1_forward.7} parent=0 // pred_fallthru
    _
  %v21 = vld [vmem:[%s0] sm:$0xff]
  %v22 = vld [vmem:[%s0 + $0x8] sm:$0xff]
  %v23 = vld [vmem:[%s0 + $0x10] sm:$0xff]
  %v24 = vld [vmem:[%s0 + $0x18] sm:$0xff]
  %v25 = vld [vmem:[%s1] sm:$0xf]
  %v26 = vld [vmem:[%s1 + $0x4] sm:$0xf]
  %v27 = vld [vmem:[%s1 + $0x8] sm:$0xf]
  %v28 = vld [vmem:[%s1 + $0xc] sm:$0xf]
  %v29 = vld [vmem:[%s1 + $0x10] sm:$0xf]
  %v30 = vld [vmem:[%s1 + $0x14] sm:$0xf]
  %v31 = vld [vmem:[%s1 + $0x18] sm:$0xf]
  %v32 = vld [vmem:[%s1 + $0x1c] sm:$0xf]
  %v33 = vld [vmem:[%s1 + $0x20] sm:$0xf]
  %v34 = vld [vmem:[%s1 + $0x24] sm:$0xf]
  %v35 = vld [vmem:[%s1 + $0x28] sm:$0xf]
  %v36 = vld [vmem:[%s1 + $0x2c] sm:$0xf]
  %v37 = vld [vmem:[%s1 + $0x30] sm:$0xf]
  %v38 = vld [vmem:[%s1 + $0x34] sm:$0xf]
  %v39 = vld [vmem:[%s1 + $0x38] sm:$0xf]
  %v40 = vld [vmem:[%s1 + $0x3c] sm:$0xf]
  %v41 = vld [vmem:[%s1 + $0x40] sm:$0xf]
  %v42 = vld [vmem:[%s1 + $0x44] sm:$0xf]
  %v43 = vld [vmem:[%s1 + $0x48] sm:$0xf]
  %v44 = vld [vmem:[%s1 + $0x4c] sm:$0xf]
  %v45 = vld [vmem:[%s1 + $0x50] sm:$0xf]
  %v46 = vld [vmem:[%s1 + $0x54] sm:$0xf]
  %v47 = vld [vmem:[%s1 + $0x58] sm:$0xf]
  %v48 = vld [vmem:[%s1 + $0x5c] sm:$0xf]
  %v49 = vld [vmem:[%s1 + $0x60] sm:$0x3]
  %v50 = vld [vmem:[%s2] sm:$0x1]
  %v52 = vlaneseq
  %v53 = vshrl.u32 %v52, 7
  %v54 = vsub.s32 0, %v53
  %v55 = vrot.slane %v50, %v54
  %v61 = vunpack.c.l.b16 %v21
  %v62 = vunpack.c.h.b16 %v21
  %v63 = vunpack.c.l.b16 %v22
  %v64 = vunpack.c.h.b16 %v22
  %v65 = vunpack.c.l.b16 %v23
  %v66 = vunpack.c.h.b16 %v23
  %v67 = vunpack.c.l.b16 %v24
  %v68 = vunpack.c.h.b16 %v24
  %v69 = vpack.c.b16 %v63, %v61
  %v70 = vpack.c.b16 %v64, %v62
  %v71 = vpack.c.b16 %v67, %v65
  %v72 = vpack.c.b16 %v68, %v66
  %v100 = vunpack.c.l.b16 %v25
  %v101 = vunpack.c.l.b16 %v26
  %v102 = vunpack.c.l.b16 %v27
  %v103 = vunpack.c.l.b16 %v28
  %v104 = vunpack.c.l.b16 %v29
  %v105 = vunpack.c.l.b16 %v30
  %v106 = vunpack.c.l.b16 %v31
  %v107 = vunpack.c.l.b16 %v32
  %v108 = vunpack.c.l.b16 %v33
  %v109 = vunpack.c.l.b16 %v34
  %v110 = vunpack.c.l.b16 %v35
  %v111 = vunpack.c.l.b16 %v36
  %v112 = vunpack.c.l.b16 %v37
  %v113 = vunpack.c.l.b16 %v38
  %v114 = vunpack.c.l.b16 %v39
  %v115 = vunpack.c.l.b16 %v40
  %v116 = vunpack.c.l.b16 %v41
  %v117 = vunpack.c.l.b16 %v42
  %v118 = vunpack.c.l.b16 %v43
  %v119 = vunpack.c.l.b16 %v44
  %v120 = vunpack.c.l.b16 %v45
  %v121 = vunpack.c.l.b16 %v46
  %v122 = vunpack.c.l.b16 %v47
  %v123 = vunpack.c.l.b16 %v48
  %v124 = vunpack.c.l.b16 %v49
  %v125 = vpack.c.b16 %v101, %v100
  %v126 = vpack.c.b16 %v103, %v102
  %v127 = vpack.c.b16 %v105, %v104
  %v128 = vpack.c.b16 %v107, %v106
  %v129 = vpack.c.b16 %v109, %v108
  %v130 = vpack.c.b16 %v111, %v110
  %v131 = vpack.c.b16 %v113, %v112
  %v132 = vpack.c.b16 %v115, %v114
  %v133 = vpack.c.b16 %v117, %v116
  %v134 = vpack.c.b16 %v119, %v118
  %v135 = vpack.c.b16 %v121, %v120
  %v136 = vpack.c.b16 %v123, %v122
  %v137 = vpack.c.b16 %v124, %v124
  %vm150 = vcmask 556032
  %v152 = vsel %vm150, %v70, 0
  %v155 = vsel %vm150, %v72, 0
  %vm157 = vcmask 1041408
  %v159 = vsel %vm157, %v137, 0
  %161 = vmatprep.subr.bf16.mxu0 0
  %162 = vmatpush1.bf16.msra.mxu0 %v132
  %163 = vmatprep.subr.bf16.mxu0 0
  %164 = vmatpush1.bf16.msra.mxu0 %v131
  %165 = vmatprep.subr.bf16.mxu0 0
  %166 = vmatpush1.bf16.msra.mxu0 %v130
  %167 = vmatprep.subr.bf16.mxu0 0
  %168 = vmatpush1.bf16.msra.mxu0 %v129
  %169 = vmatprep.subr.bf16.mxu0 0
  %170 = vmatpush1.bf16.msra.mxu0 %v128
  %171 = vmatprep.subr.bf16.mxu0 0
  %172 = vmatpush1.bf16.msra.mxu0 %v127
  %173 = vmatprep.subr.bf16.mxu0 0
  %174 = vmatpush1.bf16.msra.mxu0 %v126
  %175 = vmatprep.subr.bf16.mxu0 0
  %176 = vmatpush1.bf16.msra.mxu0 %v125
  %177 = vmatprep.subr.bf16.mxu0 0
  %178 = vmatpush2.bf16.msra.mxu0 0
  %179 = vmatprep.subr.bf16.mxu0 0
  %180 = vmatpush2.bf16.msra.mxu0 0
  %181 = vmatprep.subr.bf16.mxu0 0
  %182 = vmatpush2.bf16.msra.mxu0 0
  %183 = vmatprep.subr.bf16.mxu0 0
  %184 = vmatpush2.bf16.msra.mxu0 %v159
  %185 = vmatprep.subr.bf16.mxu0 0
  %186 = vmatpush2.bf16.msra.mxu0 %v136
  %187 = vmatprep.subr.bf16.mxu0 0
  %188 = vmatpush2.bf16.msra.mxu0 %v135
  %189 = vmatprep.subr.bf16.mxu0 0
  %190 = vmatpush2.bf16.msra.mxu0 %v134
  %191 = vmatprep.subr.bf16.mxu0 0
  %192 = vmatpush2.bf16.msra.mxu0 %v133
  %193 = vmatprep.mubr.bf16.mxu0 %v152
  %194 = vmatmul.mubr.bf16.gmra.mxu0 %v69
  %v195 = vpop.f32.mrf.mxu0
  %v196 = vadd.f32 %v55, %v195
  %v197 = vpop.f32.mrf.mxu0
  %v198 = vpop.f32.mrf.mxu0
  %v199 = vadd.f32 %v55, %v198
  %v200 = vpop.f32.mrf.mxu0
  %201 = vmatprep.mubr.bf16.mxu0 %v155
  %202 = vmatmul.mubr.bf16.gmra.mxu0 %v71
  %v203 = vpop.f32.mrf.mxu0
  %v204 = vadd.f32 %v55, %v203
  %v205 = vpop.f32.mrf.mxu0
  %v206 = vpop.f32.mrf.mxu0
  %v207 = vadd.f32 %v55, %v206
  %v208 = vpop.f32.mrf.mxu0
  %209 = vdwg.mxu0
  %v210 = vld [vmem:[%s3] sm:$0x1]
  %v211 = vld [vmem:[%s4] sm:$0x1]
  %vm212 = vcmask 261120
  %v213 = vsel %vm212, %v196, 0.0
  %214 = vadd.xlane.f32.xlu0 %v213
  %v215 = vpop.xlane.xlu0 %214
  %v216 = vsel %vm212, %v199, 0.0
  %217 = vadd.xlane.f32.xlu0 %v216
  %v218 = vpop.xlane.xlu0 %217
  %v219 = vsel %vm212, %v204, 0.0
  %220 = vadd.xlane.f32.xlu0 %v219
  %v221 = vpop.xlane.xlu0 %220
  %v222 = vsel %vm212, %v207, 0.0
  %223 = vadd.xlane.f32.xlu0 %v222
  %v224 = vpop.xlane.xlu0 %223
  %v225 = vrcp.pop 32.0
  %v226 = vmul.f32 %v215, %v225
  %v227 = vmul.f32 %v218, %v225
  %v228 = vmul.f32 %v221, %v225
  %v229 = vmul.f32 %v224, %v225
  %v230 = vsub.f32 %v196, %v226
  %v231 = vsub.f32 %v199, %v227
  %v232 = vsub.f32 %v204, %v228
  %v233 = vsub.f32 %v207, %v229
  %v234 = vmul.f32 %v230, %v230
  %v235 = vmul.f32 %v231, %v231
  %v236 = vmul.f32 %v232, %v232
  %v237 = vmul.f32 %v233, %v233
  %v238 = vsel %vm212, %v234, 0.0
  %239 = vadd.xlane.f32.xlu0 %v238
  %v240 = vpop.xlane.xlu0 %239
  %v241 = vsel %vm212, %v235, 0.0
  %242 = vadd.xlane.f32.xlu0 %v241
  %v243 = vpop.xlane.xlu0 %242
  %v244 = vsel %vm212, %v236, 0.0
  %245 = vadd.xlane.f32.xlu0 %v244
  %v246 = vpop.xlane.xlu0 %245
  %v247 = vsel %vm212, %v237, 0.0
  %248 = vadd.xlane.f32.xlu0 %v247
  %v249 = vpop.xlane.xlu0 %248
  %v250 = vmul.f32 %v240, %v225
  %v251 = vmul.f32 %v243, %v225
  %v252 = vmul.f32 %v246, %v225
  %v253 = vmul.f32 %v249, %v225
  %v254 = vadd.f32 %v250, 1e-05
  %v255 = vadd.f32 %v251, 1e-05
  %v256 = vadd.f32 %v252, 1e-05
  %v257 = vadd.f32 %v253, 1e-05
  %v258 = vrsqrt.pop %v254
  %v259 = vrsqrt.pop %v255
  %v260 = vrsqrt.pop %v256
  %v261 = vrsqrt.pop %v257
  %v262 = vmul.f32 %v230, %v258
  %v263 = vmul.f32 %v231, %v259
  %v264 = vmul.f32 %v232, %v260
  %v265 = vmul.f32 %v233, %v261
  %v267 = vlaneseq
  %v268 = vshrl.u32 %v267, 7
  %v269 = vsub.s32 0, %v268
  %v270 = vrot.slane %v210, %v269
  %v272 = vmul.f32 %v262, %v270
  %v273 = vmul.f32 %v263, %v270
  %v274 = vmul.f32 %v264, %v270
  %v275 = vmul.f32 %v265, %v270
  %v277 = vlaneseq
  %v278 = vshrl.u32 %v277, 7
  %v279 = vsub.s32 0, %v278
  %v280 = vrot.slane %v211, %v279
  %v282 = vadd.f32 %v272, %v280
  %v283 = vadd.f32 %v273, %v280
  %v284 = vadd.f32 %v274, %v280
  %v285 = vadd.f32 %v275, %v280
  %v286 = vpack.c.bf16 %v283, %v282
  %v287 = vpack.c.bf16 %v285, %v284
  %v290 = vunpack.c.l.b16 %v286
  %v291 = vunpack.c.h.b16 %v286
  %v292 = vunpack.c.l.b16 %v287
  %v293 = vunpack.c.h.b16 %v287
  %v294 = vpack.c.b16 %v290, %v290
  %v295 = vpack.c.b16 %v291, %v291
  %v296 = vpack.c.b16 %v292, %v292
  %v297 = vpack.c.b16 %v293, %v293
  %vm302 = vcmask 257024
  %303 = vst.msk [vmem:[%s5] sm:$0xf] %vm302, %v294
  %304 = vst.msk [vmem:[%s5 + $0x4] sm:$0xf] %vm302, %v295
  %305 = vst.msk [vmem:[%s5 + $0x8] sm:$0xf] %vm302, %v296
  %306 = vst.msk [vmem:[%s5 + $0xc] sm:$0xf] %vm302, %v297
  // Predicated region
  $region22: #{segformer_stage1_forward.7} parent=0 // pred_check
    _
  $region23: #{segformer_stage1_forward.7} parent=0 // pred_check_branch
    %308 = sbr.rel (0) target = $region25
  $region24: #{segformer_stage1_forward.7} parent=0 // pred_region
    _
  $region25: #{segformer_stage1_forward.7} parent=0 // pred_fallthru
    _
  // Predicated region
  $region26: #{segformer_stage1_forward.7} parent=0 // pred_check
    _
  $region27: #{segformer_stage1_forward.7} parent=0 // pred_check_branch
    %310 = sbr.rel (0) target = $region29
  $region28: #{segformer_stage1_forward.7} parent=0 // pred_region
    _
  $region29: #{segformer_stage1_forward.7} parent=0 // pred_fallthru
    _

// kernel: segformer_stage1_forward.8
$region0: #{segformer_stage1_forward.8}
  #allocation0 [shape = 'u32[]', space=smem, size = 0x4, offset = 0x4, fixed_abs, tag = 'smem constant byte address 0x4 - core index']
  #allocation1 [shape = 'u32[144,128]{1,0:T(1,128)}', space=vmem, size = 0x12000, scoped, tag = 'internal scratch']
  %s0 = inlined_call_operand.vmem [shape: bf16[32,32], index: 0, kind: input, shape index: {}]
  %s1 = inlined_call_operand.vmem [shape: bf16[32,32], index: 1, kind: input, shape index: {}]
  %s2 = inlined_call_operand.vmem [shape: f32[1,32], index: 2, kind: input, shape index: {}]
  %s3 = inlined_call_operand.vmem [shape: f32[1,32], index: 3, kind: input, shape index: {}]
  %s4 = inlined_call_operand.vmem [shape: f32[1,32], index: 4, kind: input, shape index: {}]
  %s5 = inlined_call_operand.vmem [shape: bf16[32,32], index: 5, kind: output, shape index: {0}]
  %s6 = inlined_call_operand.vmem [shape: bf16[32,32], index: 6, kind: output, shape index: {1}]
  %7 = xla_tuple %s5, %s6
  %s8 = sld [smem:[#allocation0]]
  $region38: #{segformer_stage1_forward.8} parent=0
    _
  %s10 = ssub.s32 1, %s8
  %s11 = scalar_select 0, %s10, %s8
  // Predicated region
  $region2: #{segformer_stage1_forward.8} parent=0 // pred_check
    _
  $region3: #{segformer_stage1_forward.8} parent=0 // pred_check_branch
    %13 = sbr.rel (0) target = $region5
  $region4: #{segformer_stage1_forward.8} parent=0 // pred_region
    _
  $region5: #{segformer_stage1_forward.8} parent=0 // pred_fallthru
    _
  // Predicated region
  $region6: #{segformer_stage1_forward.8} parent=0 // pred_check
    _
  $region7: #{segformer_stage1_forward.8} parent=0 // pred_check_branch
    %15 = sbr.rel (0) target = $region9
  $region8: #{segformer_stage1_forward.8} parent=0 // pred_region
    _
  $region9: #{segformer_stage1_forward.8} parent=0 // pred_fallthru
    _
  // Predicated region
  $region10: #{segformer_stage1_forward.8} parent=0 // pred_check
    _
  $region11: #{segformer_stage1_forward.8} parent=0 // pred_check_branch
    %17 = sbr.rel (0) target = $region13
  $region12: #{segformer_stage1_forward.8} parent=0 // pred_region
    _
  $region13: #{segformer_stage1_forward.8} parent=0 // pred_fallthru
    _
  // Predicated region
  $region14: #{segformer_stage1_forward.8} parent=0 // pred_check
    _
  $region15: #{segformer_stage1_forward.8} parent=0 // pred_check_branch
    %19 = sbr.rel (0) target = $region17
  $region16: #{segformer_stage1_forward.8} parent=0 // pred_region
    _
  $region17: #{segformer_stage1_forward.8} parent=0 // pred_fallthru
    _
  // Predicated region
  $region18: #{segformer_stage1_forward.8} parent=0 // pred_check
    _
  $region19: #{segformer_stage1_forward.8} parent=0 // pred_check_branch
    %21 = sbr.rel (0) target = $region21
  $region20: #{segformer_stage1_forward.8} parent=0 // pred_region
    _
  $region21: #{segformer_stage1_forward.8} parent=0 // pred_fallthru
    _
  %v23 = vld [vmem:[%s0] sm:$0xf]
  %v24 = vld [vmem:[%s0 + $0x4] sm:$0xf]
  %v25 = vld [vmem:[%s0 + $0x8] sm:$0xf]
  %v26 = vld [vmem:[%s0 + $0xc] sm:$0xf]
  %v27 = vunpack.c.l.bf16 %v23
  %v28 = vunpack.c.l.bf16 %v24
  %v29 = vunpack.c.l.bf16 %v25
  %v30 = vunpack.c.l.bf16 %v26
  %v31 = vld [vmem:[%s3] sm:$0x1]
  %v32 = vld [vmem:[%s4] sm:$0x1]
  %vm33 = vcmask 261120
  %v34 = vsel %vm33, %v27, 0.0
  %35 = vadd.xlane.f32.xlu0 %v34
  %v36 = vpop.xlane.xlu0 %35
  %v37 = vsel %vm33, %v28, 0.0
  %38 = vadd.xlane.f32.xlu0 %v37
  %v39 = vpop.xlane.xlu0 %38
  %v40 = vsel %vm33, %v29, 0.0
  %41 = vadd.xlane.f32.xlu0 %v40
  %v42 = vpop.xlane.xlu0 %41
  %v43 = vsel %vm33, %v30, 0.0
  %44 = vadd.xlane.f32.xlu0 %v43
  %v45 = vpop.xlane.xlu0 %44
  %v46 = vrcp.pop 32.0
  %v47 = vmul.f32 %v36, %v46
  %v48 = vmul.f32 %v39, %v46
  %v49 = vmul.f32 %v42, %v46
  %v50 = vmul.f32 %v45, %v46
  %v51 = vsub.f32 %v27, %v47
  %v52 = vsub.f32 %v28, %v48
  %v53 = vsub.f32 %v29, %v49
  %v54 = vsub.f32 %v30, %v50
  %v55 = vmul.f32 %v51, %v51
  %v56 = vmul.f32 %v52, %v52
  %v57 = vmul.f32 %v53, %v53
  %v58 = vmul.f32 %v54, %v54
  %v59 = vsel %vm33, %v55, 0.0
  %60 = vadd.xlane.f32.xlu0 %v59
  %v61 = vpop.xlane.xlu0 %60
  %v62 = vsel %vm33, %v56, 0.0
  %63 = vadd.xlane.f32.xlu0 %v62
  %v64 = vpop.xlane.xlu0 %63
  %v65 = vsel %vm33, %v57, 0.0
  %66 = vadd.xlane.f32.xlu0 %v65
  %v67 = vpop.xlane.xlu0 %66
  %v68 = vsel %vm33, %v58, 0.0
  %69 = vadd.xlane.f32.xlu0 %v68
  %v70 = vpop.xlane.xlu0 %69
  %v71 = vmul.f32 %v61, %v46
  %v72 = vmul.f32 %v64, %v46
  %v73 = vmul.f32 %v67, %v46
  %v74 = vmul.f32 %v70, %v46
  %v75 = vadd.f32 %v71, 1e-05
  %v76 = vadd.f32 %v72, 1e-05
  %v77 = vadd.f32 %v73, 1e-05
  %v78 = vadd.f32 %v74, 1e-05
  %v79 = vrsqrt.pop %v75
  %v80 = vrsqrt.pop %v76
  %v81 = vrsqrt.pop %v77
  %v82 = vrsqrt.pop %v78
  %v83 = vmul.f32 %v51, %v79
  %v84 = vmul.f32 %v52, %v80
  %v85 = vmul.f32 %v53, %v81
  %v86 = vmul.f32 %v54, %v82
  %v88 = vlaneseq
  %v89 = vshrl.u32 %v88, 7
  %v90 = vsub.s32 0, %v89
  %v91 = vrot.slane %v31, %v90
  %v93 = vmul.f32 %v83, %v91
  %v94 = vmul.f32 %v84, %v91
  %v95 = vmul.f32 %v85, %v91
  %v96 = vmul.f32 %v86, %v91
  %v98 = vlaneseq
  %v99 = vshrl.u32 %v98, 7
  %v100 = vsub.s32 0, %v99
  %v101 = vrot.slane %v32, %v100
  %v103 = vadd.f32 %v93, %v101
  %v104 = vadd.f32 %v94, %v101
  %v105 = vadd.f32 %v95, %v101
  %v106 = vadd.f32 %v96, %v101
  %v107 = vpack.c.bf16 %v104, %v103
  %v108 = vpack.c.bf16 %v106, %v105
  %v111 = vunpack.c.l.b16 %v107
  %v112 = vunpack.c.h.b16 %v107
  %v113 = vunpack.c.l.b16 %v108
  %v114 = vunpack.c.h.b16 %v108
  %v115 = vpack.c.b16 %v111, %v111
  %v116 = vpack.c.b16 %v112, %v112
  %v117 = vpack.c.b16 %v113, %v113
  %v118 = vpack.c.b16 %v114, %v114
  %vm123 = vcmask 257024
  %124 = vst.msk [vmem:[%s5] sm:$0xf] %vm123, %v115
  %125 = vst.msk [vmem:[%s5 + $0x4] sm:$0xf] %vm123, %v116
  %126 = vst.msk [vmem:[%s5 + $0x8] sm:$0xf] %vm123, %v117
  %127 = vst.msk [vmem:[%s5 + $0xc] sm:$0xf] %vm123, %v118
  %v128 = vld [vmem:[%s1] sm:$0xf]
  %v129 = vld [vmem:[%s1 + $0x4] sm:$0xf]
  %v130 = vld [vmem:[%s1 + $0x8] sm:$0xf]
  %v131 = vld [vmem:[%s1 + $0xc] sm:$0xf]
  %v132 = vld [vmem:[%s2] sm:$0x1]
  %v134 = vlaneseq
  %v135 = vshrl.u32 %v134, 7
  %v136 = vsub.s32 0, %v135
  %v137 = vrot.slane %v132, %v136
  %v143 = vunpack.c.l.b16 %v128
  %v144 = vunpack.c.l.b16 %v129
  %v145 = vunpack.c.l.b16 %v130
  %v146 = vunpack.c.l.b16 %v131
  %v147 = vpack.c.b16 %v144, %v143
  %v148 = vpack.c.b16 %v146, %v145
  %v152 = vsel %vm33, %v107, 0
  %v155 = vsel %vm33, %v108, 0
  %157 = vmatprep.subr.bf16.mxu0 0
  %158 = vmatpush1.bf16.msra.mxu0 0
  %159 = vmatprep.subr.bf16.mxu0 0
  %160 = vmatpush1.bf16.msra.mxu0 0
  %161 = vmatprep.subr.bf16.mxu0 0
  %162 = vmatpush1.bf16.msra.mxu0 0
  %163 = vmatprep.subr.bf16.mxu0 0
  %164 = vmatpush1.bf16.msra.mxu0 0
  %165 = vmatprep.subr.bf16.mxu0 0
  %166 = vmatpush1.bf16.msra.mxu0 0
  %167 = vmatprep.subr.bf16.mxu0 0
  %168 = vmatpush1.bf16.msra.mxu0 0
  %169 = vmatprep.subr.bf16.mxu0 0
  %170 = vmatpush1.bf16.msra.mxu0 %v148
  %171 = vmatprep.subr.bf16.mxu0 0
  %172 = vmatpush1.bf16.msra.mxu0 %v147
  %173 = vmatprep.subr.bf16.mxu0 0
  %174 = vmatpush2.bf16.msra.mxu0 0
  %175 = vmatprep.subr.bf16.mxu0 0
  %176 = vmatpush2.bf16.msra.mxu0 0
  %177 = vmatprep.subr.bf16.mxu0 0
  %178 = vmatpush2.bf16.msra.mxu0 0
  %179 = vmatprep.subr.bf16.mxu0 0
  %180 = vmatpush2.bf16.msra.mxu0 0
  %181 = vmatprep.subr.bf16.mxu0 0
  %182 = vmatpush2.bf16.msra.mxu0 0
  %183 = vmatprep.subr.bf16.mxu0 0
  %184 = vmatpush2.bf16.msra.mxu0 0
  %185 = vmatprep.subr.bf16.mxu0 0
  %186 = vmatpush2.bf16.msra.mxu0 0
  %187 = vmatprep.subr.bf16.mxu0 0
  %188 = vmatpush2.bf16.msra.mxu0 0
  %189 = vmatprep.mubr.bf16.mxu0 0
  %190 = vmatmul.mubr.bf16.gmra.mxu0 %v152
  %v191 = vpop.f32.mrf.mxu0
  %v192 = vadd.f32 %v137, %v191
  %v193 = vpop.f32.mrf.mxu0
  %v194 = vpop.f32.mrf.mxu0
  %v195 = vadd.f32 %v137, %v194
  %v196 = vpop.f32.mrf.mxu0
  %197 = vmatprep.mubr.bf16.mxu0 0
  %198 = vmatmul.mubr.bf16.gmra.mxu0 %v155
  %v199 = vpop.f32.mrf.mxu0
  %v200 = vadd.f32 %v137, %v199
  %v201 = vpop.f32.mrf.mxu0
  %v202 = vpop.f32.mrf.mxu0
  %v203 = vadd.f32 %v137, %v202
  %v204 = vpop.f32.mrf.mxu0
  %205 = vdwg.mxu0
  %v206 = vmul.f32 %v192, 0.25
  %v207 = vmul.f32 %v195, 0.25
  %v208 = vmul.f32 %v200, 0.25
  %v209 = vmul.f32 %v203, 0.25
  %v210 = vpack.c.bf16 %v207, %v206
  %v211 = vpack.c.bf16 %v209, %v208
  %v214 = vunpack.c.l.b16 %v210
  %v215 = vunpack.c.h.b16 %v210
  %v216 = vunpack.c.l.b16 %v211
  %v217 = vunpack.c.h.b16 %v211
  %v218 = vpack.c.b16 %v214, %v214
  %v219 = vpack.c.b16 %v215, %v215
  %v220 = vpack.c.b16 %v216, %v216
  %v221 = vpack.c.b16 %v217, %v217
  %226 = vst.msk [vmem:[%s6] sm:$0xf] %vm123, %v218
  %227 = vst.msk [vmem:[%s6 + $0x4] sm:$0xf] %vm123, %v219
  %228 = vst.msk [vmem:[%s6 + $0x8] sm:$0xf] %vm123, %v220
  %229 = vst.msk [vmem:[%s6 + $0xc] sm:$0xf] %vm123, %v221
  // Predicated region
  $region22: #{segformer_stage1_forward.8} parent=0 // pred_check
    _
  $region23: #{segformer_stage1_forward.8} parent=0 // pred_check_branch
    %231 = sbr.rel (0) target = $region25
  $region24: #{segformer_stage1_forward.8} parent=0 // pred_region
    _
  $region25: #{segformer_stage1_forward.8} parent=0 // pred_fallthru
    _
  // Predicated region
  $region26: #{segformer_stage1_forward.8} parent=0 // pred_check
    _
  $region27: #{segformer_stage1_forward.8} parent=0 // pred_check_branch
    %233 = sbr.rel (0) target = $region29
  $region28: #{segformer_stage1_forward.8} parent=0 // pred_region
    _
  $region29: #{segformer_stage1_forward.8} parent=0 // pred_fallthru
    _
  // Predicated region
  $region30: #{segformer_stage1_forward.8} parent=0 // pred_check
    _
  $region31: #{segformer_stage1_forward.8} parent=0 // pred_check_branch
    %235 = sbr.rel (0) target = $region33
  $region32: #{segformer_stage1_forward.8} parent=0 // pred_region
    _
  $region33: #{segformer_stage1_forward.8} parent=0 // pred_fallthru
    _
  // Predicated region
  $region34: #{segformer_stage1_forward.8} parent=0 // pred_check
    _
  $region35: #{segformer_stage1_forward.8} parent=0 // pred_check_branch
    %237 = sbr.rel (0) target = $region37
  $region36: #{segformer_stage1_forward.8} parent=0 // pred_region
    _
  $region37: #{segformer_stage1_forward.8} parent=0 // pred_fallthru
    _

// kernel: segformer_stage1_forward.10
$region0: #{segformer_stage1_forward.10}
  #allocation0 [shape = 'u32[]', space=smem, size = 0x4, offset = 0x4, fixed_abs, tag = 'smem constant byte address 0x4 - core index']
  #allocation1 [shape = 'u32[144,128]{1,0:T(1,128)}', space=vmem, size = 0x12000, scoped, tag = 'internal scratch']
  %s0 = inlined_call_operand.vmem [shape: bf16[2,16,32], index: 0, kind: input, shape index: {}]
  %s1 = inlined_call_operand.vmem [shape: bf16[2,4,64], index: 1, kind: input, shape index: {}]
  %s2 = inlined_call_operand.vmem [shape: bf16[2,16,32], index: 2, kind: output, shape index: {}]
  %s3 = sld [smem:[#allocation0]]
  $region41: #{segformer_stage1_forward.10} parent=0
    _
  %s5 = ssub.s32 1, %s3
  %s6 = scalar_select 0, %s5, %s3
  loop: start=0, step=1, limit=4
  $region2: #{segformer_stage1_forward.10} parent=0 // loop_pre_header
    _
  $region3: #{segformer_stage1_forward.10} parent=0 // loop_header
    %s8 = sphi 0, %s12
    %p9 = scmp.ge.s32.totalorder %s8, 4
    %s15 = sphi 0, %s27
    %s16 = sphi 0, %s23
    %s17 = sphi 0, %s15
    %s18 = sphi 0, %s16
    %s19 = sphi 0, %s17
    %s20 = sphi 0, %s18
    %s32 = sphi 0, %s34
    %s35 = sphi 0, %s32
    %s36 = sphi 0, %s35
    %s52 = sphi 0, %s36
    %s58 = sphi 0, %s60
    %s61 = sphi 0, %s58
    %s62 = sphi 0, %s61
    %s78 = sphi 0, %s62
    %s86 = sphi 0, %s88
    %s89 = sphi 0, %s86
    %s90 = sphi 0, %s89
    %s106 = sphi 0, %s90
  $region4: #{segformer_stage1_forward.10} parent=0 // loop_header_branch
    %11 = sbr.rel (%p9) target = $region8
  $region5: #{segformer_stage1_forward.10} parent=0 // loop_body
    %s13 = ssub.s32 %s8, 1
    %s14 = ssub.s32 %s8, 2
    %s21 = sadd.s32 1, %s16
    %p22 = scmp.ge.s32.totalorder %s21, 1
    %s23 = scalar_select %p22, 0, %s21
    %s24 = sadd.s32 1, %s15
    %s25 = scalar_select %p22, %s24, %s15
    %p26 = scmp.ge.s32.totalorder %s25, 2
    %s27 = scalar_select %p26, 0, %s25
    %s28 = ssub.s32 %s15, %s27
    %s29 = ssub.s32 %s16, %s23
    %s30 = sor.u32 %s28, %s29
    %p31 = scmp.eq.s32.totalorder %s30, 0
    %s33 = sadd.s32 %s32, 1
    %s34 = scalar_select %p31, %s32, %s33
    %p37 = pneg %p31
    %p38 = scmp.eq.s32.totalorder %s8, 1
    %p39 = por %p37, %p38
    %p40 = scmp.ne.s32.totalorder %s32, %s35
    %p41 = scmp.eq.s32.totalorder %s8, 0
    %p42 = por %p40, %p41
    %p43 = scmp.ne.s32.totalorder %s32, %s35
    %p44 = scmp.eq.s32.totalorder %s13, 1
    %p45 = por %p43, %p44
    %p46 = scmp.ne.s32.totalorder %s35, %s36
    %p47 = scmp.eq.s32.totalorder %s13, 0
    %p48 = por %p46, %p47
    %p49 = scmp.ne.s32.totalorder %s35, %s36
    %p50 = scmp.eq.s32.totalorder %s14, 1
    %p51 = por %p49, %p50
    %p53 = scmp.ne.s32.totalorder %s36, %s52
    %p54 = scmp.eq.s32.totalorder %s14, 0
    %p55 = por %p53, %p54
    %s56 = ssub.s32 %s15, %s27
    %p57 = scmp.eq.s32.totalorder %s56, 0
    %s59 = sadd.s32 %s58, 1
    %s60 = scalar_select %p57, %s58, %s59
    %p63 = pneg %p57
    %p64 = scmp.eq.s32.totalorder %s8, 1
    %p65 = por %p63, %p64
    %p66 = scmp.ne.s32.totalorder %s58, %s61
    %p67 = scmp.eq.s32.totalorder %s8, 0
    %p68 = por %p66, %p67
    %p69 = scmp.ne.s32.totalorder %s58, %s61
    %p70 = scmp.eq.s32.totalorder %s13, 1
    %p71 = por %p69, %p70
    %p72 = scmp.ne.s32.totalorder %s61, %s62
    %p73 = scmp.eq.s32.totalorder %s13, 0
    %p74 = por %p72, %p73
    %p75 = scmp.ne.s32.totalorder %s61, %s62
    %p76 = scmp.eq.s32.totalorder %s14, 1
    %p77 = por %p75, %p76
    %p79 = scmp.ne.s32.totalorder %s62, %s78
    %p80 = scmp.eq.s32.totalorder %s14, 0
    %p81 = por %p79, %p80
    %s82 = ssub.s32 %s15, %s27
    %s83 = ssub.s32 %s16, %s23
    %s84 = sor.u32 %s82, %s83
    %p85 = scmp.eq.s32.totalorder %s84, 0
    %s87 = sadd.s32 %s86, 1
    %s88 = scalar_select %p85, %s86, %s87
    %p91 = pneg %p85
    %p92 = scmp.eq.s32.totalorder %s8, 1
    %p93 = por %p91, %p92
    %p94 = scmp.ne.s32.totalorder %s86, %s89
    %p95 = scmp.eq.s32.totalorder %s8, 0
    %p96 = por %p94, %p95
    %p97 = scmp.ne.s32.totalorder %s86, %s89
    %p98 = scmp.eq.s32.totalorder %s13, 1
    %p99 = por %p97, %p98
    %p100 = scmp.ne.s32.totalorder %s89, %s90
    %p101 = scmp.eq.s32.totalorder %s13, 0
    %p102 = por %p100, %p101
    %p103 = scmp.ne.s32.totalorder %s89, %s90
    %p104 = scmp.eq.s32.totalorder %s14, 1
    %p105 = por %p103, %p104
    %p107 = scmp.ne.s32.totalorder %s90, %s106
    %p108 = scmp.eq.s32.totalorder %s14, 0
    %p109 = por %p107, %p108
    %p110 = scmp.le.s32.totalorder 1, %s8
    %p111 = scmp.lt.s32.totalorder %s8, 3
    %p112 = pnand %p110, %p111
    %p113 = pneg %p112
    // Predicated region
    $region9: #{segformer_stage1_forward.10} parent=5 // pred_check
      _
    $region10: #{segformer_stage1_forward.10} parent=5 // pred_check_branch
      %115 = sbr.rel (%p112) target = $region12
    $region11: #{segformer_stage1_forward.10} parent=5 // pred_region
      %s116 = ssub.s32 %s8, 1
    $region12: #{segformer_stage1_forward.10} parent=5 // pred_fallthru
      _
    %p117 = scmp.lt.s32.totalorder %s8, 2
    // Predicated region
    $region13: #{segformer_stage1_forward.10} parent=5 // pred_check
      %p118 = pneg %p117
    $region14: #{segformer_stage1_forward.10} parent=5 // pred_check_branch
      %120 = sbr.rel (%p118) target = $region16
    $region15: #{segformer_stage1_forward.10} parent=5 // pred_region
      // Predicated region
      $region17: #{segformer_stage1_forward.10} parent=15 // pred_check
        %p121 = pneg %p42
      $region18: #{segformer_stage1_forward.10} parent=15 // pred_check_branch
        %123 = sbr.rel (%p121) target = $region20
      $region19: #{segformer_stage1_forward.10} parent=15 // pred_region
        %s124 = smul.u32 2, %s16
        %p125 = scmp.lt.s32.totalorder %s15, 1
        %s126 = scalar_select %p125, %s15, 1
        %p127 = scmp.lt.s32.totalorder %s124, 1
        %s128 = scalar_select %p127, %s124, 1
        %s129 = smul.addr %s126, 2
        %s130 = sadd.s32 %s128, %s129
        %s131 = smul.addr %s130, 4
        %s132 = scalar_lea.vmem %s0, %s131
        %s133 = smul.u32 2, %s16
      $region20: #{segformer_stage1_forward.10} parent=15 // pred_fallthru
        _
      // Predicated region
      $region21: #{segformer_stage1_forward.10} parent=15 // pred_check
        %p134 = pneg %p68
      $region22: #{segformer_stage1_forward.10} parent=15 // pred_check_branch
        %136 = sbr.rel (%p134) target = $region24
      $region23: #{segformer_stage1_forward.10} parent=15 // pred_region
        %p137 = scmp.lt.s32.totalorder %s15, 1
        %s138 = scalar_select %p137, %s15, 1
        %s139 = smul.addr %s138, 2
        %s140 = scalar_lea.vmem %s1, %s139
      $region24: #{segformer_stage1_forward.10} parent=15 // pred_fallthru
        _
    $region16: #{segformer_stage1_forward.10} parent=5 // pred_fallthru
      _
    %p141 = scmp.le.s32.totalorder 1, %s8
    %p142 = scmp.lt.s32.totalorder %s8, 3
    %p143 = pnand %p141, %p142
    %p144 = pneg %p143
    // Predicated region
    $region25: #{segformer_stage1_forward.10} parent=5 // pred_check
      _
    $region26: #{segformer_stage1_forward.10} parent=5 // pred_check_branch
      %146 = sbr.rel (%p143) target = $region28
    $region27: #{segformer_stage1_forward.10} parent=5 // pred_region
      %s147 = ssub.s32 %s8, 1
      %s148 = smul.u32 2, %s18
      %p149 = scmp.lt.s32.totalorder %s17, 1
      %s150 = scalar_select %p149, %s17, 1
      %p151 = scmp.lt.s32.totalorder %s148, 1
      %s152 = scalar_select %p151, %s148, 1
      %s153 = smul.addr %s150, 2
      %s154 = sadd.s32 %s152, %s153
      %s155 = smul.addr %s154, 4
      %s156 = scalar_lea.vmem %s0, %s155
      %p157 = pneg %p48
      %p158 = pneg %p45
      %p159 = scmp.lt.s32.totalorder %s17, 1
      %s160 = scalar_select %p159, %s17, 1
      %s161 = smul.addr %s160, 2
      %s162 = scalar_lea.vmem %s1, %s161
      %p163 = pneg %p74
      %p164 = pneg %p71
      %p165 = pneg %p102
      %p166 = pneg %p99
      %s167 = smul.u32 2, %s18
      %p168 = scmp.lt.s32.totalorder %s17, 1
      %s169 = scalar_select %p168, %s17, 1
      %p170 = scmp.lt.s32.totalorder %s167, 1
      %s171 = scalar_select %p170, %s167, 1
      %s172 = smul.addr %s169, 2
      %s173 = sadd.s32 %s171, %s172
      %s174 = smul.addr %s173, 4
      %s175 = scalar_lea.vmem %s2, %s174
      %s176 = smul.u32 2, %s18
      %p177 = scmp.lt.s32.totalorder %s17, 1
      %s178 = scalar_select %p177, %s17, 1
      %p179 = scmp.lt.s32.totalorder %s176, 1
      %s180 = scalar_select %p179, %s176, 1
      %s181 = smul.addr %s178, 2
      %s182 = sadd.s32 %s180, %s181
      %s183 = smul.addr %s182, 4
      %s184 = scalar_lea.vmem %s0, %s183
      %s185 = smul.u32 2, %s18
      %p186 = scmp.lt.s32.totalorder %s17, 1
      %s187 = scalar_select %p186, %s17, 1
      %s188 = smul.addr %s187, 2
      %s189 = scalar_lea.vmem %s1, %s188
      %s190 = smul.u32 2, %s18
      %p191 = scmp.lt.s32.totalorder %s17, 1
      %s192 = scalar_select %p191, %s17, 1
      %p193 = scmp.lt.s32.totalorder %s190, 1
      %s194 = scalar_select %p193, %s190, 1
      %s195 = smul.addr %s192, 2
      %s196 = sadd.s32 %s194, %s195
      %s197 = smul.addr %s196, 4
      %s198 = scalar_lea.vmem %s2, %s197
      %s199 = smul.u32 2, %s18
      %v201 = vld [vmem:[%s184] sm:$0xf]
      %v202 = vld [vmem:[%s184 + $0x4] sm:$0xf]
      %v203 = vld [vmem:[%s189] sm:$0x3]
      %v206 = vunpack.c.l.b16 %v201
      %v207 = vunpack.c.l.b16 %v202
      %v208 = vpack.c.b16 %v207, %v206
      %vm209 = vcmask 130048
      %v211 = vsel %vm209, %v208, 0
      %v214 = vsel %vm209, %v203, 0
      %216 = vmatprep.subr.bf16.mxu0 0
      %217 = vmatpush1.bf16.xpose.msra.mxu0 0
      %218 = vmatprep.subr.bf16.mxu0 0
      %219 = vmatpush1.bf16.xpose.msra.mxu0 0
      %220 = vmatprep.subr.bf16.mxu0 0
      %221 = vmatpush1.bf16.xpose.msra.mxu0 0
      %222 = vmatprep.subr.bf16.mxu0 0
      %223 = vmatpush1.bf16.xpose.msra.mxu0 0
      %224 = vmatprep.subr.bf16.mxu0 0
      %225 = vmatpush1.bf16.xpose.msra.mxu0 0
      %226 = vmatprep.subr.bf16.mxu0 0
      %227 = vmatpush1.bf16.xpose.msra.mxu0 0
      %228 = vmatprep.subr.bf16.mxu0 0
      %229 = vmatpush1.bf16.xpose.msra.mxu0 0
      %230 = vmatprep.subr.bf16.mxu0 0
      %231 = vmatpush1.bf16.xpose.msra.mxu0 %v214
      %232 = vmatprep.subr.bf16.mxu0 0
      %233 = vmatpush2.bf16.xpose.msra.mxu0 0
      %234 = vmatprep.subr.bf16.mxu0 0
      %235 = vmatpush2.bf16.xpose.msra.mxu0 0
      %236 = vmatprep.subr.bf16.mxu0 0
      %237 = vmatpush2.bf16.xpose.msra.mxu0 0
      %238 = vmatprep.subr.bf16.mxu0 0
      %239 = vmatpush2.bf16.xpose.msra.mxu0 0
      %240 = vmatprep.subr.bf16.mxu0 0
      %241 = vmatpush2.bf16.xpose.msra.mxu0 0
      %242 = vmatprep.subr.bf16.mxu0 0
      %243 = vmatpush2.bf16.xpose.msra.mxu0 0
      %244 = vmatprep.subr.bf16.mxu0 0
      %245 = vmatpush2.bf16.xpose.msra.mxu0 0
      %246 = vmatprep.subr.bf16.mxu0 0
      %247 = vmatpush2.bf16.xpose.msra.mxu0 0
      %248 = vmatprep.mubr.bf16.mxu0 0
      %249 = vmatmul.mubr.bf16.gmra.mxu0 %v211
      %v250 = vpop.f32.mrf.mxu0
      %v251 = vadd.f32 0.0, %v250
      %v252 = vpop.f32.mrf.mxu0
      %v253 = vpop.f32.mrf.mxu0
      %v254 = vadd.f32 0.0, %v253
      %v255 = vpop.f32.mrf.mxu0
      %256 = vdwg.mxu0
      %vm257 = vcmask 31744
      %v258 = vsel %vm257, %v251, -inf
      %259 = vmax.xlane.f32.xlu0 %v258
      %v260 = vpop.xlane.xlu0 %259
      %v261 = vsel %vm257, %v254, -inf
      %262 = vmax.xlane.f32.xlu0 %v261
      %v263 = vpop.xlane.xlu0 %262
      %v264 = vsub.f32 %v251, %v260
      %v265 = vsub.f32 %v254, %v263
      %v266 = vmul.f32 %v264, 1.442695
      %v267 = vpow.pop %v266
      %v268 = vmul.f32 %v265, 1.442695
      %v269 = vpow.pop %v268
      %v270 = vsel %vm257, %v267, 0.0
      %271 = vadd.xlane.f32.xlu0 %v270
      %v272 = vpop.xlane.xlu0 %271
      %v273 = vsel %vm257, %v269, 0.0
      %274 = vadd.xlane.f32.xlu0 %v273
      %v275 = vpop.xlane.xlu0 %274
      %v276 = vrcp.pop %v272
      %v277 = vrcp.pop %v275
      %v278 = vpack.c.bf16 %v269, %v267
      %v281 = vunpack.c.l.s4 1983009808
      %v282 = vunpack.c.0.s8 %v281
      %v283 = vlaneseq
      %v284 = vshrl.u32 %v283, 7
      %v285 = vsub.s32 %v282, %v284
      %v286 = vrot.slane %v203, %v285
      %287 = vrot.lane.b32.xlu0 %v286, 96
      %v288 = vpop.permute.xlu0 %287
      %v290 = vsel %vm257, %v278, 0
      %vm292 = vcmask 1041408
      %v294 = vsel %vm292, %v288, 0
      %296 = vmatprep.subr.bf16.mxu0 0
      %297 = vmatpush1.bf16.msra.mxu0 0
      %298 = vmatprep.subr.bf16.mxu0 0
      %299 = vmatpush1.bf16.msra.mxu0 0
      %300 = vmatprep.subr.bf16.mxu0 0
      %301 = vmatpush1.bf16.msra.mxu0 0
      %302 = vmatprep.subr.bf16.mxu0 0
      %303 = vmatpush1.bf16.msra.mxu0 0
      %304 = vmatprep.subr.bf16.mxu0 0
      %305 = vmatpush1.bf16.msra.mxu0 0
      %306 = vmatprep.subr.bf16.mxu0 0
      %307 = vmatpush1.bf16.msra.mxu0 0
      %308 = vmatprep.subr.bf16.mxu0 0
      %309 = vmatpush1.bf16.msra.mxu0 0
      %310 = vmatprep.subr.bf16.mxu0 0
      %311 = vmatpush1.bf16.msra.mxu0 %v294
      %312 = vmatprep.subr.bf16.mxu0 0
      %313 = vmatpush2.bf16.msra.mxu0 0
      %314 = vmatprep.subr.bf16.mxu0 0
      %315 = vmatpush2.bf16.msra.mxu0 0
      %316 = vmatprep.subr.bf16.mxu0 0
      %317 = vmatpush2.bf16.msra.mxu0 0
      %318 = vmatprep.subr.bf16.mxu0 0
      %319 = vmatpush2.bf16.msra.mxu0 0
      %320 = vmatprep.subr.bf16.mxu0 0
      %321 = vmatpush2.bf16.msra.mxu0 0
      %322 = vmatprep.subr.bf16.mxu0 0
      %323 = vmatpush2.bf16.msra.mxu0 0
      %324 = vmatprep.subr.bf16.mxu0 0
      %325 = vmatpush2.bf16.msra.mxu0 0
      %326 = vmatprep.subr.bf16.mxu0 0
      %327 = vmatpush2.bf16.msra.mxu0 0
      %328 = vmatprep.mubr.bf16.mxu0 0
      %329 = vmatmul.mubr.bf16.gmra.mxu0 %v290
      %v330 = vpop.f32.mrf.mxu0
      %v331 = vadd.f32 0.0, %v330
      %v332 = vpop.f32.mrf.mxu0
      %v333 = vpop.f32.mrf.mxu0
      %v334 = vadd.f32 0.0, %v333
      %v335 = vpop.f32.mrf.mxu0
      %336 = vdwg.mxu0
      %v337 = vmul.f32 %v331, %v276
      %v338 = vmul.f32 %v334, %v277
      %339 = vrot.lane.b32.xlu0 %v208, 112
      %v340 = vpop.permute.xlu0 %339
      %341 = vrot.lane.b32.xlu0 %v286, 112
      %v342 = vpop.permute.xlu0 %341
      %v344 = vsel %vm209, %v340, 0
      %v347 = vsel %vm209, %v342, 0
      %349 = vmatprep.subr.bf16.mxu0 0
      %350 = vmatpush1.bf16.xpose.msra.mxu0 0
      %351 = vmatprep.subr.bf16.mxu0 0
      %352 = vmatpush1.bf16.xpose.msra.mxu0 0
      %353 = vmatprep.subr.bf16.mxu0 0
      %354 = vmatpush1.bf16.xpose.msra.mxu0 0
      %355 = vmatprep.subr.bf16.mxu0 0
      %356 = vmatpush1.bf16.xpose.msra.mxu0 0
      %357 = vmatprep.subr.bf16.mxu0 0
      %358 = vmatpush1.bf16.xpose.msra.mxu0 0
      %359 = vmatprep.subr.bf16.mxu0 0
      %360 = vmatpush1.bf16.xpose.msra.mxu0 0
      %361 = vmatprep.subr.bf16.mxu0 0
      %362 = vmatpush1.bf16.xpose.msra.mxu0 0
      %363 = vmatprep.subr.bf16.mxu0 0
      %364 = vmatpush1.bf16.xpose.msra.mxu0 %v347
      %365 = vmatprep.subr.bf16.mxu0 0
      %366 = vmatpush2.bf16.xpose.msra.mxu0 0
      %367 = vmatprep.subr.bf16.mxu0 0
      %368 = vmatpush2.bf16.xpose.msra.mxu0 0
      %369 = vmatprep.subr.bf16.mxu0 0
      %370 = vmatpush2.bf16.xpose.msra.mxu0 0
      %371 = vmatprep.subr.bf16.mxu0 0
      %372 = vmatpush2.bf16.xpose.msra.mxu0 0
      %373 = vmatprep.subr.bf16.mxu0 0
      %374 = vmatpush2.bf16.xpose.msra.mxu0 0
      %375 = vmatprep.subr.bf16.mxu0 0
      %376 = vmatpush2.bf16.xpose.msra.mxu0 0
      %377 = vmatprep.subr.bf16.mxu0 0
      %378 = vmatpush2.bf16.xpose.msra.mxu0 0
      %379 = vmatprep.subr.bf16.mxu0 0
      %380 = vmatpush2.bf16.xpose.msra.mxu0 0
      %381 = vmatprep.mubr.bf16.mxu0 0
      %382 = vmatmul.mubr.bf16.gmra.mxu0 %v344
      %v383 = vpop.f32.mrf.mxu0
      %v384 = vadd.f32 0.0, %v383
      %v385 = vpop.f32.mrf.mxu0
      %v386 = vpop.f32.mrf.mxu0
      %v387 = vadd.f32 0.0, %v386
      %v388 = vpop.f32.mrf.mxu0
      %389 = vdwg.mxu0
      %v390 = vsel %vm257, %v384, -inf
      %391 = vmax.xlane.f32.xlu0 %v390
      %v392 = vpop.xlane.xlu0 %391
      %v393 = vsel %vm257, %v387, -inf
      %394 = vmax.xlane.f32.xlu0 %v393
      %v395 = vpop.xlane.xlu0 %394
      %v396 = vsub.f32 %v384, %v392
      %v397 = vsub.f32 %v387, %v395
      %v398 = vmul.f32 %v396, 1.442695
      %v399 = vpow.pop %v398
      %v400 = vmul.f32 %v397, 1.442695
      %v401 = vpow.pop %v400
      %v402 = vsel %vm257, %v399, 0.0
      %403 = vadd.xlane.f32.xlu0 %v402
      %v404 = vpop.xlane.xlu0 %403
      %v405 = vsel %vm257, %v401, 0.0
      %406 = vadd.xlane.f32.xlu0 %v405
      %v407 = vpop.xlane.xlu0 %406
      %v408 = vrcp.pop %v404
      %v409 = vrcp.pop %v407
      %v410 = vpack.c.bf16 %v401, %v399
      %411 = vrot.lane.b32.xlu0 %v286, 80
      %v412 = vpop.permute.xlu0 %411
      %v414 = vsel %vm257, %v410, 0
      %v417 = vsel %vm292, %v412, 0
      %419 = vmatprep.subr.bf16.mxu0 0
      %420 = vmatpush1.bf16.msra.mxu0 0
      %421 = vmatprep.subr.bf16.mxu0 0
      %422 = vmatpush1.bf16.msra.mxu0 0
      %423 = vmatprep.subr.bf16.mxu0 0
      %424 = vmatpush1.bf16.msra.mxu0 0
      %425 = vmatprep.subr.bf16.mxu0 0
      %426 = vmatpush1.bf16.msra.mxu0 0
      %427 = vmatprep.subr.bf16.mxu0 0
      %428 = vmatpush1.bf16.msra.mxu0 0
      %429 = vmatprep.subr.bf16.mxu0 0
      %430 = vmatpush1.bf16.msra.mxu0 0
      %431 = vmatprep.subr.bf16.mxu0 0
      %432 = vmatpush1.bf16.msra.mxu0 0
      %433 = vmatprep.subr.bf16.mxu0 0
      %434 = vmatpush1.bf16.msra.mxu0 %v417
      %435 = vmatprep.subr.bf16.mxu0 0
      %436 = vmatpush2.bf16.msra.mxu0 0
      %437 = vmatprep.subr.bf16.mxu0 0
      %438 = vmatpush2.bf16.msra.mxu0 0
      %439 = vmatprep.subr.bf16.mxu0 0
      %440 = vmatpush2.bf16.msra.mxu0 0
      %441 = vmatprep.subr.bf16.mxu0 0
      %442 = vmatpush2.bf16.msra.mxu0 0
      %443 = vmatprep.subr.bf16.mxu0 0
      %444 = vmatpush2.bf16.msra.mxu0 0
      %445 = vmatprep.subr.bf16.mxu0 0
      %446 = vmatpush2.bf16.msra.mxu0 0
      %447 = vmatprep.subr.bf16.mxu0 0
      %448 = vmatpush2.bf16.msra.mxu0 0
      %449 = vmatprep.subr.bf16.mxu0 0
      %450 = vmatpush2.bf16.msra.mxu0 0
      %451 = vmatprep.mubr.bf16.mxu0 0
      %452 = vmatmul.mubr.bf16.gmra.mxu0 %v414
      %v453 = vpop.f32.mrf.mxu0
      %v454 = vadd.f32 0.0, %v453
      %v455 = vpop.f32.mrf.mxu0
      %v456 = vpop.f32.mrf.mxu0
      %v457 = vadd.f32 0.0, %v456
      %v458 = vpop.f32.mrf.mxu0
      %459 = vdwg.mxu0
      %v460 = vmul.f32 %v454, %v408
      %v461 = vmul.f32 %v457, %v409
      %464 = vrot.lane.b32.xlu0 %v460, 16
      %v465 = vpop.permute.xlu0 %464
      %466 = vrot.lane.b32.xlu0 %v461, 16
      %v467 = vpop.permute.xlu0 %466
      %v470 = vsel %vm209, %v337, %v465
      %v471 = vsel %vm209, %v338, %v467
      %v472 = vpack.c.bf16 %v471, %v470
      %v474 = vunpack.c.l.b16 %v472
      %v475 = vunpack.c.h.b16 %v472
      %v476 = vpack.c.b16 %v474, %v474
      %v477 = vpack.c.b16 %v475, %v475
      %vm480 = vcmask 257024
      %481 = vst.msk [vmem:[%s198] sm:$0xf] %vm480, %v476
      %482 = vst.msk [vmem:[%s198 + $0x4] sm:$0xf] %vm480, %v477
      %s483 = smul.u32 2, %s18
      %p484 = scmp.lt.s32.totalorder %s17, 1
      %s485 = scalar_select %p484, %s17, 1
      %p486 = scmp.lt.s32.totalorder %s483, 1
      %s487 = scalar_select %p486, %s483, 1
      %s488 = smul.addr %s485, 2
      %s489 = sadd.s32 %s487, %s488
      %s490 = smul.addr %s489, 4
      %s491 = scalar_lea.vmem %s2, %s490
      // Predicated region
      $region29: #{segformer_stage1_forward.10} parent=27 // pred_check
        %p492 = pneg %p99
      $region30: #{segformer_stage1_forward.10} parent=27 // pred_check_branch
        %494 = sbr.rel (%p492) target = $region32
      $region31: #{segformer_stage1_forward.10} parent=27 // pred_region
        %s495 = smul.u32 2, %s18
      $region32: #{segformer_stage1_forward.10} parent=27 // pred_fallthru
        _
    $region28: #{segformer_stage1_forward.10} parent=5 // pred_fallthru
      _
    %p496 = scmp.le.s32.totalorder 2, %s8
    // Predicated region
    $region33: #{segformer_stage1_forward.10} parent=5 // pred_check
      %p497 = pneg %p496
    $region34: #{segformer_stage1_forward.10} parent=5 // pred_check_branch
      %499 = sbr.rel (%p497) target = $region36
    $region35: #{segformer_stage1_forward.10} parent=5 // pred_region
      %s500 = ssub.s32 %s8, 2
      // Predicated region
      $region37: #{segformer_stage1_forward.10} parent=35 // pred_check
        %p501 = pneg %p105
      $region38: #{segformer_stage1_forward.10} parent=35 // pred_check_branch
        %503 = sbr.rel (%p501) target = $region40
      $region39: #{segformer_stage1_forward.10} parent=35 // pred_region
        %s504 = smul.u32 2, %s20
        %p505 = scmp.lt.s32.totalorder %s19, 1
        %s506 = scalar_select %p505, %s19, 1
        %p507 = scmp.lt.s32.totalorder %s504, 1
        %s508 = scalar_select %p507, %s504, 1
        %s509 = smul.addr %s506, 2
        %s510 = sadd.s32 %s508, %s509
        %s511 = smul.addr %s510, 4
        %s512 = scalar_lea.vmem %s2, %s511
      $region40: #{segformer_stage1_forward.10} parent=35 // pred_fallthru
        _
    $region36: #{segformer_stage1_forward.10} parent=5 // pred_fallthru
      _
  $region6: #{segformer_stage1_forward.10} parent=0 // loop_footer
    %s12 = sadd.s32 1, %s8
  $region7: #{segformer_stage1_forward.10} parent=0 // loop_footer_branch
    %7 = sbr.rel target = $region3
  $region8: #{segformer_stage1_forward.10} parent=0 // loop_exit
    _

// kernel: segformer_stage1_forward.11
$region0: #{segformer_stage1_forward.11}
  #allocation0 [shape = 'u32[]', space=smem, size = 0x4, offset = 0x4, fixed_abs, tag = 'smem constant byte address 0x4 - core index']
  #allocation1 [shape = 'u32[144,128]{1,0:T(1,128)}', space=vmem, size = 0x12000, scoped, tag = 'internal scratch']
  %s0 = inlined_call_operand.vmem [shape: bf16[32,32], index: 0, kind: input, shape index: {}]
  %s1 = inlined_call_operand.vmem [shape: bf16[32,32], index: 1, kind: input, shape index: {}]
  %s2 = inlined_call_operand.vmem [shape: f32[1,32], index: 2, kind: input, shape index: {}]
  %s3 = inlined_call_operand.vmem [shape: bf16[32,32], index: 3, kind: input, shape index: {}]
  %s4 = inlined_call_operand.vmem [shape: f32[1,32], index: 4, kind: input, shape index: {}]
  %s5 = inlined_call_operand.vmem [shape: f32[1,32], index: 5, kind: input, shape index: {}]
  %s6 = inlined_call_operand.vmem [shape: bf16[32,128], index: 6, kind: input, shape index: {}]
  %s7 = inlined_call_operand.vmem [shape: f32[1,128], index: 7, kind: input, shape index: {}]
  %s8 = inlined_call_operand.vmem [shape: bf16[32,32], index: 8, kind: output, shape index: {0}]
  %s9 = inlined_call_operand.vmem [shape: bf16[32,128], index: 9, kind: output, shape index: {1}]
  %10 = xla_tuple %s8, %s9
  %s11 = sld [smem:[#allocation0]]
  $region50: #{segformer_stage1_forward.11} parent=0
    _
  %s13 = ssub.s32 1, %s11
  %s14 = scalar_select 0, %s13, %s11
  // Predicated region
  $region2: #{segformer_stage1_forward.11} parent=0 // pred_check
    _
  $region3: #{segformer_stage1_forward.11} parent=0 // pred_check_branch
    %16 = sbr.rel (0) target = $region5
  $region4: #{segformer_stage1_forward.11} parent=0 // pred_region
    _
  $region5: #{segformer_stage1_forward.11} parent=0 // pred_fallthru
    _
  // Predicated region
  $region6: #{segformer_stage1_forward.11} parent=0 // pred_check
    _
  $region7: #{segformer_stage1_forward.11} parent=0 // pred_check_branch
    %18 = sbr.rel (0) target = $region9
  $region8: #{segformer_stage1_forward.11} parent=0 // pred_region
    _
  $region9: #{segformer_stage1_forward.11} parent=0 // pred_fallthru
    _
  // Predicated region
  $region10: #{segformer_stage1_forward.11} parent=0 // pred_check
    _
  $region11: #{segformer_stage1_forward.11} parent=0 // pred_check_branch
    %20 = sbr.rel (0) target = $region13
  $region12: #{segformer_stage1_forward.11} parent=0 // pred_region
    _
  $region13: #{segformer_stage1_forward.11} parent=0 // pred_fallthru
    _
  // Predicated region
  $region14: #{segformer_stage1_forward.11} parent=0 // pred_check
    _
  $region15: #{segformer_stage1_forward.11} parent=0 // pred_check_branch
    %22 = sbr.rel (0) target = $region17
  $region16: #{segformer_stage1_forward.11} parent=0 // pred_region
    _
  $region17: #{segformer_stage1_forward.11} parent=0 // pred_fallthru
    _
  // Predicated region
  $region18: #{segformer_stage1_forward.11} parent=0 // pred_check
    _
  $region19: #{segformer_stage1_forward.11} parent=0 // pred_check_branch
    %24 = sbr.rel (0) target = $region21
  $region20: #{segformer_stage1_forward.11} parent=0 // pred_region
    _
  $region21: #{segformer_stage1_forward.11} parent=0 // pred_fallthru
    _
  // Predicated region
  $region22: #{segformer_stage1_forward.11} parent=0 // pred_check
    _
  $region23: #{segformer_stage1_forward.11} parent=0 // pred_check_branch
    %26 = sbr.rel (0) target = $region25
  $region24: #{segformer_stage1_forward.11} parent=0 // pred_region
    _
  $region25: #{segformer_stage1_forward.11} parent=0 // pred_fallthru
    _
  // Predicated region
  $region26: #{segformer_stage1_forward.11} parent=0 // pred_check
    _
  $region27: #{segformer_stage1_forward.11} parent=0 // pred_check_branch
    %28 = sbr.rel (0) target = $region29
  $region28: #{segformer_stage1_forward.11} parent=0 // pred_region
    _
  $region29: #{segformer_stage1_forward.11} parent=0 // pred_fallthru
    _
  // Predicated region
  $region30: #{segformer_stage1_forward.11} parent=0 // pred_check
    _
  $region31: #{segformer_stage1_forward.11} parent=0 // pred_check_branch
    %30 = sbr.rel (0) target = $region33
  $region32: #{segformer_stage1_forward.11} parent=0 // pred_region
    _
  $region33: #{segformer_stage1_forward.11} parent=0 // pred_fallthru
    _
  %v32 = vld [vmem:[%s0] sm:$0xf]
  %v33 = vld [vmem:[%s0 + $0x4] sm:$0xf]
  %v34 = vld [vmem:[%s0 + $0x8] sm:$0xf]
  %v35 = vld [vmem:[%s0 + $0xc] sm:$0xf]
  %v36 = vld [vmem:[%s1] sm:$0xf]
  %v37 = vld [vmem:[%s1 + $0x4] sm:$0xf]
  %v38 = vld [vmem:[%s1 + $0x8] sm:$0xf]
  %v39 = vld [vmem:[%s1 + $0xc] sm:$0xf]
  %v40 = vld [vmem:[%s2] sm:$0x1]
  %v42 = vlaneseq
  %v43 = vshrl.u32 %v42, 7
  %v44 = vsub.s32 0, %v43
  %v45 = vrot.slane %v40, %v44
  %v51 = vunpack.c.l.b16 %v32
  %v52 = vunpack.c.l.b16 %v33
  %v53 = vunpack.c.l.b16 %v34
  %v54 = vunpack.c.l.b16 %v35
  %v55 = vpack.c.b16 %v52, %v51
  %v56 = vpack.c.b16 %v54, %v53
  %v61 = vunpack.c.l.b16 %v36
  %v62 = vunpack.c.l.b16 %v37
  %v63 = vunpack.c.l.b16 %v38
  %v64 = vunpack.c.l.b16 %v39
  %v65 = vpack.c.b16 %v62, %v61
  %v66 = vpack.c.b16 %v64, %v63
  %vm69 = vcmask 261120
  %v71 = vsel %vm69, %v55, 0
  %v74 = vsel %vm69, %v56, 0
  %76 = vmatprep.subr.bf16.mxu0 0
  %77 = vmatpush1.bf16.msra.mxu0 0
  %78 = vmatprep.subr.bf16.mxu0 0
  %79 = vmatpush1.bf16.msra.mxu0 0
  %80 = vmatprep.subr.bf16.mxu0 0
  %81 = vmatpush1.bf16.msra.mxu0 0
  %82 = vmatprep.subr.bf16.mxu0 0
  %83 = vmatpush1.bf16.msra.mxu0 0
  %84 = vmatprep.subr.bf16.mxu0 0
  %85 = vmatpush1.bf16.msra.mxu0 0
  %86 = vmatprep.subr.bf16.mxu0 0
  %87 = vmatpush1.bf16.msra.mxu0 0
  %88 = vmatprep.subr.bf16.mxu0 0
  %89 = vmatpush1.bf16.msra.mxu0 %v66
  %90 = vmatprep.subr.bf16.mxu0 0
  %91 = vmatpush1.bf16.msra.mxu0 %v65
  %92 = vmatprep.subr.bf16.mxu0 0
  %93 = vmatpush2.bf16.msra.mxu0 0
  %94 = vmatprep.subr.bf16.mxu0 0
  %95 = vmatpush2.bf16.msra.mxu0 0
  %96 = vmatprep.subr.bf16.mxu0 0
  %97 = vmatpush2.bf16.msra.mxu0 0
  %98 = vmatprep.subr.bf16.mxu0 0
  %99 = vmatpush2.bf16.msra.mxu0 0
  %100 = vmatprep.subr.bf16.mxu0 0
  %101 = vmatpush2.bf16.msra.mxu0 0
  %102 = vmatprep.subr.bf16.mxu0 0
  %103 = vmatpush2.bf16.msra.mxu0 0
  %104 = vmatprep.subr.bf16.mxu0 0
  %105 = vmatpush2.bf16.msra.mxu0 0
  %106 = vmatprep.subr.bf16.mxu0 0
  %107 = vmatpush2.bf16.msra.mxu0 0
  %108 = vmatprep.mubr.bf16.mxu0 0
  %109 = vmatmul.mubr.bf16.gmra.mxu0 %v71
  %v110 = vpop.f32.mrf.mxu0
  %v111 = vadd.f32 %v45, %v110
  %v112 = vpop.f32.mrf.mxu0
  %v113 = vpop.f32.mrf.mxu0
  %v114 = vadd.f32 %v45, %v113
  %v115 = vpop.f32.mrf.mxu0
  %116 = vmatprep.mubr.bf16.mxu0 0
  %117 = vmatmul.mubr.bf16.gmra.mxu0 %v74
  %v118 = vpop.f32.mrf.mxu0
  %v119 = vadd.f32 %v45, %v118
  %v120 = vpop.f32.mrf.mxu0
  %v121 = vpop.f32.mrf.mxu0
  %v122 = vadd.f32 %v45, %v121
  %v123 = vpop.f32.mrf.mxu0
  %124 = vdwg.mxu0
  %v125 = vld [vmem:[%s3] sm:$0xf]
  %v126 = vld [vmem:[%s3 + $0x4] sm:$0xf]
  %v127 = vld [vmem:[%s3 + $0x8] sm:$0xf]
  %v128 = vld [vmem:[%s3 + $0xc] sm:$0xf]
  %v129 = vunpack.c.l.bf16 %v125
  %v130 = vunpack.c.l.bf16 %v126
  %v131 = vunpack.c.l.bf16 %v127
  %v132 = vunpack.c.l.bf16 %v128
  %v133 = vadd.f32 %v111, %v129
  %v134 = vadd.f32 %v114, %v130
  %v135 = vadd.f32 %v119, %v131
  %v136 = vadd.f32 %v122, %v132
  %v137 = vpack.c.bf16 %v134, %v133
  %v138 = vpack.c.bf16 %v136, %v135
  %v141 = vunpack.c.l.b16 %v137
  %v142 = vunpack.c.h.b16 %v137
  %v143 = vunpack.c.l.b16 %v138
  %v144 = vunpack.c.h.b16 %v138
  %v145 = vpack.c.b16 %v141, %v141
  %v146 = vpack.c.b16 %v142, %v142
  %v147 = vpack.c.b16 %v143, %v143
  %v148 = vpack.c.b16 %v144, %v144
  %vm153 = vcmask 257024
  %154 = vst.msk [vmem:[%s8] sm:$0xf] %vm153, %v145
  %155 = vst.msk [vmem:[%s8 + $0x4] sm:$0xf] %vm153, %v146
  %156 = vst.msk [vmem:[%s8 + $0x8] sm:$0xf] %vm153, %v147
  %157 = vst.msk [vmem:[%s8 + $0xc] sm:$0xf] %vm153, %v148
  %v158 = vld [vmem:[%s4] sm:$0x1]
  %v159 = vld [vmem:[%s5] sm:$0x1]
  %v160 = vsel %vm69, %v133, 0.0
  %161 = vadd.xlane.f32.xlu0 %v160
  %v162 = vpop.xlane.xlu0 %161
  %v163 = vsel %vm69, %v134, 0.0
  %164 = vadd.xlane.f32.xlu0 %v163
  %v165 = vpop.xlane.xlu0 %164
  %v166 = vsel %vm69, %v135, 0.0
  %167 = vadd.xlane.f32.xlu0 %v166
  %v168 = vpop.xlane.xlu0 %167
  %v169 = vsel %vm69, %v136, 0.0
  %170 = vadd.xlane.f32.xlu0 %v169
  %v171 = vpop.xlane.xlu0 %170
  %v172 = vrcp.pop 32.0
  %v173 = vmul.f32 %v162, %v172
  %v174 = vmul.f32 %v165, %v172
  %v175 = vmul.f32 %v168, %v172
  %v176 = vmul.f32 %v171, %v172
  %v177 = vsub.f32 %v133, %v173
  %v178 = vsub.f32 %v134, %v174
  %v179 = vsub.f32 %v135, %v175
  %v180 = vsub.f32 %v136, %v176
  %v181 = vmul.f32 %v177, %v177
  %v182 = vmul.f32 %v178, %v178
  %v183 = vmul.f32 %v179, %v179
  %v184 = vmul.f32 %v180, %v180
  %v185 = vsel %vm69, %v181, 0.0
  %186 = vadd.xlane.f32.xlu0 %v185
  %v187 = vpop.xlane.xlu0 %186
  %v188 = vsel %vm69, %v182, 0.0
  %189 = vadd.xlane.f32.xlu0 %v188
  %v190 = vpop.xlane.xlu0 %189
  %v191 = vsel %vm69, %v183, 0.0
  %192 = vadd.xlane.f32.xlu0 %v191
  %v193 = vpop.xlane.xlu0 %192
  %v194 = vsel %vm69, %v184, 0.0
  %195 = vadd.xlane.f32.xlu0 %v194
  %v196 = vpop.xlane.xlu0 %195
  %v197 = vmul.f32 %v187, %v172
  %v198 = vmul.f32 %v190, %v172
  %v199 = vmul.f32 %v193, %v172
  %v200 = vmul.f32 %v196, %v172
  %v201 = vadd.f32 %v197, 1e-05
  %v202 = vadd.f32 %v198, 1e-05
  %v203 = vadd.f32 %v199, 1e-05
  %v204 = vadd.f32 %v200, 1e-05
  %v205 = vrsqrt.pop %v201
  %v206 = vrsqrt.pop %v202
  %v207 = vrsqrt.pop %v203
  %v208 = vrsqrt.pop %v204
  %v209 = vmul.f32 %v177, %v205
  %v210 = vmul.f32 %v178, %v206
  %v211 = vmul.f32 %v179, %v207
  %v212 = vmul.f32 %v180, %v208
  %v214 = vlaneseq
  %v215 = vshrl.u32 %v214, 7
  %v216 = vsub.s32 0, %v215
  %v217 = vrot.slane %v158, %v216
  %v219 = vmul.f32 %v209, %v217
  %v220 = vmul.f32 %v210, %v217
  %v221 = vmul.f32 %v211, %v217
  %v222 = vmul.f32 %v212, %v217
  %v224 = vlaneseq
  %v225 = vshrl.u32 %v224, 7
  %v226 = vsub.s32 0, %v225
  %v227 = vrot.slane %v159, %v226
  %v229 = vadd.f32 %v219, %v227
  %v230 = vadd.f32 %v220, %v227
  %v231 = vadd.f32 %v221, %v227
  %v232 = vadd.f32 %v222, %v227
  %v233 = vpack.c.bf16 %v230, %v229
  %v234 = vpack.c.bf16 %v232, %v231
  %v235 = vld [vmem:[%s6] sm:$0xf]
  %v236 = vld [vmem:[%s6 + $0x4] sm:$0xf]
  %v237 = vld [vmem:[%s6 + $0x8] sm:$0xf]
  %v238 = vld [vmem:[%s6 + $0xc] sm:$0xf]
  %v239 = vld [vmem:[%s7] sm:$0x1]
  %v241 = vlaneseq
  %v242 = vshrl.u32 %v241, 7
  %v243 = vsub.s32 0, %v242
  %v244 = vrot.slane %v239, %v243
  %v250 = vunpack.c.l.b16 %v235
  %v251 = vunpack.c.l.b16 %v236
  %v252 = vunpack.c.l.b16 %v237
  %v253 = vunpack.c.l.b16 %v238
  %v254 = vpack.c.b16 %v251, %v250
  %v255 = vpack.c.b16 %v253, %v252
  %v259 = vsel %vm69, %v233, 0
  %v262 = vsel %vm69, %v234, 0
  %264 = vmatprep.subr.bf16.mxu0 0
  %265 = vmatpush1.bf16.msra.mxu0 0
  %266 = vmatprep.subr.bf16.mxu0 0
  %267 = vmatpush1.bf16.msra.mxu0 0
  %268 = vmatprep.subr.bf16.mxu0 0
  %269 = vmatpush1.bf16.msra.mxu0 0
  %270 = vmatprep.subr.bf16.mxu0 0
  %271 = vmatpush1.bf16.msra.mxu0 0
  %272 = vmatprep.subr.bf16.mxu0 0
  %273 = vmatpush1.bf16.msra.mxu0 0
  %274 = vmatprep.subr.bf16.mxu0 0
  %275 = vmatpush1.bf16.msra.mxu0 0
  %276 = vmatprep.subr.bf16.mxu0 0
  %277 = vmatpush1.bf16.msra.mxu0 %v255
  %278 = vmatprep.subr.bf16.mxu0 0
  %279 = vmatpush1.bf16.msra.mxu0 %v254
  %280 = vmatprep.subr.bf16.mxu0 0
  %281 = vmatpush2.bf16.msra.mxu0 0
  %282 = vmatprep.subr.bf16.mxu0 0
  %283 = vmatpush2.bf16.msra.mxu0 0
  %284 = vmatprep.subr.bf16.mxu0 0
  %285 = vmatpush2.bf16.msra.mxu0 0
  %286 = vmatprep.subr.bf16.mxu0 0
  %287 = vmatpush2.bf16.msra.mxu0 0
  %288 = vmatprep.subr.bf16.mxu0 0
  %289 = vmatpush2.bf16.msra.mxu0 0
  %290 = vmatprep.subr.bf16.mxu0 0
  %291 = vmatpush2.bf16.msra.mxu0 0
  %292 = vmatprep.subr.bf16.mxu0 0
  %293 = vmatpush2.bf16.msra.mxu0 0
  %294 = vmatprep.subr.bf16.mxu0 0
  %295 = vmatpush2.bf16.msra.mxu0 0
  %296 = vmatprep.mubr.bf16.mxu0 0
  %297 = vmatmul.mubr.bf16.gmra.mxu0 %v259
  %v298 = vpop.f32.mrf.mxu0
  %v299 = vadd.f32 %v244, %v298
  %v300 = vpop.f32.mrf.mxu0
  %v301 = vpop.f32.mrf.mxu0
  %v302 = vadd.f32 %v244, %v301
  %v303 = vpop.f32.mrf.mxu0
  %304 = vmatprep.mubr.bf16.mxu0 0
  %305 = vmatmul.mubr.bf16.gmra.mxu0 %v262
  %v306 = vpop.f32.mrf.mxu0
  %v307 = vadd.f32 %v244, %v306
  %v308 = vpop.f32.mrf.mxu0
  %v309 = vpop.f32.mrf.mxu0
  %v310 = vadd.f32 %v244, %v309
  %v311 = vpop.f32.mrf.mxu0
  %312 = vdwg.mxu0
  %v313 = vpack.c.bf16 %v302, %v299
  %v314 = vpack.c.bf16 %v310, %v307
  %v317 = vunpack.c.l.b16 %v313
  %v318 = vunpack.c.h.b16 %v313
  %v319 = vunpack.c.l.b16 %v314
  %v320 = vunpack.c.h.b16 %v314
  %v321 = vpack.c.b16 %v317, %v317
  %v322 = vpack.c.b16 %v318, %v318
  %v323 = vpack.c.b16 %v319, %v319
  %v324 = vpack.c.b16 %v320, %v320
  %329 = vst [vmem:[%s9] sm:$0xf] %v321
  %330 = vst [vmem:[%s9 + $0x4] sm:$0xf] %v322
  %331 = vst [vmem:[%s9 + $0x8] sm:$0xf] %v323
  %332 = vst [vmem:[%s9 + $0xc] sm:$0xf] %v324
  // Predicated region
  $region34: #{segformer_stage1_forward.11} parent=0 // pred_check
    _
  $region35: #{segformer_stage1_forward.11} parent=0 // pred_check_branch
    %334 = sbr.rel (0) target = $region37
  $region36: #{segformer_stage1_forward.11} parent=0 // pred_region
    _
  $region37: #{segformer_stage1_forward.11} parent=0 // pred_fallthru
    _
  // Predicated region
  $region38: #{segformer_stage1_forward.11} parent=0 // pred_check
    _
  $region39: #{segformer_stage1_forward.11} parent=0 // pred_check_branch
    %336 = sbr.rel (0) target = $region41
  $region40: #{segformer_stage1_forward.11} parent=0 // pred_region
    _
  $region41: #{segformer_stage1_forward.11} parent=0 // pred_fallthru
    _
  // Predicated region
  $region42: #{segformer_stage1_forward.11} parent=0 // pred_check
    _
  $region43: #{segformer_stage1_forward.11} parent=0 // pred_check_branch
    %338 = sbr.rel (0) target = $region45
  $region44: #{segformer_stage1_forward.11} parent=0 // pred_region
    _
  $region45: #{segformer_stage1_forward.11} parent=0 // pred_fallthru
    _
  // Predicated region
  $region46: #{segformer_stage1_forward.11} parent=0 // pred_check
    _
  $region47: #{segformer_stage1_forward.11} parent=0 // pred_check_branch
    %340 = sbr.rel (0) target = $region49
  $region48: #{segformer_stage1_forward.11} parent=0 // pred_region
    _
  $region49: #{segformer_stage1_forward.11} parent=0 // pred_fallthru
    _

// kernel: segformer_stage1_forward.9
$region0: #{segformer_stage1_forward.9}
  #allocation0 [shape = 'u32[]', space=smem, size = 0x4, offset = 0x4, fixed_abs, tag = 'smem constant byte address 0x4 - core index']
  #allocation1 [shape = 'u32[144,128]{1,0:T(1,128)}', space=vmem, size = 0x12000, scoped, tag = 'internal scratch']
  %s0 = inlined_call_operand.vmem [shape: bf16[8,128], index: 0, kind: input, shape index: {}]
  %s1 = inlined_call_operand.vmem [shape: bf16[128,32], index: 1, kind: input, shape index: {}]
  %s2 = inlined_call_operand.vmem [shape: f32[1,32], index: 2, kind: input, shape index: {}]
  %s3 = inlined_call_operand.vmem [shape: f32[1,32], index: 3, kind: input, shape index: {}]
  %s4 = inlined_call_operand.vmem [shape: f32[1,32], index: 4, kind: input, shape index: {}]
  %s5 = inlined_call_operand.vmem [shape: bf16[32,64], index: 5, kind: input, shape index: {}]
  %s6 = inlined_call_operand.vmem [shape: f32[1,64], index: 6, kind: input, shape index: {}]
  %s7 = inlined_call_operand.vmem [shape: bf16[8,64], index: 7, kind: output, shape index: {}]
  %s8 = sld [smem:[#allocation0]]
  $region38: #{segformer_stage1_forward.9} parent=0
    _
  %s10 = ssub.s32 1, %s8
  %s11 = scalar_select 0, %s10, %s8
  // Predicated region
  $region2: #{segformer_stage1_forward.9} parent=0 // pred_check
    _
  $region3: #{segformer_stage1_forward.9} parent=0 // pred_check_branch
    %13 = sbr.rel (0) target = $region5
  $region4: #{segformer_stage1_forward.9} parent=0 // pred_region
    _
  $region5: #{segformer_stage1_forward.9} parent=0 // pred_fallthru
    _
  // Predicated region
  $region6: #{segformer_stage1_forward.9} parent=0 // pred_check
    _
  $region7: #{segformer_stage1_forward.9} parent=0 // pred_check_branch
    %15 = sbr.rel (0) target = $region9
  $region8: #{segformer_stage1_forward.9} parent=0 // pred_region
    _
  $region9: #{segformer_stage1_forward.9} parent=0 // pred_fallthru
    _
  // Predicated region
  $region10: #{segformer_stage1_forward.9} parent=0 // pred_check
    _
  $region11: #{segformer_stage1_forward.9} parent=0 // pred_check_branch
    %17 = sbr.rel (0) target = $region13
  $region12: #{segformer_stage1_forward.9} parent=0 // pred_region
    _
  $region13: #{segformer_stage1_forward.9} parent=0 // pred_fallthru
    _
  // Predicated region
  $region14: #{segformer_stage1_forward.9} parent=0 // pred_check
    _
  $region15: #{segformer_stage1_forward.9} parent=0 // pred_check_branch
    %19 = sbr.rel (0) target = $region17
  $region16: #{segformer_stage1_forward.9} parent=0 // pred_region
    _
  $region17: #{segformer_stage1_forward.9} parent=0 // pred_fallthru
    _
  // Predicated region
  $region18: #{segformer_stage1_forward.9} parent=0 // pred_check
    _
  $region19: #{segformer_stage1_forward.9} parent=0 // pred_check_branch
    %21 = sbr.rel (0) target = $region21
  $region20: #{segformer_stage1_forward.9} parent=0 // pred_region
    _
  $region21: #{segformer_stage1_forward.9} parent=0 // pred_fallthru
    _
  // Predicated region
  $region22: #{segformer_stage1_forward.9} parent=0 // pred_check
    _
  $region23: #{segformer_stage1_forward.9} parent=0 // pred_check_branch
    %23 = sbr.rel (0) target = $region25
  $region24: #{segformer_stage1_forward.9} parent=0 // pred_region
    _
  $region25: #{segformer_stage1_forward.9} parent=0 // pred_fallthru
    _
  // Predicated region
  $region26: #{segformer_stage1_forward.9} parent=0 // pred_check
    _
  $region27: #{segformer_stage1_forward.9} parent=0 // pred_check_branch
    %25 = sbr.rel (0) target = $region29
  $region28: #{segformer_stage1_forward.9} parent=0 // pred_region
    _
  $region29: #{segformer_stage1_forward.9} parent=0 // pred_fallthru
    _
  %v27 = vld [vmem:[%s0] sm:$0xf]
  %v28 = vld [vmem:[%s1] sm:$0xf]
  %v29 = vld [vmem:[%s1 + $0x4] sm:$0xf]
  %v30 = vld [vmem:[%s1 + $0x8] sm:$0xf]
  %v31 = vld [vmem:[%s1 + $0xc] sm:$0xf]
  %v32 = vld [vmem:[%s1 + $0x10] sm:$0xf]
  %v33 = vld [vmem:[%s1 + $0x14] sm:$0xf]
  %v34 = vld [vmem:[%s1 + $0x18] sm:$0xf]
  %v35 = vld [vmem:[%s1 + $0x1c] sm:$0xf]
  %v36 = vld [vmem:[%s1 + $0x20] sm:$0xf]
  %v37 = vld [vmem:[%s1 + $0x24] sm:$0xf]
  %v38 = vld [vmem:[%s1 + $0x28] sm:$0xf]
  %v39 = vld [vmem:[%s1 + $0x2c] sm:$0xf]
  %v40 = vld [vmem:[%s1 + $0x30] sm:$0xf]
  %v41 = vld [vmem:[%s1 + $0x34] sm:$0xf]
  %v42 = vld [vmem:[%s1 + $0x38] sm:$0xf]
  %v43 = vld [vmem:[%s1 + $0x3c] sm:$0xf]
  %v44 = vld [vmem:[%s2] sm:$0x1]
  %v46 = vlaneseq
  %v47 = vshrl.u32 %v46, 7
  %v48 = vsub.s32 0, %v47
  %v49 = vrot.slane %v44, %v48
  %v67 = vunpack.c.l.b16 %v28
  %v68 = vunpack.c.l.b16 %v29
  %v69 = vunpack.c.l.b16 %v30
  %v70 = vunpack.c.l.b16 %v31
  %v71 = vunpack.c.l.b16 %v32
  %v72 = vunpack.c.l.b16 %v33
  %v73 = vunpack.c.l.b16 %v34
  %v74 = vunpack.c.l.b16 %v35
  %v75 = vunpack.c.l.b16 %v36
  %v76 = vunpack.c.l.b16 %v37
  %v77 = vunpack.c.l.b16 %v38
  %v78 = vunpack.c.l.b16 %v39
  %v79 = vunpack.c.l.b16 %v40
  %v80 = vunpack.c.l.b16 %v41
  %v81 = vunpack.c.l.b16 %v42
  %v82 = vunpack.c.l.b16 %v43
  %v83 = vpack.c.b16 %v68, %v67
  %v84 = vpack.c.b16 %v70, %v69
  %v85 = vpack.c.b16 %v72, %v71
  %v86 = vpack.c.b16 %v74, %v73
  %v87 = vpack.c.b16 %v76, %v75
  %v88 = vpack.c.b16 %v78, %v77
  %v89 = vpack.c.b16 %v80, %v79
  %v90 = vpack.c.b16 %v82, %v81
  %99 = vmatprep.subr.bf16.mxu0 0
  %100 = vmatpush1.bf16.msra.mxu0 %v90
  %101 = vmatprep.subr.bf16.mxu0 0
  %102 = vmatpush1.bf16.msra.mxu0 %v89
  %103 = vmatprep.subr.bf16.mxu0 0
  %104 = vmatpush1.bf16.msra.mxu0 %v88
  %105 = vmatprep.subr.bf16.mxu0 0
  %106 = vmatpush1.bf16.msra.mxu0 %v87
  %107 = vmatprep.subr.bf16.mxu0 0
  %108 = vmatpush1.bf16.msra.mxu0 %v86
  %109 = vmatprep.subr.bf16.mxu0 0
  %110 = vmatpush1.bf16.msra.mxu0 %v85
  %111 = vmatprep.subr.bf16.mxu0 0
  %112 = vmatpush1.bf16.msra.mxu0 %v84
  %113 = vmatprep.subr.bf16.mxu0 0
  %114 = vmatpush1.bf16.msra.mxu0 %v83
  %115 = vmatprep.subr.bf16.mxu0 0
  %116 = vmatpush2.bf16.msra.mxu0 0
  %117 = vmatprep.subr.bf16.mxu0 0
  %118 = vmatpush2.bf16.msra.mxu0 0
  %119 = vmatprep.subr.bf16.mxu0 0
  %120 = vmatpush2.bf16.msra.mxu0 0
  %121 = vmatprep.subr.bf16.mxu0 0
  %122 = vmatpush2.bf16.msra.mxu0 0
  %123 = vmatprep.subr.bf16.mxu0 0
  %124 = vmatpush2.bf16.msra.mxu0 0
  %125 = vmatprep.subr.bf16.mxu0 0
  %126 = vmatpush2.bf16.msra.mxu0 0
  %127 = vmatprep.subr.bf16.mxu0 0
  %128 = vmatpush2.bf16.msra.mxu0 0
  %129 = vmatprep.subr.bf16.mxu0 0
  %130 = vmatpush2.bf16.msra.mxu0 0
  %131 = vmatprep.mubr.bf16.mxu0 0
  %132 = vmatmul.mubr.bf16.gmra.mxu0 %v27
  %v133 = vpop.f32.mrf.mxu0
  %v134 = vadd.f32 %v49, %v133
  %v135 = vpop.f32.mrf.mxu0
  %v136 = vpop.f32.mrf.mxu0
  %v137 = vpop.f32.mrf.mxu0
  %138 = vdwg.mxu0
  %v139 = vld [vmem:[%s3] sm:$0x1]
  %v140 = vld [vmem:[%s4] sm:$0x1]
  %vm141 = vcmask 261120
  %v142 = vsel %vm141, %v134, 0.0
  %143 = vadd.xlane.f32.xlu0 %v142
  %v144 = vpop.xlane.xlu0 %143
  %v145 = vrcp.pop 32.0
  %v146 = vmul.f32 %v144, %v145
  %v147 = vsub.f32 %v134, %v146
  %v148 = vmul.f32 %v147, %v147
  %v149 = vsel %vm141, %v148, 0.0
  %150 = vadd.xlane.f32.xlu0 %v149
  %v151 = vpop.xlane.xlu0 %150
  %v152 = vmul.f32 %v151, %v145
  %v153 = vadd.f32 %v152, 1e-05
  %v154 = vrsqrt.pop %v153
  %v155 = vmul.f32 %v147, %v154
  %v157 = vlaneseq
  %v158 = vshrl.u32 %v157, 7
  %v159 = vsub.s32 0, %v158
  %v160 = vrot.slane %v139, %v159
  %v162 = vmul.f32 %v155, %v160
  %v164 = vlaneseq
  %v165 = vshrl.u32 %v164, 7
  %v166 = vsub.s32 0, %v165
  %v167 = vrot.slane %v140, %v166
  %v169 = vadd.f32 %v162, %v167
  %v170 = vpack.c.bf16 %v169, %v169
  %v171 = vld [vmem:[%s5] sm:$0xf]
  %v172 = vld [vmem:[%s5 + $0x4] sm:$0xf]
  %v173 = vld [vmem:[%s5 + $0x8] sm:$0xf]
  %v174 = vld [vmem:[%s5 + $0xc] sm:$0xf]
  %v175 = vld [vmem:[%s6] sm:$0x1]
  %v177 = vlaneseq
  %v178 = vshrl.u32 %v177, 7
  %v179 = vsub.s32 0, %v178
  %v180 = vrot.slane %v175, %v179
  %v186 = vunpack.c.l.b16 %v171
  %v187 = vunpack.c.l.b16 %v172
  %v188 = vunpack.c.l.b16 %v173
  %v189 = vunpack.c.l.b16 %v174
  %v190 = vpack.c.b16 %v187, %v186
  %v191 = vpack.c.b16 %v189, %v188
  %v195 = vsel %vm141, %v170, 0
  %197 = vmatprep.subr.bf16.mxu0 0
  %198 = vmatpush1.bf16.msra.mxu0 0
  %199 = vmatprep.subr.bf16.mxu0 0
  %200 = vmatpush1.bf16.msra.mxu0 0
  %201 = vmatprep.subr.bf16.mxu0 0
  %202 = vmatpush1.bf16.msra.mxu0 0
  %203 = vmatprep.subr.bf16.mxu0 0
  %204 = vmatpush1.bf16.msra.mxu0 0
  %205 = vmatprep.subr.bf16.mxu0 0
  %206 = vmatpush1.bf16.msra.mxu0 0
  %207 = vmatprep.subr.bf16.mxu0 0
  %208 = vmatpush1.bf16.msra.mxu0 0
  %209 = vmatprep.subr.bf16.mxu0 0
  %210 = vmatpush1.bf16.msra.mxu0 %v191
  %211 = vmatprep.subr.bf16.mxu0 0
  %212 = vmatpush1.bf16.msra.mxu0 %v190
  %213 = vmatprep.subr.bf16.mxu0 0
  %214 = vmatpush2.bf16.msra.mxu0 0
  %215 = vmatprep.subr.bf16.mxu0 0
  %216 = vmatpush2.bf16.msra.mxu0 0
  %217 = vmatprep.subr.bf16.mxu0 0
  %218 = vmatpush2.bf16.msra.mxu0 0
  %219 = vmatprep.subr.bf16.mxu0 0
  %220 = vmatpush2.bf16.msra.mxu0 0
  %221 = vmatprep.subr.bf16.mxu0 0
  %222 = vmatpush2.bf16.msra.mxu0 0
  %223 = vmatprep.subr.bf16.mxu0 0
  %224 = vmatpush2.bf16.msra.mxu0 0
  %225 = vmatprep.subr.bf16.mxu0 0
  %226 = vmatpush2.bf16.msra.mxu0 0
  %227 = vmatprep.subr.bf16.mxu0 0
  %228 = vmatpush2.bf16.msra.mxu0 0
  %229 = vmatprep.mubr.bf16.mxu0 0
  %230 = vmatmul.mubr.bf16.gmra.mxu0 %v195
  %v231 = vpop.f32.mrf.mxu0
  %v232 = vadd.f32 %v180, %v231
  %v233 = vpop.f32.mrf.mxu0
  %v234 = vpop.f32.mrf.mxu0
  %v235 = vpop.f32.mrf.mxu0
  %236 = vdwg.mxu0
  %v237 = vpack.c.bf16 %v232, %v232
  %vm238 = vcmask 519168
  %239 = vst.msk [vmem:[%s7] sm:$0xf] %vm238, %v237
  // Predicated region
  $region30: #{segformer_stage1_forward.9} parent=0 // pred_check
    _
  $region31: #{segformer_stage1_forward.9} parent=0 // pred_check_branch
    %241 = sbr.rel (0) target = $region33
  $region32: #{segformer_stage1_forward.9} parent=0 // pred_region
    _
  $region33: #{segformer_stage1_forward.9} parent=0 // pred_fallthru
    _
  // Predicated region
  $region34: #{segformer_stage1_forward.9} parent=0 // pred_check
    _
  $region35: #{segformer_stage1_forward.9} parent=0 // pred_check_branch
    %243 = sbr.rel (0) target = $region37
  $region36: #{segformer_stage1_forward.9} parent=0 // pred_region
    _
  $region37: #{segformer_stage1_forward.9} parent=0 // pred_fallthru
    _

// kernel: segformer_stage1_forward.12
$region0: #{segformer_stage1_forward.12}
  #allocation0 [shape = 'u32[]', space=smem, size = 0x4, offset = 0x4, fixed_abs, tag = 'smem constant byte address 0x4 - core index']
  #allocation1 [shape = 'u32[144,128]{1,0:T(1,128)}', space=vmem, size = 0x12000, scoped, tag = 'internal scratch']
  %s0 = inlined_call_operand.vmem [shape: bf16[2,6,6,128], index: 0, kind: input, shape index: {}]
  %s1 = inlined_call_operand.vmem [shape: f32[9,128], index: 1, kind: input, shape index: {}]
  %s2 = inlined_call_operand.vmem [shape: f32[1,128], index: 2, kind: input, shape index: {}]
  %s3 = inlined_call_operand.vmem [shape: bf16[2,4,4,128], index: 3, kind: output, shape index: {}]
  %s4 = sld [smem:[#allocation0]]
  $region45: #{segformer_stage1_forward.12} parent=0
    _
  %s6 = ssub.s32 1, %s4
  %s7 = scalar_select 0, %s6, %s4
  loop: start=0, step=1, limit=4
  $region2: #{segformer_stage1_forward.12} parent=0 // loop_pre_header
    _
  $region3: #{segformer_stage1_forward.12} parent=0 // loop_header
    %s9 = sphi 0, %s13
    %p10 = scmp.ge.s32.totalorder %s9, 4
    %s16 = sphi 0, %s28
    %s17 = sphi 0, %s24
    %s18 = sphi 0, %s16
    %s19 = sphi 0, %s17
    %s20 = sphi 0, %s18
    %s21 = sphi 0, %s19
    %s33 = sphi 0, %s35
    %s36 = sphi 0, %s33
    %s37 = sphi 0, %s36
    %s53 = sphi 0, %s37
    %s59 = sphi 0, %s61
    %s62 = sphi 0, %s59
    %s63 = sphi 0, %s62
    %s79 = sphi 0, %s63
    %s85 = sphi 0, %s87
    %s88 = sphi 0, %s85
    %s89 = sphi 0, %s88
    %s105 = sphi 0, %s89
    %s113 = sphi 0, %s115
    %s116 = sphi 0, %s113
    %s117 = sphi 0, %s116
    %s133 = sphi 0, %s117
  $region4: #{segformer_stage1_forward.12} parent=0 // loop_header_branch
    %12 = sbr.rel (%p10) target = $region8
  $region5: #{segformer_stage1_forward.12} parent=0 // loop_body
    %s14 = ssub.s32 %s9, 1
    %s15 = ssub.s32 %s9, 2
    %s22 = sadd.s32 1, %s17
    %p23 = scmp.ge.s32.totalorder %s22, 1
    %s24 = scalar_select %p23, 0, %s22
    %s25 = sadd.s32 1, %s16
    %s26 = scalar_select %p23, %s25, %s16
    %p27 = scmp.ge.s32.totalorder %s26, 2
    %s28 = scalar_select %p27, 0, %s26
    %s29 = ssub.s32 %s16, %s28
    %s30 = ssub.s32 %s17, %s24
    %s31 = sor.u32 %s29, %s30
    %p32 = scmp.eq.s32.totalorder %s31, 0
    %s34 = sadd.s32 %s33, 1
    %s35 = scalar_select %p32, %s33, %s34
    %p38 = pneg %p32
    %p39 = scmp.eq.s32.totalorder %s9, 1
    %p40 = por %p38, %p39
    %p41 = scmp.ne.s32.totalorder %s33, %s36
    %p42 = scmp.eq.s32.totalorder %s9, 0
    %p43 = por %p41, %p42
    %p44 = scmp.ne.s32.totalorder %s33, %s36
    %p45 = scmp.eq.s32.totalorder %s14, 1
    %p46 = por %p44, %p45
    %p47 = scmp.ne.s32.totalorder %s36, %s37
    %p48 = scmp.eq.s32.totalorder %s14, 0
    %p49 = por %p47, %p48
    %p50 = scmp.ne.s32.totalorder %s36, %s37
    %p51 = scmp.eq.s32.totalorder %s15, 1
    %p52 = por %p50, %p51
    %p54 = scmp.ne.s32.totalorder %s37, %s53
    %p55 = scmp.eq.s32.totalorder %s15, 0
    %p56 = por %p54, %p55
    %s57 = ssub.s32 %s17, %s24
    %p58 = scmp.eq.s32.totalorder %s57, 0
    %s60 = sadd.s32 %s59, 1
    %s61 = scalar_select %p58, %s59, %s60
    %p64 = pneg %p58
    %p65 = scmp.eq.s32.totalorder %s9, 1
    %p66 = por %p64, %p65
    %p67 = scmp.ne.s32.totalorder %s59, %s62
    %p68 = scmp.eq.s32.totalorder %s9, 0
    %p69 = por %p67, %p68
    %p70 = scmp.ne.s32.totalorder %s59, %s62
    %p71 = scmp.eq.s32.totalorder %s14, 1
    %p72 = por %p70, %p71
    %p73 = scmp.ne.s32.totalorder %s62, %s63
    %p74 = scmp.eq.s32.totalorder %s14, 0
    %p75 = por %p73, %p74
    %p76 = scmp.ne.s32.totalorder %s62, %s63
    %p77 = scmp.eq.s32.totalorder %s15, 1
    %p78 = por %p76, %p77
    %p80 = scmp.ne.s32.totalorder %s63, %s79
    %p81 = scmp.eq.s32.totalorder %s15, 0
    %p82 = por %p80, %p81
    %s83 = ssub.s32 %s17, %s24
    %p84 = scmp.eq.s32.totalorder %s83, 0
    %s86 = sadd.s32 %s85, 1
    %s87 = scalar_select %p84, %s85, %s86
    %p90 = pneg %p84
    %p91 = scmp.eq.s32.totalorder %s9, 1
    %p92 = por %p90, %p91
    %p93 = scmp.ne.s32.totalorder %s85, %s88
    %p94 = scmp.eq.s32.totalorder %s9, 0
    %p95 = por %p93, %p94
    %p96 = scmp.ne.s32.totalorder %s85, %s88
    %p97 = scmp.eq.s32.totalorder %s14, 1
    %p98 = por %p96, %p97
    %p99 = scmp.ne.s32.totalorder %s88, %s89
    %p100 = scmp.eq.s32.totalorder %s14, 0
    %p101 = por %p99, %p100
    %p102 = scmp.ne.s32.totalorder %s88, %s89
    %p103 = scmp.eq.s32.totalorder %s15, 1
    %p104 = por %p102, %p103
    %p106 = scmp.ne.s32.totalorder %s89, %s105
    %p107 = scmp.eq.s32.totalorder %s15, 0
    %p108 = por %p106, %p107
    %s109 = ssub.s32 %s16, %s28
    %s110 = ssub.s32 %s17, %s24
    %s111 = sor.u32 %s109, %s110
    %p112 = scmp.eq.s32.totalorder %s111, 0
    %s114 = sadd.s32 %s113, 1
    %s115 = scalar_select %p112, %s113, %s114
    %p118 = pneg %p112
    %p119 = scmp.eq.s32.totalorder %s9, 1
    %p120 = por %p118, %p119
    %p121 = scmp.ne.s32.totalorder %s113, %s116
    %p122 = scmp.eq.s32.totalorder %s9, 0
    %p123 = por %p121, %p122
    %p124 = scmp.ne.s32.totalorder %s113, %s116
    %p125 = scmp.eq.s32.totalorder %s14, 1
    %p126 = por %p124, %p125
    %p127 = scmp.ne.s32.totalorder %s116, %s117
    %p128 = scmp.eq.s32.totalorder %s14, 0
    %p129 = por %p127, %p128
    %p130 = scmp.ne.s32.totalorder %s116, %s117
    %p131 = scmp.eq.s32.totalorder %s15, 1
    %p132 = por %p130, %p131
    %p134 = scmp.ne.s32.totalorder %s117, %s133
    %p135 = scmp.eq.s32.totalorder %s15, 0
    %p136 = por %p134, %p135
    %p137 = scmp.le.s32.totalorder 1, %s9
    %p138 = scmp.lt.s32.totalorder %s9, 3
    %p139 = pnand %p137, %p138
    %p140 = pneg %p139
    // Predicated region
    $region9: #{segformer_stage1_forward.12} parent=5 // pred_check
      _
    $region10: #{segformer_stage1_forward.12} parent=5 // pred_check_branch
      %142 = sbr.rel (%p139) target = $region12
    $region11: #{segformer_stage1_forward.12} parent=5 // pred_region
      %s143 = ssub.s32 %s9, 1
      // Predicated region
      $region13: #{segformer_stage1_forward.12} parent=11 // pred_check
        %p144 = pneg %p75
      $region14: #{segformer_stage1_forward.12} parent=11 // pred_check_branch
        %146 = sbr.rel (%p144) target = $region16
      $region15: #{segformer_stage1_forward.12} parent=11 // pred_region
        %p147 = scmp.lt.s32.totalorder %s19, 0
        %s148 = scalar_select %p147, %s19, 0
        %s149 = smul.addr %s148, 8
        %s150 = scalar_lea.vmem %s1, %s149
      $region16: #{segformer_stage1_forward.12} parent=11 // pred_fallthru
        _
      // Predicated region
      $region17: #{segformer_stage1_forward.12} parent=11 // pred_check
        %p151 = pneg %p101
      $region18: #{segformer_stage1_forward.12} parent=11 // pred_check_branch
        %153 = sbr.rel (%p151) target = $region20
      $region19: #{segformer_stage1_forward.12} parent=11 // pred_region
        %p154 = scmp.lt.s32.totalorder %s19, 0
        %s155 = scalar_select %p154, %s19, 0
        %s156 = scalar_lea.vmem %s2, %s155
      $region20: #{segformer_stage1_forward.12} parent=11 // pred_fallthru
        _
    $region12: #{segformer_stage1_forward.12} parent=5 // pred_fallthru
      _
    %p157 = scmp.lt.s32.totalorder %s9, 2
    // Predicated region
    $region21: #{segformer_stage1_forward.12} parent=5 // pred_check
      %p158 = pneg %p157
    $region22: #{segformer_stage1_forward.12} parent=5 // pred_check_branch
      %160 = sbr.rel (%p158) target = $region24
    $region23: #{segformer_stage1_forward.12} parent=5 // pred_region
      // Predicated region
      $region25: #{segformer_stage1_forward.12} parent=23 // pred_check
        %p161 = pneg %p43
      $region26: #{segformer_stage1_forward.12} parent=23 // pred_check_branch
        %163 = sbr.rel (%p161) target = $region28
      $region27: #{segformer_stage1_forward.12} parent=23 // pred_region
        %p164 = scmp.lt.s32.totalorder %s16, 1
        %s165 = scalar_select %p164, %s16, 1
        %p166 = scmp.lt.s32.totalorder %s17, 0
        %s167 = scalar_select %p166, %s17, 0
        %s168 = smul.addr %s165, 6
        %s169 = sadd.s32 %s167, %s168
        %s170 = smul.addr %s169, 4
        %s171 = scalar_lea.vmem %s0, %s170
      $region28: #{segformer_stage1_forward.12} parent=23 // pred_fallthru
        _
    $region24: #{segformer_stage1_forward.12} parent=5 // pred_fallthru
      _
    %p172 = scmp.le.s32.totalorder 1, %s9
    %p173 = scmp.lt.s32.totalorder %s9, 3
    %p174 = pnand %p172, %p173
    %p175 = pneg %p174
    // Predicated region
    $region29: #{segformer_stage1_forward.12} parent=5 // pred_check
      _
    $region30: #{segformer_stage1_forward.12} parent=5 // pred_check_branch
      %177 = sbr.rel (%p174) target = $region32
    $region31: #{segformer_stage1_forward.12} parent=5 // pred_region
      %s178 = ssub.s32 %s9, 1
      %p179 = scmp.lt.s32.totalorder %s18, 1
      %s180 = scalar_select %p179, %s18, 1
      %p181 = scmp.lt.s32.totalorder %s19, 0
      %s182 = scalar_select %p181, %s19, 0
      %s183 = smul.addr %s180, 6
      %s184 = sadd.s32 %s182, %s183
      %s185 = smul.addr %s184, 4
      %s186 = scalar_lea.vmem %s0, %s185
      %p187 = pneg %p49
      %p188 = pneg %p46
      %p189 = scmp.lt.s32.totalorder %s19, 0
      %s190 = scalar_select %p189, %s19, 0
      %s191 = smul.addr %s190, 8
      %s192 = scalar_lea.vmem %s1, %s191
      %p193 = pneg %p75
      %p194 = pneg %p72
      %p195 = scmp.lt.s32.totalorder %s19, 0
      %s196 = scalar_select %p195, %s19, 0
      %s197 = scalar_lea.vmem %s2, %s196
      %p198 = pneg %p101
      %p199 = pneg %p98
      %p200 = pneg %p129
      %p201 = pneg %p126
      %p202 = scmp.lt.s32.totalorder %s18, 1
      %s203 = scalar_select %p202, %s18, 1
      %p204 = scmp.lt.s32.totalorder %s19, 0
      %s205 = scalar_select %p204, %s19, 0
      %s206 = smul.addr %s203, 4
      %s207 = sadd.s32 %s205, %s206
      %s208 = smul.addr %s207, 2
      %s209 = scalar_lea.vmem %s3, %s208
      %p210 = scmp.lt.s32.totalorder %s18, 1
      %s211 = scalar_select %p210, %s18, 1
      %p212 = scmp.lt.s32.totalorder %s19, 0
      %s213 = scalar_select %p212, %s19, 0
      %s214 = smul.addr %s211, 6
      %s215 = sadd.s32 %s213, %s214
      %s216 = smul.addr %s215, 4
      %s217 = scalar_lea.vmem %s0, %s216
      %p218 = scmp.lt.s32.totalorder %s19, 0
      %s219 = scalar_select %p218, %s19, 0
      %s220 = smul.addr %s219, 8
      %s221 = scalar_lea.vmem %s1, %s220
      %p222 = scmp.lt.s32.totalorder %s19, 0
      %s223 = scalar_select %p222, %s19, 0
      %s224 = scalar_lea.vmem %s2, %s223
      %p225 = scmp.lt.s32.totalorder %s18, 1
      %s226 = scalar_select %p225, %s18, 1
      %p227 = scmp.lt.s32.totalorder %s19, 0
      %s228 = scalar_select %p227, %s19, 0
      %s229 = smul.addr %s226, 4
      %s230 = sadd.s32 %s228, %s229
      %s231 = smul.addr %s230, 2
      %s232 = scalar_lea.vmem %s3, %s231
      %v233 = vld [vmem:[%s217] sm:$0x3]
      %v234 = vld [vmem:[%s217 + $0x4] sm:$0x3]
      %v235 = vld [vmem:[%s217 + $0x8] sm:$0x3]
      %v236 = vld [vmem:[%s217 + $0xc] sm:$0x3]
      %v237 = vunpack.c.l.bf16 %v233
      %v238 = vunpack.c.l.bf16 %v234
      %v239 = vunpack.c.l.bf16 %v235
      %v240 = vunpack.c.l.bf16 %v236
      %v241 = vld [vmem:[%s221] sm:$0x1]
      %v242 = vlaneseq
      %v243 = vshrl.u32 %v242, 7
      %v244 = vsub.s32 0, %v243
      %v245 = vrot.slane %v241, %v244
      %v246 = vmul.f32 %v237, %v245
      %v247 = vmul.f32 %v238, %v245
      %v248 = vmul.f32 %v239, %v245
      %v249 = vmul.f32 %v240, %v245
      %v250 = vadd.f32 %v246, 0.0
      %v251 = vadd.f32 %v247, 0.0
      %v252 = vadd.f32 %v248, 0.0
      %v253 = vadd.f32 %v249, 0.0
      %v254 = vld [vmem:[%s217] sm:$0x7]
      %v255 = vld [vmem:[%s217 + $0x4] sm:$0x7]
      %v256 = vld [vmem:[%s217 + $0x8] sm:$0x7]
      %v257 = vld [vmem:[%s217 + $0xc] sm:$0x7]
      %v258 = vunpack.c.l.bf16 %v254
      %v259 = vunpack.c.l.bf16 %v255
      %v260 = vunpack.c.l.bf16 %v256
      %v261 = vunpack.c.l.bf16 %v257
      %v262 = vld [vmem:[%s221 + $0x1] sm:$0x1]
      %v263 = vlaneseq
      %v264 = vshrl.u32 %v263, 7
      %v265 = vsub.s32 0, %v264
      %v266 = vrot.slane %v262, %v265
      %v267 = vmul.f32 %v258, %v266
      %v268 = vmul.f32 %v259, %v266
      %v269 = vmul.f32 %v260, %v266
      %v270 = vmul.f32 %v261, %v266
      %v275 = vrot.slane %v267, 1
      %v276 = vrot.slane %v268, 1
      %v277 = vrot.slane %v269, 1
      %v278 = vrot.slane %v270, 1
      %v283 = vadd.f32 %v250, %v275
      %v284 = vadd.f32 %v251, %v276
      %v285 = vadd.f32 %v252, %v277
      %v286 = vadd.f32 %v253, %v278
      %v287 = vld [vmem:[%s217] sm:$0x6]
      %v288 = vld [vmem:[%s217 + $0x4] sm:$0x6]
      %v289 = vld [vmem:[%s217 + $0x8] sm:$0x6]
      %v290 = vld [vmem:[%s217 + $0xc] sm:$0x6]
      %v291 = vunpack.c.l.bf16 %v287
      %v292 = vunpack.c.l.bf16 %v288
      %v293 = vunpack.c.l.bf16 %v289
      %v294 = vunpack.c.l.bf16 %v290
      %v295 = vld [vmem:[%s221 + $0x2] sm:$0x1]
      %v296 = vlaneseq
      %v297 = vshrl.u32 %v296, 7
      %v298 = vsub.s32 0, %v297
      %v299 = vrot.slane %v295, %v298
      %v300 = vmul.f32 %v291, %v299
      %v301 = vmul.f32 %v292, %v299
      %v302 = vmul.f32 %v293, %v299
      %v303 = vmul.f32 %v294, %v299
      %v308 = vrot.slane %v300, 2
      %v309 = vrot.slane %v301, 2
      %v310 = vrot.slane %v302, 2
      %v311 = vrot.slane %v303, 2
      %v316 = vadd.f32 %v283, %v308
      %v317 = vadd.f32 %v284, %v309
      %v318 = vadd.f32 %v285, %v310
      %v319 = vadd.f32 %v286, %v311
      %s320 = scalar_lea.vmem %s217, 4
      %v321 = vld [vmem:[%s320] sm:$0x3]
      %v322 = vld [vmem:[%s320 + $0x4] sm:$0x3]
      %v323 = vld [vmem:[%s320 + $0x8] sm:$0x3]
      %v324 = vld [vmem:[%s320 + $0xc] sm:$0x3]
      %v325 = vunpack.c.l.bf16 %v321
      %v326 = vunpack.c.l.bf16 %v322
      %v327 = vunpack.c.l.bf16 %v323
      %v328 = vunpack.c.l.bf16 %v324
      %v329 = vld [vmem:[%s221 + $0x3] sm:$0x1]
      %v330 = vlaneseq
      %v331 = vshrl.u32 %v330, 7
      %v332 = vsub.s32 0, %v331
      %v333 = vrot.slane %v329, %v332
      %v334 = vmul.f32 %v325, %v333
      %v335 = vmul.f32 %v326, %v333
      %v336 = vmul.f32 %v327, %v333
      %v337 = vmul.f32 %v328, %v333
      %v338 = vadd.f32 %v316, %v334
      %v339 = vadd.f32 %v317, %v335
      %v340 = vadd.f32 %v318, %v336
      %v341 = vadd.f32 %v319, %v337
      %v342 = vld [vmem:[%s320] sm:$0x7]
      %v343 = vld [vmem:[%s320 + $0x4] sm:$0x7]
      %v344 = vld [vmem:[%s320 + $0x8] sm:$0x7]
      %v345 = vld [vmem:[%s320 + $0xc] sm:$0x7]
      %v346 = vunpack.c.l.bf16 %v342
      %v347 = vunpack.c.l.bf16 %v343
      %v348 = vunpack.c.l.bf16 %v344
      %v349 = vunpack.c.l.bf16 %v345
      %v350 = vld [vmem:[%s221 + $0x4] sm:$0x1]
      %v351 = vlaneseq
      %v352 = vshrl.u32 %v351, 7
      %v353 = vsub.s32 0, %v352
      %v354 = vrot.slane %v350, %v353
      %v355 = vmul.f32 %v346, %v354
      %v356 = vmul.f32 %v347, %v354
      %v357 = vmul.f32 %v348, %v354
      %v358 = vmul.f32 %v349, %v354
      %v363 = vrot.slane %v355, 1
      %v364 = vrot.slane %v356, 1
      %v365 = vrot.slane %v357, 1
      %v366 = vrot.slane %v358, 1
      %v371 = vadd.f32 %v338, %v363
      %v372 = vadd.f32 %v339, %v364
      %v373 = vadd.f32 %v340, %v365
      %v374 = vadd.f32 %v341, %v366
      %v375 = vld [vmem:[%s320] sm:$0x6]
      %v376 = vld [vmem:[%s320 + $0x4] sm:$0x6]
      %v377 = vld [vmem:[%s320 + $0x8] sm:$0x6]
      %v378 = vld [vmem:[%s320 + $0xc] sm:$0x6]
      %v379 = vunpack.c.l.bf16 %v375
      %v380 = vunpack.c.l.bf16 %v376
      %v381 = vunpack.c.l.bf16 %v377
      %v382 = vunpack.c.l.bf16 %v378
      %v383 = vld [vmem:[%s221 + $0x5] sm:$0x1]
      %v384 = vlaneseq
      %v385 = vshrl.u32 %v384, 7
      %v386 = vsub.s32 0, %v385
      %v387 = vrot.slane %v383, %v386
      %v388 = vmul.f32 %v379, %v387
      %v389 = vmul.f32 %v380, %v387
      %v390 = vmul.f32 %v381, %v387
      %v391 = vmul.f32 %v382, %v387
      %v396 = vrot.slane %v388, 2
      %v397 = vrot.slane %v389, 2
      %v398 = vrot.slane %v390, 2
      %v399 = vrot.slane %v391, 2
      %v404 = vadd.f32 %v371, %v396
      %v405 = vadd.f32 %v372, %v397
      %v406 = vadd.f32 %v373, %v398
      %v407 = vadd.f32 %v374, %v399
      %s408 = scalar_lea.vmem %s217, 8
      %v409 = vld [vmem:[%s408] sm:$0x3]
      %v410 = vld [vmem:[%s408 + $0x4] sm:$0x3]
      %v411 = vld [vmem:[%s408 + $0x8] sm:$0x3]
      %v412 = vld [vmem:[%s408 + $0xc] sm:$0x3]
      %v413 = vunpack.c.l.bf16 %v409
      %v414 = vunpack.c.l.bf16 %v410
      %v415 = vunpack.c.l.bf16 %v411
      %v416 = vunpack.c.l.bf16 %v412
      %v417 = vld [vmem:[%s221 + $0x6] sm:$0x1]
      %v418 = vlaneseq
      %v419 = vshrl.u32 %v418, 7
      %v420 = vsub.s32 0, %v419
      %v421 = vrot.slane %v417, %v420
      %v422 = vmul.f32 %v413, %v421
      %v423 = vmul.f32 %v414, %v421
      %v424 = vmul.f32 %v415, %v421
      %v425 = vmul.f32 %v416, %v421
      %v426 = vadd.f32 %v404, %v422
      %v427 = vadd.f32 %v405, %v423
      %v428 = vadd.f32 %v406, %v424
      %v429 = vadd.f32 %v407, %v425
      %v430 = vld [vmem:[%s408] sm:$0x7]
      %v431 = vld [vmem:[%s408 + $0x4] sm:$0x7]
      %v432 = vld [vmem:[%s408 + $0x8] sm:$0x7]
      %v433 = vld [vmem:[%s408 + $0xc] sm:$0x7]
      %v434 = vunpack.c.l.bf16 %v430
      %v435 = vunpack.c.l.bf16 %v431
      %v436 = vunpack.c.l.bf16 %v432
      %v437 = vunpack.c.l.bf16 %v433
      %v438 = vld [vmem:[%s221 + $0x7] sm:$0x1]
      %v439 = vlaneseq
      %v440 = vshrl.u32 %v439, 7
      %v441 = vsub.s32 0, %v440
      %v442 = vrot.slane %v438, %v441
      %v443 = vmul.f32 %v434, %v442
      %v444 = vmul.f32 %v435, %v442
      %v445 = vmul.f32 %v436, %v442
      %v446 = vmul.f32 %v437, %v442
      %v451 = vrot.slane %v443, 1
      %v452 = vrot.slane %v444, 1
      %v453 = vrot.slane %v445, 1
      %v454 = vrot.slane %v446, 1
      %v459 = vadd.f32 %v426, %v451
      %v460 = vadd.f32 %v427, %v452
      %v461 = vadd.f32 %v428, %v453
      %v462 = vadd.f32 %v429, %v454
      %v463 = vld [vmem:[%s408] sm:$0x6]
      %v464 = vld [vmem:[%s408 + $0x4] sm:$0x6]
      %v465 = vld [vmem:[%s408 + $0x8] sm:$0x6]
      %v466 = vld [vmem:[%s408 + $0xc] sm:$0x6]
      %v467 = vunpack.c.l.bf16 %v463
      %v468 = vunpack.c.l.bf16 %v464
      %v469 = vunpack.c.l.bf16 %v465
      %v470 = vunpack.c.l.bf16 %v466
      %v471 = vld [vmem:[%s221 + $0x8] sm:$0x1]
      %v472 = vlaneseq
      %v473 = vshrl.u32 %v472, 7
      %v474 = vsub.s32 0, %v473
      %v475 = vrot.slane %v471, %v474
      %v476 = vmul.f32 %v467, %v475
      %v477 = vmul.f32 %v468, %v475
      %v478 = vmul.f32 %v469, %v475
      %v479 = vmul.f32 %v470, %v475
      %v484 = vrot.slane %v476, 2
      %v485 = vrot.slane %v477, 2
      %v486 = vrot.slane %v478, 2
      %v487 = vrot.slane %v479, 2
      %v492 = vadd.f32 %v459, %v484
      %v493 = vadd.f32 %v460, %v485
      %v494 = vadd.f32 %v461, %v486
      %v495 = vadd.f32 %v462, %v487
      %v496 = vld [vmem:[%s224] sm:$0x1]
      %v498 = vlaneseq
      %v499 = vshrl.u32 %v498, 7
      %v500 = vsub.s32 0, %v499
      %v501 = vrot.slane %v496, %v500
      %v503 = vadd.f32 %v492, %v501
      %v504 = vadd.f32 %v493, %v501
      %v505 = vadd.f32 %v494, %v501
      %v506 = vadd.f32 %v495, %v501
      %v507 = vmul.f32 %v503, 0.5
      %v508 = vmul.f32 %v504, 0.5
      %v509 = vmul.f32 %v505, 0.5
      %v510 = vmul.f32 %v506, 0.5
      %v511 = vmul.f32 %v503, 0.70710677
      %v512 = vmul.f32 %v504, 0.70710677
      %v513 = vmul.f32 %v505, 0.70710677
      %v514 = vmul.f32 %v506, 0.70710677
      %v515 = verf.f32.pop %v511
      %v516 = verf.f32.pop %v512
      %v517 = verf.f32.pop %v513
      %v518 = verf.f32.pop %v514
      %v519 = vadd.f32 %v515, 1.0
      %v520 = vadd.f32 %v516, 1.0
      %v521 = vadd.f32 %v517, 1.0
      %v522 = vadd.f32 %v518, 1.0
      %v523 = vmul.f32 %v507, %v519
      %v524 = vmul.f32 %v508, %v520
      %v525 = vmul.f32 %v509, %v521
      %v526 = vmul.f32 %v510, %v522
      %v527 = vpack.c.bf16 %v523, %v523
      %v528 = vpack.c.bf16 %v524, %v524
      %v529 = vpack.c.bf16 %v525, %v525
      %v530 = vpack.c.bf16 %v526, %v526
      %531 = vst [vmem:[%s232] sm:$0x3] %v527
      %532 = vst [vmem:[%s232 + $0x2] sm:$0x3] %v528
      %533 = vst [vmem:[%s232 + $0x4] sm:$0x3] %v529
      %534 = vst [vmem:[%s232 + $0x6] sm:$0x3] %v530
      %p535 = scmp.lt.s32.totalorder %s18, 1
      %s536 = scalar_select %p535, %s18, 1
      %p537 = scmp.lt.s32.totalorder %s19, 0
      %s538 = scalar_select %p537, %s19, 0
      %s539 = smul.addr %s536, 4
      %s540 = sadd.s32 %s538, %s539
      %s541 = smul.addr %s540, 2
      %s542 = scalar_lea.vmem %s3, %s541
      // Predicated region
      $region33: #{segformer_stage1_forward.12} parent=31 // pred_check
        %p543 = pneg %p126
      $region34: #{segformer_stage1_forward.12} parent=31 // pred_check_branch
        %545 = sbr.rel (%p543) target = $region36
      $region35: #{segformer_stage1_forward.12} parent=31 // pred_region
        _
      $region36: #{segformer_stage1_forward.12} parent=31 // pred_fallthru
        _
    $region32: #{segformer_stage1_forward.12} parent=5 // pred_fallthru
      _
    %p546 = scmp.le.s32.totalorder 2, %s9
    // Predicated region
    $region37: #{segformer_stage1_forward.12} parent=5 // pred_check
      %p547 = pneg %p546
    $region38: #{segformer_stage1_forward.12} parent=5 // pred_check_branch
      %549 = sbr.rel (%p547) target = $region40
    $region39: #{segformer_stage1_forward.12} parent=5 // pred_region
      %s550 = ssub.s32 %s9, 2
      // Predicated region
      $region41: #{segformer_stage1_forward.12} parent=39 // pred_check
        %p551 = pneg %p132
      $region42: #{segformer_stage1_forward.12} parent=39 // pred_check_branch
        %553 = sbr.rel (%p551) target = $region44
      $region43: #{segformer_stage1_forward.12} parent=39 // pred_region
        %p554 = scmp.lt.s32.totalorder %s20, 1
        %s555 = scalar_select %p554, %s20, 1
        %p556 = scmp.lt.s32.totalorder %s21, 0
        %s557 = scalar_select %p556, %s21, 0
        %s558 = smul.addr %s555, 4
        %s559 = sadd.s32 %s557, %s558
        %s560 = smul.addr %s559, 2
        %s561 = scalar_lea.vmem %s3, %s560
      $region44: #{segformer_stage1_forward.12} parent=39 // pred_fallthru
        _
    $region40: #{segformer_stage1_forward.12} parent=5 // pred_fallthru
      _
  $region6: #{segformer_stage1_forward.12} parent=0 // loop_footer
    %s13 = sadd.s32 1, %s9
  $region7: #{segformer_stage1_forward.12} parent=0 // loop_footer_branch
    %8 = sbr.rel target = $region3
  $region8: #{segformer_stage1_forward.12} parent=0 // loop_exit
    _

// kernel: segformer_stage1_forward.13
$region0: #{segformer_stage1_forward.13}
  #allocation0 [shape = 'u32[]', space=smem, size = 0x4, offset = 0x4, fixed_abs, tag = 'smem constant byte address 0x4 - core index']
  #allocation1 [shape = 'u32[144,128]{1,0:T(1,128)}', space=vmem, size = 0x12000, scoped, tag = 'internal scratch']
  %s0 = inlined_call_operand.vmem [shape: bf16[32,128], index: 0, kind: input, shape index: {}]
  %s1 = inlined_call_operand.vmem [shape: bf16[128,32], index: 1, kind: input, shape index: {}]
  %s2 = inlined_call_operand.vmem [shape: f32[1,32], index: 2, kind: input, shape index: {}]
  %s3 = inlined_call_operand.vmem [shape: bf16[32,32], index: 3, kind: input, shape index: {}]
  %s4 = inlined_call_operand.vmem [shape: f32[1,32], index: 4, kind: input, shape index: {}]
  %s5 = inlined_call_operand.vmem [shape: f32[1,32], index: 5, kind: input, shape index: {}]
  %s6 = inlined_call_operand.vmem [shape: bf16[32,32], index: 6, kind: output, shape index: {}]
  %s7 = sld [smem:[#allocation0]]
  $region34: #{segformer_stage1_forward.13} parent=0
    _
  %s9 = ssub.s32 1, %s7
  %s10 = scalar_select 0, %s9, %s7
  // Predicated region
  $region2: #{segformer_stage1_forward.13} parent=0 // pred_check
    _
  $region3: #{segformer_stage1_forward.13} parent=0 // pred_check_branch
    %12 = sbr.rel (0) target = $region5
  $region4: #{segformer_stage1_forward.13} parent=0 // pred_region
    _
  $region5: #{segformer_stage1_forward.13} parent=0 // pred_fallthru
    _
  // Predicated region
  $region6: #{segformer_stage1_forward.13} parent=0 // pred_check
    _
  $region7: #{segformer_stage1_forward.13} parent=0 // pred_check_branch
    %14 = sbr.rel (0) target = $region9
  $region8: #{segformer_stage1_forward.13} parent=0 // pred_region
    _
  $region9: #{segformer_stage1_forward.13} parent=0 // pred_fallthru
    _
  // Predicated region
  $region10: #{segformer_stage1_forward.13} parent=0 // pred_check
    _
  $region11: #{segformer_stage1_forward.13} parent=0 // pred_check_branch
    %16 = sbr.rel (0) target = $region13
  $region12: #{segformer_stage1_forward.13} parent=0 // pred_region
    _
  $region13: #{segformer_stage1_forward.13} parent=0 // pred_fallthru
    _
  // Predicated region
  $region14: #{segformer_stage1_forward.13} parent=0 // pred_check
    _
  $region15: #{segformer_stage1_forward.13} parent=0 // pred_check_branch
    %18 = sbr.rel (0) target = $region17
  $region16: #{segformer_stage1_forward.13} parent=0 // pred_region
    _
  $region17: #{segformer_stage1_forward.13} parent=0 // pred_fallthru
    _
  // Predicated region
  $region18: #{segformer_stage1_forward.13} parent=0 // pred_check
    _
  $region19: #{segformer_stage1_forward.13} parent=0 // pred_check_branch
    %20 = sbr.rel (0) target = $region21
  $region20: #{segformer_stage1_forward.13} parent=0 // pred_region
    _
  $region21: #{segformer_stage1_forward.13} parent=0 // pred_fallthru
    _
  // Predicated region
  $region22: #{segformer_stage1_forward.13} parent=0 // pred_check
    _
  $region23: #{segformer_stage1_forward.13} parent=0 // pred_check_branch
    %22 = sbr.rel (0) target = $region25
  $region24: #{segformer_stage1_forward.13} parent=0 // pred_region
    _
  $region25: #{segformer_stage1_forward.13} parent=0 // pred_fallthru
    _
  %v24 = vld [vmem:[%s0] sm:$0xf]
  %v25 = vld [vmem:[%s0 + $0x4] sm:$0xf]
  %v26 = vld [vmem:[%s0 + $0x8] sm:$0xf]
  %v27 = vld [vmem:[%s0 + $0xc] sm:$0xf]
  %v28 = vld [vmem:[%s1] sm:$0xf]
  %v29 = vld [vmem:[%s1 + $0x4] sm:$0xf]
  %v30 = vld [vmem:[%s1 + $0x8] sm:$0xf]
  %v31 = vld [vmem:[%s1 + $0xc] sm:$0xf]
  %v32 = vld [vmem:[%s1 + $0x10] sm:$0xf]
  %v33 = vld [vmem:[%s1 + $0x14] sm:$0xf]
  %v34 = vld [vmem:[%s1 + $0x18] sm:$0xf]
  %v35 = vld [vmem:[%s1 + $0x1c] sm:$0xf]
  %v36 = vld [vmem:[%s1 + $0x20] sm:$0xf]
  %v37 = vld [vmem:[%s1 + $0x24] sm:$0xf]
  %v38 = vld [vmem:[%s1 + $0x28] sm:$0xf]
  %v39 = vld [vmem:[%s1 + $0x2c] sm:$0xf]
  %v40 = vld [vmem:[%s1 + $0x30] sm:$0xf]
  %v41 = vld [vmem:[%s1 + $0x34] sm:$0xf]
  %v42 = vld [vmem:[%s1 + $0x38] sm:$0xf]
  %v43 = vld [vmem:[%s1 + $0x3c] sm:$0xf]
  %v44 = vld [vmem:[%s2] sm:$0x1]
  %v46 = vlaneseq
  %v47 = vshrl.u32 %v46, 7
  %v48 = vsub.s32 0, %v47
  %v49 = vrot.slane %v44, %v48
  %v55 = vunpack.c.l.b16 %v24
  %v56 = vunpack.c.l.b16 %v25
  %v57 = vunpack.c.l.b16 %v26
  %v58 = vunpack.c.l.b16 %v27
  %v59 = vpack.c.b16 %v56, %v55
  %v60 = vpack.c.b16 %v58, %v57
  %v79 = vunpack.c.l.b16 %v28
  %v80 = vunpack.c.l.b16 %v29
  %v81 = vunpack.c.l.b16 %v30
  %v82 = vunpack.c.l.b16 %v31
  %v83 = vunpack.c.l.b16 %v32
  %v84 = vunpack.c.l.b16 %v33
  %v85 = vunpack.c.l.b16 %v34
  %v86 = vunpack.c.l.b16 %v35
  %v87 = vunpack.c.l.b16 %v36
  %v88 = vunpack.c.l.b16 %v37
  %v89 = vunpack.c.l.b16 %v38
  %v90 = vunpack.c.l.b16 %v39
  %v91 = vunpack.c.l.b16 %v40
  %v92 = vunpack.c.l.b16 %v41
  %v93 = vunpack.c.l.b16 %v42
  %v94 = vunpack.c.l.b16 %v43
  %v95 = vpack.c.b16 %v80, %v79
  %v96 = vpack.c.b16 %v82, %v81
  %v97 = vpack.c.b16 %v84, %v83
  %v98 = vpack.c.b16 %v86, %v85
  %v99 = vpack.c.b16 %v88, %v87
  %v100 = vpack.c.b16 %v90, %v89
  %v101 = vpack.c.b16 %v92, %v91
  %v102 = vpack.c.b16 %v94, %v93
  %111 = vmatprep.subr.bf16.mxu0 0
  %112 = vmatpush1.bf16.msra.mxu0 %v102
  %113 = vmatprep.subr.bf16.mxu0 0
  %114 = vmatpush1.bf16.msra.mxu0 %v101
  %115 = vmatprep.subr.bf16.mxu0 0
  %116 = vmatpush1.bf16.msra.mxu0 %v100
  %117 = vmatprep.subr.bf16.mxu0 0
  %118 = vmatpush1.bf16.msra.mxu0 %v99
  %119 = vmatprep.subr.bf16.mxu0 0
  %120 = vmatpush1.bf16.msra.mxu0 %v98
  %121 = vmatprep.subr.bf16.mxu0 0
  %122 = vmatpush1.bf16.msra.mxu0 %v97
  %123 = vmatprep.subr.bf16.mxu0 0
  %124 = vmatpush1.bf16.msra.mxu0 %v96
  %125 = vmatprep.subr.bf16.mxu0 0
  %126 = vmatpush1.bf16.msra.mxu0 %v95
  %127 = vmatprep.subr.bf16.mxu0 0
  %128 = vmatpush2.bf16.msra.mxu0 0
  %129 = vmatprep.subr.bf16.mxu0 0
  %130 = vmatpush2.bf16.msra.mxu0 0
  %131 = vmatprep.subr.bf16.mxu0 0
  %132 = vmatpush2.bf16.msra.mxu0 0
  %133 = vmatprep.subr.bf16.mxu0 0
  %134 = vmatpush2.bf16.msra.mxu0 0
  %135 = vmatprep.subr.bf16.mxu0 0
  %136 = vmatpush2.bf16.msra.mxu0 0
  %137 = vmatprep.subr.bf16.mxu0 0
  %138 = vmatpush2.bf16.msra.mxu0 0
  %139 = vmatprep.subr.bf16.mxu0 0
  %140 = vmatpush2.bf16.msra.mxu0 0
  %141 = vmatprep.subr.bf16.mxu0 0
  %142 = vmatpush2.bf16.msra.mxu0 0
  %143 = vmatprep.mubr.bf16.mxu0 0
  %144 = vmatmul.mubr.bf16.gmra.mxu0 %v59
  %v145 = vpop.f32.mrf.mxu0
  %v146 = vadd.f32 %v49, %v145
  %v147 = vpop.f32.mrf.mxu0
  %v148 = vpop.f32.mrf.mxu0
  %v149 = vadd.f32 %v49, %v148
  %v150 = vpop.f32.mrf.mxu0
  %151 = vmatprep.mubr.bf16.mxu0 0
  %152 = vmatmul.mubr.bf16.gmra.mxu0 %v60
  %v153 = vpop.f32.mrf.mxu0
  %v154 = vadd.f32 %v49, %v153
  %v155 = vpop.f32.mrf.mxu0
  %v156 = vpop.f32.mrf.mxu0
  %v157 = vadd.f32 %v49, %v156
  %v158 = vpop.f32.mrf.mxu0
  %159 = vdwg.mxu0
  %v160 = vld [vmem:[%s3] sm:$0xf]
  %v161 = vld [vmem:[%s3 + $0x4] sm:$0xf]
  %v162 = vld [vmem:[%s3 + $0x8] sm:$0xf]
  %v163 = vld [vmem:[%s3 + $0xc] sm:$0xf]
  %v164 = vunpack.c.l.bf16 %v160
  %v165 = vunpack.c.l.bf16 %v161
  %v166 = vunpack.c.l.bf16 %v162
  %v167 = vunpack.c.l.bf16 %v163
  %v168 = vadd.f32 %v146, %v164
  %v169 = vadd.f32 %v149, %v165
  %v170 = vadd.f32 %v154, %v166
  %v171 = vadd.f32 %v157, %v167
  %v172 = vld [vmem:[%s4] sm:$0x1]
  %v173 = vld [vmem:[%s5] sm:$0x1]
  %vm174 = vcmask 261120
  %v175 = vsel %vm174, %v168, 0.0
  %176 = vadd.xlane.f32.xlu0 %v175
  %v177 = vpop.xlane.xlu0 %176
  %v178 = vsel %vm174, %v169, 0.0
  %179 = vadd.xlane.f32.xlu0 %v178
  %v180 = vpop.xlane.xlu0 %179
  %v181 = vsel %vm174, %v170, 0.0
  %182 = vadd.xlane.f32.xlu0 %v181
  %v183 = vpop.xlane.xlu0 %182
  %v184 = vsel %vm174, %v171, 0.0
  %185 = vadd.xlane.f32.xlu0 %v184
  %v186 = vpop.xlane.xlu0 %185
  %v187 = vrcp.pop 32.0
  %v188 = vmul.f32 %v177, %v187
  %v189 = vmul.f32 %v180, %v187
  %v190 = vmul.f32 %v183, %v187
  %v191 = vmul.f32 %v186, %v187
  %v192 = vsub.f32 %v168, %v188
  %v193 = vsub.f32 %v169, %v189
  %v194 = vsub.f32 %v170, %v190
  %v195 = vsub.f32 %v171, %v191
  %v196 = vmul.f32 %v192, %v192
  %v197 = vmul.f32 %v193, %v193
  %v198 = vmul.f32 %v194, %v194
  %v199 = vmul.f32 %v195, %v195
  %v200 = vsel %vm174, %v196, 0.0
  %201 = vadd.xlane.f32.xlu0 %v200
  %v202 = vpop.xlane.xlu0 %201
  %v203 = vsel %vm174, %v197, 0.0
  %204 = vadd.xlane.f32.xlu0 %v203
  %v205 = vpop.xlane.xlu0 %204
  %v206 = vsel %vm174, %v198, 0.0
  %207 = vadd.xlane.f32.xlu0 %v206
  %v208 = vpop.xlane.xlu0 %207
  %v209 = vsel %vm174, %v199, 0.0
  %210 = vadd.xlane.f32.xlu0 %v209
  %v211 = vpop.xlane.xlu0 %210
  %v212 = vmul.f32 %v202, %v187
  %v213 = vmul.f32 %v205, %v187
  %v214 = vmul.f32 %v208, %v187
  %v215 = vmul.f32 %v211, %v187
  %v216 = vadd.f32 %v212, 1e-05
  %v217 = vadd.f32 %v213, 1e-05
  %v218 = vadd.f32 %v214, 1e-05
  %v219 = vadd.f32 %v215, 1e-05
  %v220 = vrsqrt.pop %v216
  %v221 = vrsqrt.pop %v217
  %v222 = vrsqrt.pop %v218
  %v223 = vrsqrt.pop %v219
  %v224 = vmul.f32 %v192, %v220
  %v225 = vmul.f32 %v193, %v221
  %v226 = vmul.f32 %v194, %v222
  %v227 = vmul.f32 %v195, %v223
  %v229 = vlaneseq
  %v230 = vshrl.u32 %v229, 7
  %v231 = vsub.s32 0, %v230
  %v232 = vrot.slane %v172, %v231
  %v234 = vmul.f32 %v224, %v232
  %v235 = vmul.f32 %v225, %v232
  %v236 = vmul.f32 %v226, %v232
  %v237 = vmul.f32 %v227, %v232
  %v239 = vlaneseq
  %v240 = vshrl.u32 %v239, 7
  %v241 = vsub.s32 0, %v240
  %v242 = vrot.slane %v173, %v241
  %v244 = vadd.f32 %v234, %v242
  %v245 = vadd.f32 %v235, %v242
  %v246 = vadd.f32 %v236, %v242
  %v247 = vadd.f32 %v237, %v242
  %v248 = vpack.c.bf16 %v245, %v244
  %v249 = vpack.c.bf16 %v247, %v246
  %v252 = vunpack.c.l.b16 %v248
  %v253 = vunpack.c.h.b16 %v248
  %v254 = vunpack.c.l.b16 %v249
  %v255 = vunpack.c.h.b16 %v249
  %v256 = vpack.c.b16 %v252, %v252
  %v257 = vpack.c.b16 %v253, %v253
  %v258 = vpack.c.b16 %v254, %v254
  %v259 = vpack.c.b16 %v255, %v255
  %vm264 = vcmask 257024
  %265 = vst.msk [vmem:[%s6] sm:$0xf] %vm264, %v256
  %266 = vst.msk [vmem:[%s6 + $0x4] sm:$0xf] %vm264, %v257
  %267 = vst.msk [vmem:[%s6 + $0x8] sm:$0xf] %vm264, %v258
  %268 = vst.msk [vmem:[%s6 + $0xc] sm:$0xf] %vm264, %v259
  // Predicated region
  $region26: #{segformer_stage1_forward.13} parent=0 // pred_check
    _
  $region27: #{segformer_stage1_forward.13} parent=0 // pred_check_branch
    %270 = sbr.rel (0) target = $region29
  $region28: #{segformer_stage1_forward.13} parent=0 // pred_region
    _
  $region29: #{segformer_stage1_forward.13} parent=0 // pred_fallthru
    _
  // Predicated region
  $region30: #{segformer_stage1_forward.13} parent=0 // pred_check
    _
  $region31: #{segformer_stage1_forward.13} parent=0 // pred_check_branch
    %272 = sbr.rel (0) target = $region33
  $region32: #{segformer_stage1_forward.13} parent=0 // pred_region
    _
  $region33: #{segformer_stage1_forward.13} parent=0 // pred_fallthru
    _

</llo_original>
